<compile_context>
chip_gen: v7x
topology: tpu7x:2x2x1
jax: 0.10.0
libtpu: 0.0.40
codegen_flags: <defaults>
</compile_context>

<pallas_src>
import math
import numpy as np

import jax
import jax.numpy as jnp
from jax import lax
from jax.experimental import pallas as pl
from jax.experimental.pallas import tpu as pltpu


# ------------------------------------------------------------------ in-kernel GELU

def _gelu_tanh(x):
    # tanh-approximation GELU: 0.5*x*(1+tanh(sqrt(2/pi)*(x+0.044715*x^3))).
    # tanh goes to the EUP slot; ~6 VPU ops/elem.
    c = 0.7978845608028654
    return 0.5 * x * (1.0 + jnp.tanh(c * (x + 0.044715 * x * x * x)))


def _gelu_erf(x):
    # erf-based (exact) nn.GELU() via Abramowitz & Stegun 7.1.26 (|err| <= 1.5e-7).
    # Kept behind a flag for closer PyTorch parity.
    a1, a2, a3, a4, a5 = 0.254829592, -0.284496736, 1.421413741, -1.453152027, 1.061405429
    p = 0.3275911
    z = x * 0.7071067811865476
    sgn = jnp.where(z < 0.0, -1.0, 1.0)
    az = jnp.abs(z)
    t = pl.reciprocal(1.0 + p * az, approx=True)
    poly = ((((a5 * t + a4) * t + a3) * t + a2) * t + a1) * t
    erf = sgn * (1.0 - poly * jnp.exp(-az * az))
    return 0.5 * x * (1.0 + erf)


# ------------------------------------------------------------------ kernel

def _make_kernel(H, W, C, C2, K, b_tile, eps, has_skip, has_mod, use_tanh_gelu):
    HW = H * W
    L = b_tile * HW
    P = K // 2
    inv_c = 1.0 / C
    gelu = _gelu_tanh if use_tanh_gelu else _gelu_erf

    def kernel(*refs):
        it = iter(refs)
        x_ref = next(it)                           # (C, L)   f32
        skip_ref = next(it) if has_skip else None  # (Cs, L)  f32
        invn_ref = next(it)                        # (1, L)   f32  (1 / norm)
        mod_ref = next(it) if has_mod else None    # (C, 4*b_tile) f32
        wx_ref = next(it) if has_skip else None    # (C, C)   bf16
        ws_ref = next(it) if has_skip else None    # (C, Cs)  bf16
        cw_ref = next(it)                          # (C, K*K) f32
        vx_ref = next(it)                          # (K, L)   f32  column mask
        vy_ref = next(it)                          # (K, L)   f32  row mask
        w1_ref = next(it)                          # (C2, C)  bf16
        w2_ref = next(it)                          # (C, C2)  bf16
        bias_ref = next(it)                        # (R, 2)   f32  packed biases
        o_ref = next(it)                           # (C, L)

        biases = bias_ref[...]
        b_skip = biases[0:C, 0:1]
        b_mlp1 = biases[0:C2, 1:2]
        b_mlp2 = biases[C:2 * C, 0:1]
        invn = invn_ref[...]

        # skip_linear(cat(x, skip)) as two bf16 MXU matmuls (no concat copy).
        if has_skip:
            x0 = (jnp.dot(wx_ref[...], x_ref[...].astype(jnp.bfloat16),
                          preferred_element_type=jnp.float32)
                  + jnp.dot(ws_ref[...], skip_ref[...].astype(jnp.bfloat16),
                            preferred_element_type=jnp.float32)
                  + b_skip)
        else:
            x0 = x_ref[...]

        # Per-batch modulation affines (LayerNorm gamma/beta already folded in),
        # expanded once to lane-dense (C, L) when b_tile > 1.
        if has_mod:
            modv = mod_ref[...]

            def mcol(k):
                if b_tile == 1:
                    return modv[:, k:k + 1]
                parts = [jnp.broadcast_to(modv[:, bb * 4 + k:bb * 4 + k + 1], (C, HW))
                         for bb in range(b_tile)]
                return jnp.concatenate(parts, axis=1)

            A1, B1, A2, B2 = mcol(0), mcol(1), mcol(2), mcol(3)

        def ln_mod(v, a_col, b_col):
            # LayerNorm over channels (sublane axis), then the folded affine.
            mu = jnp.sum(v, axis=0, keepdims=True) * inv_c
            xc = v - mu
            var = jnp.sum(xc * xc, axis=0, keepdims=True) * inv_c
            return xc * lax.rsqrt(var + eps) * a_col + b_col

        # NOTE: matching the PyTorch module, norm1/norm2 only run inside modulate(),
        # i.e. only when t or z is supplied.
        h = ln_mod(x0, A1, B1) if has_mod else x0

        # Depthwise KxK conv, zero padding = K//2, factored into dx-rolls + dy-rolls:
        #   - K-1 lane rolls build the dx-shifted, column-masked copies of h
        #     (reused by every dy); K-1 rolls place the per-dy partial sums.
        #   - vx is applied before the dy roll (preserved by it: dy shifts are
        #     multiples of W), vy at the output position after it, so circular
        #     wrap-around (incl. across the batch images stacked along lanes)
        #     never leaks into valid outputs.
        cw = cw_ref[...]
        vxs = vx_ref[...]
        vys = vy_ref[...]

        h_dx = []
        for dx in range(K):
            s = dx - P
            if s == 0:
                h_dx.append(h)                      # centre column: mask is all-ones
            else:
                h_dx.append(pltpu.roll(h, (-s) % L, 1) * vxs[dx:dx + 1, :])

        def row_partial(dy):
            p = h_dx[0] * cw[:, dy * K:dy * K + 1]
            for dx in range(1, K):
                j = dy * K + dx
                p = p + h_dx[dx] * cw[:, j:j + 1]
            return p

        acc = row_partial(P)                        # centre row: no roll, vy == 1
        for dy in range(K):
            if dy == P:
                continue
            s = (dy - P) * W
            acc = acc + pltpu.roll(row_partial(dy), (-s) % L, 1) * vys[dy:dy + 1, :]

        x1 = x0 + acc * invn                        # x = x + conv(h) / norm

        h2 = ln_mod(x1, A2, B2) if has_mod else x1

        # MLP: Linear(C, C*mult) -> GELU -> Linear(C*mult, C), residual add.
        m = jnp.dot(w1_ref[...], h2.astype(jnp.bfloat16),
                    preferred_element_type=jnp.float32) + b_mlp1
        m = gelu(m)
        m = jnp.dot(w2_ref[...], m.astype(jnp.bfloat16),
                    preferred_element_type=jnp.float32) + b_mlp2

        o_ref[...] = (x1 + m).astype(o_ref.dtype)

    return kernel


# ------------------------------------------------------------------ glue

def _mod_affine(params, t, z, which, C, B):
    """Fold time/z modulation into a single (A, B): feats -> feats * A + B."""
    scale_t = shift_t = None
    if t is not None:
        th = jax.nn.gelu(t.astype(jnp.float32), approximate=False)
        out = th @ params[f'time{which}_w'] + params[f'time{which}_b']   # (B, 2C)
        scale_t, shift_t = out[:, :C], out[:, C:]
    scale_z = None
    if z is not None:
        zh = jax.nn.gelu(z.astype(jnp.float32) @ params[f'z{which}_w1']
                         + params[f'z{which}_b1'], approximate=False)
        scale_z = zh @ params[f'z{which}_w2'] + params[f'z{which}_b2']   # (B, C)
    zf = 1.0 if scale_z is None else (1.0 + scale_z)
    if scale_t is not None:
        A = (1.0 + scale_t) * zf
        Bv = shift_t * zf
    else:
        A = jnp.ones((B, C), jnp.float32) * zf
        Bv = jnp.zeros((B, C), jnp.float32)
    return jnp.broadcast_to(A, (B, C)), jnp.broadcast_to(Bv, (B, C))


def _pick_b_tile(batch, max_tile=4):
    # Largest divisor of batch that keeps >= 2 grid steps when batch >= 2
    # (so both v7x TensorCores get work) and does not exceed max_tile.
    cap = max(1, min(max_tile, batch // 2)) if batch >= 2 else 1
    for t in range(cap, 0, -1):
        if batch % t == 0:
            return t
    return 1


def _stack_lanes(a, nblk, b_tile):
    """(B, D, M) -> (nblk, D, b_tile*M): batch stacked along the lane axis."""
    _, D, M = a.shape
    return (a.reshape(nblk, b_tile, D, M).transpose(0, 2, 1, 3)
             .reshape(nblk, D, b_tile * M))


def sparse_conv_res_block_forward(params, x, norm, t=None, skip=None, z=None,
                                  kernel_size=7, eps=1e-5, max_batch_tile=4,
                                  use_tanh_gelu=True):
    """Equivalent of SparseConvResBlock(...).forward(x_dense, t, skip, z, norm),
    i.e. TorchsparseResBlock.dense_forward.  x, skip, norm are NCHW."""
    B, C, H, W = x.shape
    K = kernel_size
    P = K // 2
    HW = H * W
    f32 = jnp.float32
    has_skip = skip is not None
    has_mod = (t is not None) or (z is not None)
    C2 = params['mlp_w1'].shape[1]      # C * mult
    Cs = skip.shape[1] if has_skip else 0

    b_tile = _pick_b_tile(B, max_batch_tile)
    nblk = B // b_tile
    L = b_tile * HW

    # TODO(synk): if the surrounding network runs bf16, accept bf16 x/skip and emit
    # bf16 output to halve activation DMA; kept f32 here to match the f32 reference.
    xs = _stack_lanes(x.astype(f32).reshape(B, C, HW), nblk, b_tile)         # (nblk, C, L)
    invn = _stack_lanes(
        jnp.broadcast_to(1.0 / norm.astype(f32), (B, 1, H, W)).reshape(B, 1, HW),
        nblk, b_tile)                                                        # (nblk, 1, L)

    inputs = [xs]
    in_specs = [pl.BlockSpec((None, C, L), lambda b: (b, 0, 0))]
    if has_skip:
        ss = _stack_lanes(skip.astype(f32).reshape(B, Cs, HW), nblk, b_tile)
        inputs.append(ss)
        in_specs.append(pl.BlockSpec((None, Cs, L), lambda b: (b, 0, 0)))
    inputs.append(invn)
    in_specs.append(pl.BlockSpec((None, 1, L), lambda b: (b, 0, 0)))

    if has_mod:
        A1, B1v = _mod_affine(params, t, z, 1, C, B)
        A2, B2v = _mod_affine(params, t, z, 2, C, B)
        A1p = A1 * params['ln1_g']
        B1p = A1 * params['ln1_b'] + B1v
        A2p = A2 * params['ln2_g']
        B2p = A2 * params['ln2_b'] + B2v
        modp = jnp.stack([A1p, B1p, A2p, B2p], axis=-1)          # (B, C, 4)
        modp = _stack_lanes(modp, nblk, b_tile)                  # (nblk, C, 4*b_tile)
        inputs.append(modp)
        in_specs.append(pl.BlockSpec((None, C, 4 * b_tile), lambda b: (b, 0, 0)))

    def add_const(arr):
        inputs.append(arr)
        nd = arr.ndim
        in_specs.append(pl.BlockSpec(arr.shape, lambda b, nd=nd: (0,) * nd))

    if has_skip:
        skw = params['skip_w']                                   # (C + Cs, C)
        add_const(skw[:C, :].T.astype(jnp.bfloat16))             # (C, C)
        add_const(skw[C:, :].T.astype(jnp.bfloat16))             # (C, Cs)

    # Tiny depthwise weights (C, K*K); boundary mask factored into vx/vy (K, L)
    # instead of the old (K*K, C, H*W) pre-masked tensor.
    cw = jnp.transpose(params['conv_w'].astype(f32).reshape(K * K, C))      # (C, K*K)
    add_const(cw)

    off = jnp.arange(K) - P
    yy = jnp.arange(H)
    xx = jnp.arange(W)
    vy = (((yy[None, :] + off[:, None]) >= 0) &
          ((yy[None, :] + off[:, None]) < H)).astype(f32)        # (K, H)
    vx = (((xx[None, :] + off[:, None]) >= 0) &
          ((xx[None, :] + off[:, None]) < W)).astype(f32)        # (K, W)
    vy_l = jnp.tile(jnp.repeat(vy, W, axis=1), (1, b_tile))      # (K, L) row mask
    vx_l = jnp.tile(jnp.tile(vx, (1, H)), (1, b_tile))           # (K, L) column mask
    add_const(vx_l)
    add_const(vy_l)

    add_const(params['mlp_w1'].T.astype(jnp.bfloat16))           # (C2, C)
    add_const(params['mlp_w2'].T.astype(jnp.bfloat16))           # (C, C2)

    # Pack the tiny per-channel biases into a single (R, 2) input.
    R = max(2 * C, C2)
    b_skip = params['skip_b'].reshape(-1) if has_skip else jnp.zeros((C,), f32)
    col0 = jnp.concatenate([b_skip, params['mlp_b2'].reshape(-1),
                            jnp.zeros((R - 2 * C,), f32)])
    col1 = jnp.concatenate([params['mlp_b1'].reshape(-1),
                            jnp.zeros((R - C2,), f32)])
    add_const(jnp.stack([col0, col1], axis=-1).astype(f32))      # (R, 2)

    kernel = _make_kernel(H, W, C, C2, K, b_tile, eps, has_skip, has_mod,
                          use_tanh_gelu)

    # Advisory cost estimate so XLA can overlap the wrapper-side modulation
    # matmuls / weight prep with the custom call.
    flops = 2 * B * HW * C * (K * K) + 2 * B * HW * C * C2 * 2
    if has_skip:
        flops += 2 * B * HW * C * (C + Cs)
    flops += 16 * B * HW * C
    transcendentals = B * HW * (C2 + 4)

    def nbytes(a):
        return int(a.size) * a.dtype.itemsize

    bytes_accessed = sum(nbytes(a) for a in inputs) + B * C * HW * 4
    cost = pl.CostEstimate(flops=int(flops), transcendentals=int(transcendentals),
                           bytes_accessed=int(bytes_accessed))

    # VMEM budget derived from the actual per-step block sizes (double-buffered),
    # floor 32 MiB, cap 64 MiB (valid on v5e/v6e/v7x alike).
    per_step = C * L * 4                     # output block
    for a in inputs:
        if a.ndim == 3 and a.shape[0] == nblk:
            per_step += nbytes(a) // nblk
        else:
            per_step += nbytes(a)
    vmem_limit = int(min(64 * 2 ** 20, max(32 * 2 ** 20, 6 * per_step)))

    out = pl.pallas_call(
        kernel,
        out_shape=jax.ShapeDtypeStruct((nblk, C, L), f32),
        grid=(nblk,),
        in_specs=in_specs,
        out_specs=pl.BlockSpec((None, C, L), lambda b: (b, 0, 0)),
        compiler_params=pltpu.CompilerParams(
            dimension_semantics=("parallel",),
            vmem_limit_bytes=vmem_limit),
        cost_estimate=cost,
    )(*inputs)

    out = (out.reshape(nblk, C, b_tile, HW).transpose(0, 2, 1, 3)
              .reshape(B, C, H, W))
    return out


# ------------------------------------------------------------------ params

def init_params(key, C, K, mult, skip_dim=None, time_emb_dim=None, z_dim=None):
    keys = iter(jax.random.split(key, 32))

    def linear(k, fan_in, fan_out):
        bound = 1.0 / math.sqrt(fan_in)
        k1, k2 = jax.random.split(k)
        w = jax.random.uniform(k1, (fan_in, fan_out), jnp.float32, -bound, bound)
        b = jax.random.uniform(k2, (1, fan_out), jnp.float32, -bound, bound)
        return w, b

    p = {}
    if skip_dim is not None:
        p['skip_w'], p['skip_b'] = linear(next(keys), C + skip_dim, C)
    p['ln1_g'] = jnp.ones((1, C), jnp.float32); p['ln1_b'] = jnp.zeros((1, C), jnp.float32)
    p['ln2_g'] = jnp.ones((1, C), jnp.float32); p['ln2_b'] = jnp.zeros((1, C), jnp.float32)
    # _custom_kaiming_uniform_: fan = embed_dim * K^2, gain = leaky_relu gain(a=sqrt(5))
    fan = C * K * K
    gain = math.sqrt(2.0 / (1.0 + 5.0))
    bound = math.sqrt(3.0) * gain / math.sqrt(fan)
    p['conv_w'] = jax.random.uniform(next(keys), (K, K, C), jnp.float32, -bound, bound)
    p['mlp_w1'], p['mlp_b1'] = linear(next(keys), C, C * mult)
    p['mlp_w2'], p['mlp_b2'] = linear(next(keys), C * mult, C)
    if time_emb_dim is not None:
        w, b = linear(next(keys), time_emb_dim, 2 * C); p['time1_w'], p['time1_b'] = w, b.reshape(-1)
        w, b = linear(next(keys), time_emb_dim, 2 * C); p['time2_w'], p['time2_b'] = w, b.reshape(-1)
    if z_dim is not None:
        w, b = linear(next(keys), z_dim, C); p['z1_w1'], p['z1_b1'] = w, b.reshape(-1)
        w, b = linear(next(keys), C, C);     p['z1_w2'], p['z1_b2'] = w, b.reshape(-1)
        w, b = linear(next(keys), z_dim, C); p['z2_w1'], p['z2_b1'] = w, b.reshape(-1)
        w, b = linear(next(keys), C, C);     p['z2_w2'], p['z2_b2'] = w, b.reshape(-1)
    return p


# ------------------------------------------------------------------ pure-JAX reference (unfused, f32)

def reference_forward(params, x, norm, t=None, skip=None, z=None, kernel_size=7, eps=1e-5):
    B, C, H, W = x.shape
    K = kernel_size; P = K // 2
    xf = jnp.transpose(x, (0, 2, 3, 1)).reshape(B, H * W, C).astype(jnp.float32)
    if skip is not None:
        sf = jnp.transpose(skip, (0, 2, 3, 1)).reshape(B, H * W, -1).astype(jnp.float32)
        xf = jnp.concatenate([xf, sf], axis=-1) @ params['skip_w'] + params['skip_b']
    has_mod = (t is not None) or (z is not None)

    def ln(v, g, b):
        mu = jnp.mean(v, -1, keepdims=True)
        var = jnp.mean((v - mu) ** 2, -1, keepdims=True)
        return (v - mu) / jnp.sqrt(var + eps) * g + b

    if has_mod:
        A1, B1 = _mod_affine(params, t, z, 1, C, B)
        A2, B2 = _mod_affine(params, t, z, 2, C, B)
        h = ln(xf, params['ln1_g'], params['ln1_b']) * A1[:, None, :] + B1[:, None, :]
    else:
        h = xf
    hs = h.reshape(B, H, W, C)
    hp = jnp.pad(hs, ((0, 0), (P, P), (P, P), (0, 0)))
    acc = jnp.zeros((B, H, W, C), jnp.float32)
    for dy in range(K):
        for dx in range(K):
            acc = acc + hp[:, dy:dy + H, dx:dx + W, :] * params['conv_w'][dy, dx, :]
    nrm = jnp.transpose(jnp.broadcast_to(norm.astype(jnp.float32), (B, 1, H, W)), (0, 2, 3, 1))
    x1 = xf + (acc / nrm).reshape(B, H * W, C)
    if has_mod:
        h2 = ln(x1, params['ln2_g'], params['ln2_b']) * A2[:, None, :] + B2[:, None, :]
    else:
        h2 = x1
    m = jax.nn.gelu(h2 @ params['mlp_w1'] + params['mlp_b1'], approximate=False)
    m = m @ params['mlp_w2'] + params['mlp_b2']
    out = x1 + m
    return jnp.transpose(out.reshape(B, H, W, C), (0, 3, 1, 2))


# ------------------------------------------------------------------ main

if __name__ == "__main__":
    C, H, W = 32, 16, 16
    K, MULT, SKIP_DIM, T_DIM = 7, 2, 16, 24

    key = jax.random.PRNGKey(0)
    kx, ks, kt, kn, kp = jax.random.split(key, 5)
    params = init_params(kp, C, K, MULT, skip_dim=SKIP_DIM, time_emb_dim=T_DIM, z_dim=None)

    def run_case(B):
        k1 = jax.random.fold_in(kx, B)
        k2 = jax.random.fold_in(ks, B)
        k3 = jax.random.fold_in(kt, B)
        k4 = jax.random.fold_in(kn, B)
        x = jax.random.normal(k1, (B, C, H, W), jnp.float32)
        skip = jax.random.normal(k2, (B, SKIP_DIM, H, W), jnp.float32)
        t = jax.random.normal(k3, (B, T_DIM), jnp.float32)
        norm = 1.0 + jax.random.uniform(k4, (B, 1, H, W), jnp.float32)  # positive divisor

        out = sparse_conv_res_block_forward(params, x, norm, t=t, skip=skip, z=None,
                                            kernel_size=K)
        out = jax.block_until_ready(out)
        ref = reference_forward(params, x, norm, t=t, skip=skip, z=None, kernel_size=K)
        assert out.shape == (B, C, H, W)
        # bf16 MXU operands + tanh-GELU vs exact-erf f32 reference: relaxed tolerance.
        np.testing.assert_allclose(np.asarray(out), np.asarray(ref),
                                   rtol=2e-2, atol=4e-2)

    run_case(2)   # b_tile = 1, grid = 2
    run_case(4)   # b_tile = 2, grid = 2 (batch-tiled lane-stacking path)
    print("KERNEL_OK")
</pallas_src>

<mosaic_0001>
module attributes {stable_mosaic.version = 11 : i64} {
  func.func @kernel(%arg0: i32, %arg1: memref<1x32x256xf32, #tpu.memory_space<vmem>>, %arg2: memref<1x16x256xf32, #tpu.memory_space<vmem>>, %arg3: memref<1x1x256xf32, #tpu.memory_space<vmem>>, %arg4: memref<1x32x4xf32, #tpu.memory_space<vmem>>, %arg5: memref<32x32xbf16, #tpu.memory_space<vmem>>, %arg6: memref<32x16xbf16, #tpu.memory_space<vmem>>, %arg7: memref<32x49xf32, #tpu.memory_space<vmem>>, %arg8: memref<7x256xf32, #tpu.memory_space<vmem>>, %arg9: memref<7x256xf32, #tpu.memory_space<vmem>>, %arg10: memref<64x32xbf16, #tpu.memory_space<vmem>>, %arg11: memref<32x64xbf16, #tpu.memory_space<vmem>>, %arg12: memref<64x2xf32, #tpu.memory_space<vmem>>, %arg13: memref<1x32x256xf32, #tpu.memory_space<vmem>>) attributes {dimension_semantics = [#tpu.dimension_semantics<parallel>], iteration_bounds = array<i64: 2>, scalar_prefetch = 0 : i64, scratch_operands = 0 : i64, tpu.core_type = #tpu.core_type<tc>, window_params = [{transform_indices = @transform_0, window_bounds = array<i64: 1, 32, 256>}, {transform_indices = @transform_1, window_bounds = array<i64: 1, 16, 256>}, {transform_indices = @transform_2, window_bounds = array<i64: 1, 1, 256>}, {transform_indices = @transform_3, window_bounds = array<i64: 1, 32, 4>}, {pipeline_mode = #tpu.pipeline_mode<synchronous>, transform_indices = @transform_4, window_bounds = array<i64: 32, 32>}, {pipeline_mode = #tpu.pipeline_mode<synchronous>, transform_indices = @transform_5, window_bounds = array<i64: 32, 16>}, {pipeline_mode = #tpu.pipeline_mode<synchronous>, transform_indices = @transform_6, window_bounds = array<i64: 32, 49>}, {pipeline_mode = #tpu.pipeline_mode<synchronous>, transform_indices = @transform_7, window_bounds = array<i64: 7, 256>}, {pipeline_mode = #tpu.pipeline_mode<synchronous>, transform_indices = @transform_8, window_bounds = array<i64: 7, 256>}, {pipeline_mode = #tpu.pipeline_mode<synchronous>, transform_indices = @transform_9, window_bounds = array<i64: 64, 32>}, {pipeline_mode = #tpu.pipeline_mode<synchronous>, transform_indices = @transform_10, window_bounds = array<i64: 32, 64>}, {pipeline_mode = #tpu.pipeline_mode<synchronous>, transform_indices = @transform_11, window_bounds = array<i64: 64, 2>}, {transform_indices = @transform_12, window_bounds = array<i64: 1, 32, 256>}]} {
    %c0 = arith.constant 0 : index
    %c0_0 = arith.constant 0 : index
    %0 = vector.load %arg12[%c0, %c0_0] : memref<64x2xf32, #tpu.memory_space<vmem>>, vector<64x2xf32>
    %1 = vector.extract_strided_slice %0 {offsets = [0, 0], sizes = [32, 1], strides = [1, 1]} : vector<64x2xf32> to vector<32x1xf32>
    %2 = vector.extract_strided_slice %0 {offsets = [0, 1], sizes = [64, 1], strides = [1, 1]} : vector<64x2xf32> to vector<64x1xf32>
    %3 = vector.extract_strided_slice %0 {offsets = [32, 0], sizes = [32, 1], strides = [1, 1]} : vector<64x2xf32> to vector<32x1xf32>
    %c0_1 = arith.constant 0 : index
    %c0_2 = arith.constant 0 : index
    %c0_3 = arith.constant 0 : index
    %4 = vector.load %arg3[%c0_1, %c0_2, %c0_3] : memref<1x1x256xf32, #tpu.memory_space<vmem>>, vector<1x1x256xf32>
    %5 = vector.shape_cast %4 : vector<1x1x256xf32> to vector<1x256xf32>
    %c0_4 = arith.constant 0 : index
    %c0_5 = arith.constant 0 : index
    %6 = vector.load %arg5[%c0_4, %c0_5] : memref<32x32xbf16, #tpu.memory_space<vmem>>, vector<32x32xbf16>
    %c0_6 = arith.constant 0 : index
    %c0_7 = arith.constant 0 : index
    %c0_8 = arith.constant 0 : index
    %7 = vector.load %arg1[%c0_6, %c0_7, %c0_8] : memref<1x32x256xf32, #tpu.memory_space<vmem>>, vector<1x32x256xf32>
    %8 = vector.shape_cast %7 : vector<1x32x256xf32> to vector<32x256xf32>
    %9 = arith.truncf %8 : vector<32x256xf32> to vector<32x256xbf16>
    %cst = arith.constant dense<0.000000e+00> : vector<32x256xf32>
    %10 = tpu.matmul %6, %9, %cst {dimension_numbers = #tpu.dot_dimension_numbers<[1], [0], [0], [1], [0, 0, 1, 1], [], []>} : vector<32x32xbf16>, vector<32x256xbf16>, vector<32x256xf32> -> vector<32x256xf32>
    %c0_9 = arith.constant 0 : index
    %c0_10 = arith.constant 0 : index
    %11 = vector.load %arg6[%c0_9, %c0_10] : memref<32x16xbf16, #tpu.memory_space<vmem>>, vector<32x16xbf16>
    %c0_11 = arith.constant 0 : index
    %c0_12 = arith.constant 0 : index
    %c0_13 = arith.constant 0 : index
    %12 = vector.load %arg2[%c0_11, %c0_12, %c0_13] : memref<1x16x256xf32, #tpu.memory_space<vmem>>, vector<1x16x256xf32>
    %13 = vector.shape_cast %12 : vector<1x16x256xf32> to vector<16x256xf32>
    %14 = arith.truncf %13 : vector<16x256xf32> to vector<16x256xbf16>
    %cst_14 = arith.constant dense<0.000000e+00> : vector<32x256xf32>
    %15 = tpu.matmul %11, %14, %cst_14 {dimension_numbers = #tpu.dot_dimension_numbers<[1], [0], [0], [1], [0, 0, 1, 1], [], []>} : vector<32x16xbf16>, vector<16x256xbf16>, vector<32x256xf32> -> vector<32x256xf32>
    %16 = arith.addf %10, %15 : vector<32x256xf32>
    %17 = vector.broadcast %1 : vector<32x1xf32> to vector<32x256xf32>
    %18 = arith.addf %16, %17 : vector<32x256xf32>
    %c0_15 = arith.constant 0 : index
    %c0_16 = arith.constant 0 : index
    %c0_17 = arith.constant 0 : index
    %19 = vector.load %arg4[%c0_15, %c0_16, %c0_17] : memref<1x32x4xf32, #tpu.memory_space<vmem>>, vector<1x32x4xf32>
    %20 = vector.shape_cast %19 : vector<1x32x4xf32> to vector<32x4xf32>
    %21 = vector.extract_strided_slice %20 {offsets = [0, 0], sizes = [32, 1], strides = [1, 1]} : vector<32x4xf32> to vector<32x1xf32>
    %22 = vector.extract_strided_slice %20 {offsets = [0, 1], sizes = [32, 1], strides = [1, 1]} : vector<32x4xf32> to vector<32x1xf32>
    %23 = vector.extract_strided_slice %20 {offsets = [0, 2], sizes = [32, 1], strides = [1, 1]} : vector<32x4xf32> to vector<32x1xf32>
    %24 = vector.extract_strided_slice %20 {offsets = [0, 3], sizes = [32, 1], strides = [1, 1]} : vector<32x4xf32> to vector<32x1xf32>
    %cst_18 = arith.constant dense<0.000000e+00> : vector<256xf32>
    %25 = vector.multi_reduction <add>, %18, %cst_18 [0] : vector<32x256xf32> to vector<256xf32>
    %26 = vector.shape_cast %25 : vector<256xf32> to vector<1x256xf32>
    %cst_19 = arith.constant 3.125000e-02 : f32
    %27 = vector.broadcast %cst_19 : f32 to vector<1x256xf32>
    %28 = arith.mulf %26, %27 : vector<1x256xf32>
    %29 = vector.broadcast %28 : vector<1x256xf32> to vector<32x256xf32>
    %30 = arith.subf %18, %29 : vector<32x256xf32>
    %31 = arith.mulf %30, %30 : vector<32x256xf32>
    %cst_20 = arith.constant dense<0.000000e+00> : vector<256xf32>
    %32 = vector.multi_reduction <add>, %31, %cst_20 [0] : vector<32x256xf32> to vector<256xf32>
    %33 = vector.shape_cast %32 : vector<256xf32> to vector<1x256xf32>
    %cst_21 = arith.constant 3.125000e-02 : f32
    %34 = vector.broadcast %cst_21 : f32 to vector<1x256xf32>
    %35 = arith.mulf %33, %34 : vector<1x256xf32>
    %cst_22 = arith.constant 9.99999974E-6 : f32
    %36 = vector.broadcast %cst_22 : f32 to vector<1x256xf32>
    %37 = arith.addf %35, %36 : vector<1x256xf32>
    %38 = math.rsqrt %37 : vector<1x256xf32>
    %39 = vector.broadcast %38 : vector<1x256xf32> to vector<32x256xf32>
    %40 = arith.mulf %30, %39 : vector<32x256xf32>
    %41 = vector.broadcast %21 : vector<32x1xf32> to vector<32x256xf32>
    %42 = arith.mulf %40, %41 : vector<32x256xf32>
    %43 = vector.broadcast %22 : vector<32x1xf32> to vector<32x256xf32>
    %44 = arith.addf %42, %43 : vector<32x256xf32>
    %c0_23 = arith.constant 0 : index
    %c0_24 = arith.constant 0 : index
    %45 = vector.load %arg7[%c0_23, %c0_24] : memref<32x49xf32, #tpu.memory_space<vmem>>, vector<32x49xf32>
    %c0_25 = arith.constant 0 : index
    %c0_26 = arith.constant 0 : index
    %46 = vector.load %arg8[%c0_25, %c0_26] : memref<7x256xf32, #tpu.memory_space<vmem>>, vector<7x256xf32>
    %c0_27 = arith.constant 0 : index
    %c0_28 = arith.constant 0 : index
    %47 = vector.load %arg9[%c0_27, %c0_28] : memref<7x256xf32, #tpu.memory_space<vmem>>, vector<7x256xf32>
    %c3_i32 = arith.constant 3 : i32
    %48 = tpu.dynamic_rotate %44 by %c3_i32 dim 1 : vector<32x256xf32>, i32 -> vector<32x256xf32>
    %49 = vector.extract_strided_slice %46 {offsets = [0, 0], sizes = [1, 256], strides = [1, 1]} : vector<7x256xf32> to vector<1x256xf32>
    %50 = vector.broadcast %49 : vector<1x256xf32> to vector<32x256xf32>
    %51 = arith.mulf %48, %50 : vector<32x256xf32>
    %c2_i32 = arith.constant 2 : i32
    %52 = tpu.dynamic_rotate %44 by %c2_i32 dim 1 : vector<32x256xf32>, i32 -> vector<32x256xf32>
    %53 = vector.extract_strided_slice %46 {offsets = [1, 0], sizes = [1, 256], strides = [1, 1]} : vector<7x256xf32> to vector<1x256xf32>
    %54 = vector.broadcast %53 : vector<1x256xf32> to vector<32x256xf32>
    %55 = arith.mulf %52, %54 : vector<32x256xf32>
    %c1_i32 = arith.constant 1 : i32
    %56 = tpu.dynamic_rotate %44 by %c1_i32 dim 1 : vector<32x256xf32>, i32 -> vector<32x256xf32>
    %57 = vector.extract_strided_slice %46 {offsets = [2, 0], sizes = [1, 256], strides = [1, 1]} : vector<7x256xf32> to vector<1x256xf32>
    %58 = vector.broadcast %57 : vector<1x256xf32> to vector<32x256xf32>
    %59 = arith.mulf %56, %58 : vector<32x256xf32>
    %c255_i32 = arith.constant 255 : i32
    %60 = tpu.dynamic_rotate %44 by %c255_i32 dim 1 : vector<32x256xf32>, i32 -> vector<32x256xf32>
    %61 = vector.extract_strided_slice %46 {offsets = [4, 0], sizes = [1, 256], strides = [1, 1]} : vector<7x256xf32> to vector<1x256xf32>
    %62 = vector.broadcast %61 : vector<1x256xf32> to vector<32x256xf32>
    %63 = arith.mulf %60, %62 : vector<32x256xf32>
    %c254_i32 = arith.constant 254 : i32
    %64 = tpu.dynamic_rotate %44 by %c254_i32 dim 1 : vector<32x256xf32>, i32 -> vector<32x256xf32>
    %65 = vector.extract_strided_slice %46 {offsets = [5, 0], sizes = [1, 256], strides = [1, 1]} : vector<7x256xf32> to vector<1x256xf32>
    %66 = vector.broadcast %65 : vector<1x256xf32> to vector<32x256xf32>
    %67 = arith.mulf %64, %66 : vector<32x256xf32>
    %c253_i32 = arith.constant 253 : i32
    %68 = tpu.dynamic_rotate %44 by %c253_i32 dim 1 : vector<32x256xf32>, i32 -> vector<32x256xf32>
    %69 = vector.extract_strided_slice %46 {offsets = [6, 0], sizes = [1, 256], strides = [1, 1]} : vector<7x256xf32> to vector<1x256xf32>
    %70 = vector.broadcast %69 : vector<1x256xf32> to vector<32x256xf32>
    %71 = arith.mulf %68, %70 : vector<32x256xf32>
    %72 = vector.extract_strided_slice %45 {offsets = [0, 21], sizes = [32, 1], strides = [1, 1]} : vector<32x49xf32> to vector<32x1xf32>
    %73 = vector.broadcast %72 : vector<32x1xf32> to vector<32x256xf32>
    %74 = arith.mulf %51, %73 : vector<32x256xf32>
    %75 = vector.extract_strided_slice %45 {offsets = [0, 22], sizes = [32, 1], strides = [1, 1]} : vector<32x49xf32> to vector<32x1xf32>
    %76 = vector.broadcast %75 : vector<32x1xf32> to vector<32x256xf32>
    %77 = arith.mulf %55, %76 : vector<32x256xf32>
    %78 = arith.addf %74, %77 : vector<32x256xf32>
    %79 = vector.extract_strided_slice %45 {offsets = [0, 23], sizes = [32, 1], strides = [1, 1]} : vector<32x49xf32> to vector<32x1xf32>
    %80 = vector.broadcast %79 : vector<32x1xf32> to vector<32x256xf32>
    %81 = arith.mulf %59, %80 : vector<32x256xf32>
    %82 = arith.addf %78, %81 : vector<32x256xf32>
    %83 = vector.extract_strided_slice %45 {offsets = [0, 24], sizes = [32, 1], strides = [1, 1]} : vector<32x49xf32> to vector<32x1xf32>
    %84 = vector.broadcast %83 : vector<32x1xf32> to vector<32x256xf32>
    %85 = arith.mulf %44, %84 : vector<32x256xf32>
    %86 = arith.addf %82, %85 : vector<32x256xf32>
    %87 = vector.extract_strided_slice %45 {offsets = [0, 25], sizes = [32, 1], strides = [1, 1]} : vector<32x49xf32> to vector<32x1xf32>
    %88 = vector.broadcast %87 : vector<32x1xf32> to vector<32x256xf32>
    %89 = arith.mulf %63, %88 : vector<32x256xf32>
    %90 = arith.addf %86, %89 : vector<32x256xf32>
    %91 = vector.extract_strided_slice %45 {offsets = [0, 26], sizes = [32, 1], strides = [1, 1]} : vector<32x49xf32> to vector<32x1xf32>
    %92 = vector.broadcast %91 : vector<32x1xf32> to vector<32x256xf32>
    %93 = arith.mulf %67, %92 : vector<32x256xf32>
    %94 = arith.addf %90, %93 : vector<32x256xf32>
    %95 = vector.extract_strided_slice %45 {offsets = [0, 27], sizes = [32, 1], strides = [1, 1]} : vector<32x49xf32> to vector<32x1xf32>
    %96 = vector.broadcast %95 : vector<32x1xf32> to vector<32x256xf32>
    %97 = arith.mulf %71, %96 : vector<32x256xf32>
    %98 = arith.addf %94, %97 : vector<32x256xf32>
    %99 = vector.extract_strided_slice %45 {offsets = [0, 0], sizes = [32, 1], strides = [1, 1]} : vector<32x49xf32> to vector<32x1xf32>
    %100 = vector.broadcast %99 : vector<32x1xf32> to vector<32x256xf32>
    %101 = arith.mulf %51, %100 : vector<32x256xf32>
    %102 = vector.extract_strided_slice %45 {offsets = [0, 1], sizes = [32, 1], strides = [1, 1]} : vector<32x49xf32> to vector<32x1xf32>
    %103 = vector.broadcast %102 : vector<32x1xf32> to vector<32x256xf32>
    %104 = arith.mulf %55, %103 : vector<32x256xf32>
    %105 = arith.addf %101, %104 : vector<32x256xf32>
    %106 = vector.extract_strided_slice %45 {offsets = [0, 2], sizes = [32, 1], strides = [1, 1]} : vector<32x49xf32> to vector<32x1xf32>
    %107 = vector.broadcast %106 : vector<32x1xf32> to vector<32x256xf32>
    %108 = arith.mulf %59, %107 : vector<32x256xf32>
    %109 = arith.addf %105, %108 : vector<32x256xf32>
    %110 = vector.extract_strided_slice %45 {offsets = [0, 3], sizes = [32, 1], strides = [1, 1]} : vector<32x49xf32> to vector<32x1xf32>
    %111 = vector.broadcast %110 : vector<32x1xf32> to vector<32x256xf32>
    %112 = arith.mulf %44, %111 : vector<32x256xf32>
    %113 = arith.addf %109, %112 : vector<32x256xf32>
    %114 = vector.extract_strided_slice %45 {offsets = [0, 4], sizes = [32, 1], strides = [1, 1]} : vector<32x49xf32> to vector<32x1xf32>
    %115 = vector.broadcast %114 : vector<32x1xf32> to vector<32x256xf32>
    %116 = arith.mulf %63, %115 : vector<32x256xf32>
    %117 = arith.addf %113, %116 : vector<32x256xf32>
    %118 = vector.extract_strided_slice %45 {offsets = [0, 5], sizes = [32, 1], strides = [1, 1]} : vector<32x49xf32> to vector<32x1xf32>
    %119 = vector.broadcast %118 : vector<32x1xf32> to vector<32x256xf32>
    %120 = arith.mulf %67, %119 : vector<32x256xf32>
    %121 = arith.addf %117, %120 : vector<32x256xf32>
    %122 = vector.extract_strided_slice %45 {offsets = [0, 6], sizes = [32, 1], strides = [1, 1]} : vector<32x49xf32> to vector<32x1xf32>
    %123 = vector.broadcast %122 : vector<32x1xf32> to vector<32x256xf32>
    %124 = arith.mulf %71, %123 : vector<32x256xf32>
    %125 = arith.addf %121, %124 : vector<32x256xf32>
    %c48_i32 = arith.constant 48 : i32
    %126 = tpu.dynamic_rotate %125 by %c48_i32 dim 1 : vector<32x256xf32>, i32 -> vector<32x256xf32>
    %127 = vector.extract_strided_slice %47 {offsets = [0, 0], sizes = [1, 256], strides = [1, 1]} : vector<7x256xf32> to vector<1x256xf32>
    %128 = vector.broadcast %127 : vector<1x256xf32> to vector<32x256xf32>
    %129 = arith.mulf %126, %128 : vector<32x256xf32>
    %130 = arith.addf %98, %129 : vector<32x256xf32>
    %131 = vector.extract_strided_slice %45 {offsets = [0, 7], sizes = [32, 1], strides = [1, 1]} : vector<32x49xf32> to vector<32x1xf32>
    %132 = vector.broadcast %131 : vector<32x1xf32> to vector<32x256xf32>
    %133 = arith.mulf %51, %132 : vector<32x256xf32>
    %134 = vector.extract_strided_slice %45 {offsets = [0, 8], sizes = [32, 1], strides = [1, 1]} : vector<32x49xf32> to vector<32x1xf32>
    %135 = vector.broadcast %134 : vector<32x1xf32> to vector<32x256xf32>
    %136 = arith.mulf %55, %135 : vector<32x256xf32>
    %137 = arith.addf %133, %136 : vector<32x256xf32>
    %138 = vector.extract_strided_slice %45 {offsets = [0, 9], sizes = [32, 1], strides = [1, 1]} : vector<32x49xf32> to vector<32x1xf32>
    %139 = vector.broadcast %138 : vector<32x1xf32> to vector<32x256xf32>
    %140 = arith.mulf %59, %139 : vector<32x256xf32>
    %141 = arith.addf %137, %140 : vector<32x256xf32>
    %142 = vector.extract_strided_slice %45 {offsets = [0, 10], sizes = [32, 1], strides = [1, 1]} : vector<32x49xf32> to vector<32x1xf32>
    %143 = vector.broadcast %142 : vector<32x1xf32> to vector<32x256xf32>
    %144 = arith.mulf %44, %143 : vector<32x256xf32>
    %145 = arith.addf %141, %144 : vector<32x256xf32>
    %146 = vector.extract_strided_slice %45 {offsets = [0, 11], sizes = [32, 1], strides = [1, 1]} : vector<32x49xf32> to vector<32x1xf32>
    %147 = vector.broadcast %146 : vector<32x1xf32> to vector<32x256xf32>
    %148 = arith.mulf %63, %147 : vector<32x256xf32>
    %149 = arith.addf %145, %148 : vector<32x256xf32>
    %150 = vector.extract_strided_slice %45 {offsets = [0, 12], sizes = [32, 1], strides = [1, 1]} : vector<32x49xf32> to vector<32x1xf32>
    %151 = vector.broadcast %150 : vector<32x1xf32> to vector<32x256xf32>
    %152 = arith.mulf %67, %151 : vector<32x256xf32>
    %153 = arith.addf %149, %152 : vector<32x256xf32>
    %154 = vector.extract_strided_slice %45 {offsets = [0, 13], sizes = [32, 1], strides = [1, 1]} : vector<32x49xf32> to vector<32x1xf32>
    %155 = vector.broadcast %154 : vector<32x1xf32> to vector<32x256xf32>
    %156 = arith.mulf %71, %155 : vector<32x256xf32>
    %157 = arith.addf %153, %156 : vector<32x256xf32>
    %c32_i32 = arith.constant 32 : i32
    %158 = tpu.dynamic_rotate %157 by %c32_i32 dim 1 : vector<32x256xf32>, i32 -> vector<32x256xf32>
    %159 = vector.extract_strided_slice %47 {offsets = [1, 0], sizes = [1, 256], strides = [1, 1]} : vector<7x256xf32> to vector<1x256xf32>
    %160 = vector.broadcast %159 : vector<1x256xf32> to vector<32x256xf32>
    %161 = arith.mulf %158, %160 : vector<32x256xf32>
    %162 = arith.addf %130, %161 : vector<32x256xf32>
    %163 = vector.extract_strided_slice %45 {offsets = [0, 14], sizes = [32, 1], strides = [1, 1]} : vector<32x49xf32> to vector<32x1xf32>
    %164 = vector.broadcast %163 : vector<32x1xf32> to vector<32x256xf32>
    %165 = arith.mulf %51, %164 : vector<32x256xf32>
    %166 = vector.extract_strided_slice %45 {offsets = [0, 15], sizes = [32, 1], strides = [1, 1]} : vector<32x49xf32> to vector<32x1xf32>
    %167 = vector.broadcast %166 : vector<32x1xf32> to vector<32x256xf32>
    %168 = arith.mulf %55, %167 : vector<32x256xf32>
    %169 = arith.addf %165, %168 : vector<32x256xf32>
    %170 = vector.extract_strided_slice %45 {offsets = [0, 16], sizes = [32, 1], strides = [1, 1]} : vector<32x49xf32> to vector<32x1xf32>
    %171 = vector.broadcast %170 : vector<32x1xf32> to vector<32x256xf32>
    %172 = arith.mulf %59, %171 : vector<32x256xf32>
    %173 = arith.addf %169, %172 : vector<32x256xf32>
    %174 = vector.extract_strided_slice %45 {offsets = [0, 17], sizes = [32, 1], strides = [1, 1]} : vector<32x49xf32> to vector<32x1xf32>
    %175 = vector.broadcast %174 : vector<32x1xf32> to vector<32x256xf32>
    %176 = arith.mulf %44, %175 : vector<32x256xf32>
    %177 = arith.addf %173, %176 : vector<32x256xf32>
    %178 = vector.extract_strided_slice %45 {offsets = [0, 18], sizes = [32, 1], strides = [1, 1]} : vector<32x49xf32> to vector<32x1xf32>
    %179 = vector.broadcast %178 : vector<32x1xf32> to vector<32x256xf32>
    %180 = arith.mulf %63, %179 : vector<32x256xf32>
    %181 = arith.addf %177, %180 : vector<32x256xf32>
    %182 = vector.extract_strided_slice %45 {offsets = [0, 19], sizes = [32, 1], strides = [1, 1]} : vector<32x49xf32> to vector<32x1xf32>
    %183 = vector.broadcast %182 : vector<32x1xf32> to vector<32x256xf32>
    %184 = arith.mulf %67, %183 : vector<32x256xf32>
    %185 = arith.addf %181, %184 : vector<32x256xf32>
    %186 = vector.extract_strided_slice %45 {offsets = [0, 20], sizes = [32, 1], strides = [1, 1]} : vector<32x49xf32> to vector<32x1xf32>
    %187 = vector.broadcast %186 : vector<32x1xf32> to vector<32x256xf32>
    %188 = arith.mulf %71, %187 : vector<32x256xf32>
    %189 = arith.addf %185, %188 : vector<32x256xf32>
    %c16_i32 = arith.constant 16 : i32
    %190 = tpu.dynamic_rotate %189 by %c16_i32 dim 1 : vector<32x256xf32>, i32 -> vector<32x256xf32>
    %191 = vector.extract_strided_slice %47 {offsets = [2, 0], sizes = [1, 256], strides = [1, 1]} : vector<7x256xf32> to vector<1x256xf32>
    %192 = vector.broadcast %191 : vector<1x256xf32> to vector<32x256xf32>
    %193 = arith.mulf %190, %192 : vector<32x256xf32>
    %194 = arith.addf %162, %193 : vector<32x256xf32>
    %195 = vector.extract_strided_slice %45 {offsets = [0, 28], sizes = [32, 1], strides = [1, 1]} : vector<32x49xf32> to vector<32x1xf32>
    %196 = vector.broadcast %195 : vector<32x1xf32> to vector<32x256xf32>
    %197 = arith.mulf %51, %196 : vector<32x256xf32>
    %198 = vector.extract_strided_slice %45 {offsets = [0, 29], sizes = [32, 1], strides = [1, 1]} : vector<32x49xf32> to vector<32x1xf32>
    %199 = vector.broadcast %198 : vector<32x1xf32> to vector<32x256xf32>
    %200 = arith.mulf %55, %199 : vector<32x256xf32>
    %201 = arith.addf %197, %200 : vector<32x256xf32>
    %202 = vector.extract_strided_slice %45 {offsets = [0, 30], sizes = [32, 1], strides = [1, 1]} : vector<32x49xf32> to vector<32x1xf32>
    %203 = vector.broadcast %202 : vector<32x1xf32> to vector<32x256xf32>
    %204 = arith.mulf %59, %203 : vector<32x256xf32>
    %205 = arith.addf %201, %204 : vector<32x256xf32>
    %206 = vector.extract_strided_slice %45 {offsets = [0, 31], sizes = [32, 1], strides = [1, 1]} : vector<32x49xf32> to vector<32x1xf32>
    %207 = vector.broadcast %206 : vector<32x1xf32> to vector<32x256xf32>
    %208 = arith.mulf %44, %207 : vector<32x256xf32>
    %209 = arith.addf %205, %208 : vector<32x256xf32>
    %210 = vector.extract_strided_slice %45 {offsets = [0, 32], sizes = [32, 1], strides = [1, 1]} : vector<32x49xf32> to vector<32x1xf32>
    %211 = vector.broadcast %210 : vector<32x1xf32> to vector<32x256xf32>
    %212 = arith.mulf %63, %211 : vector<32x256xf32>
    %213 = arith.addf %209, %212 : vector<32x256xf32>
    %214 = vector.extract_strided_slice %45 {offsets = [0, 33], sizes = [32, 1], strides = [1, 1]} : vector<32x49xf32> to vector<32x1xf32>
    %215 = vector.broadcast %214 : vector<32x1xf32> to vector<32x256xf32>
    %216 = arith.mulf %67, %215 : vector<32x256xf32>
    %217 = arith.addf %213, %216 : vector<32x256xf32>
    %218 = vector.extract_strided_slice %45 {offsets = [0, 34], sizes = [32, 1], strides = [1, 1]} : vector<32x49xf32> to vector<32x1xf32>
    %219 = vector.broadcast %218 : vector<32x1xf32> to vector<32x256xf32>
    %220 = arith.mulf %71, %219 : vector<32x256xf32>
    %221 = arith.addf %217, %220 : vector<32x256xf32>
    %c240_i32 = arith.constant 240 : i32
    %222 = tpu.dynamic_rotate %221 by %c240_i32 dim 1 : vector<32x256xf32>, i32 -> vector<32x256xf32>
    %223 = vector.extract_strided_slice %47 {offsets = [4, 0], sizes = [1, 256], strides = [1, 1]} : vector<7x256xf32> to vector<1x256xf32>
    %224 = vector.broadcast %223 : vector<1x256xf32> to vector<32x256xf32>
    %225 = arith.mulf %222, %224 : vector<32x256xf32>
    %226 = arith.addf %194, %225 : vector<32x256xf32>
    %227 = vector.extract_strided_slice %45 {offsets = [0, 35], sizes = [32, 1], strides = [1, 1]} : vector<32x49xf32> to vector<32x1xf32>
    %228 = vector.broadcast %227 : vector<32x1xf32> to vector<32x256xf32>
    %229 = arith.mulf %51, %228 : vector<32x256xf32>
    %230 = vector.extract_strided_slice %45 {offsets = [0, 36], sizes = [32, 1], strides = [1, 1]} : vector<32x49xf32> to vector<32x1xf32>
    %231 = vector.broadcast %230 : vector<32x1xf32> to vector<32x256xf32>
    %232 = arith.mulf %55, %231 : vector<32x256xf32>
    %233 = arith.addf %229, %232 : vector<32x256xf32>
    %234 = vector.extract_strided_slice %45 {offsets = [0, 37], sizes = [32, 1], strides = [1, 1]} : vector<32x49xf32> to vector<32x1xf32>
    %235 = vector.broadcast %234 : vector<32x1xf32> to vector<32x256xf32>
    %236 = arith.mulf %59, %235 : vector<32x256xf32>
    %237 = arith.addf %233, %236 : vector<32x256xf32>
    %238 = vector.extract_strided_slice %45 {offsets = [0, 38], sizes = [32, 1], strides = [1, 1]} : vector<32x49xf32> to vector<32x1xf32>
    %239 = vector.broadcast %238 : vector<32x1xf32> to vector<32x256xf32>
    %240 = arith.mulf %44, %239 : vector<32x256xf32>
    %241 = arith.addf %237, %240 : vector<32x256xf32>
    %242 = vector.extract_strided_slice %45 {offsets = [0, 39], sizes = [32, 1], strides = [1, 1]} : vector<32x49xf32> to vector<32x1xf32>
    %243 = vector.broadcast %242 : vector<32x1xf32> to vector<32x256xf32>
    %244 = arith.mulf %63, %243 : vector<32x256xf32>
    %245 = arith.addf %241, %244 : vector<32x256xf32>
    %246 = vector.extract_strided_slice %45 {offsets = [0, 40], sizes = [32, 1], strides = [1, 1]} : vector<32x49xf32> to vector<32x1xf32>
    %247 = vector.broadcast %246 : vector<32x1xf32> to vector<32x256xf32>
    %248 = arith.mulf %67, %247 : vector<32x256xf32>
    %249 = arith.addf %245, %248 : vector<32x256xf32>
    %250 = vector.extract_strided_slice %45 {offsets = [0, 41], sizes = [32, 1], strides = [1, 1]} : vector<32x49xf32> to vector<32x1xf32>
    %251 = vector.broadcast %250 : vector<32x1xf32> to vector<32x256xf32>
    %252 = arith.mulf %71, %251 : vector<32x256xf32>
    %253 = arith.addf %249, %252 : vector<32x256xf32>
    %c224_i32 = arith.constant 224 : i32
    %254 = tpu.dynamic_rotate %253 by %c224_i32 dim 1 : vector<32x256xf32>, i32 -> vector<32x256xf32>
    %255 = vector.extract_strided_slice %47 {offsets = [5, 0], sizes = [1, 256], strides = [1, 1]} : vector<7x256xf32> to vector<1x256xf32>
    %256 = vector.broadcast %255 : vector<1x256xf32> to vector<32x256xf32>
    %257 = arith.mulf %254, %256 : vector<32x256xf32>
    %258 = arith.addf %226, %257 : vector<32x256xf32>
    %259 = vector.extract_strided_slice %45 {offsets = [0, 42], sizes = [32, 1], strides = [1, 1]} : vector<32x49xf32> to vector<32x1xf32>
    %260 = vector.broadcast %259 : vector<32x1xf32> to vector<32x256xf32>
    %261 = arith.mulf %51, %260 : vector<32x256xf32>
    %262 = vector.extract_strided_slice %45 {offsets = [0, 43], sizes = [32, 1], strides = [1, 1]} : vector<32x49xf32> to vector<32x1xf32>
    %263 = vector.broadcast %262 : vector<32x1xf32> to vector<32x256xf32>
    %264 = arith.mulf %55, %263 : vector<32x256xf32>
    %265 = arith.addf %261, %264 : vector<32x256xf32>
    %266 = vector.extract_strided_slice %45 {offsets = [0, 44], sizes = [32, 1], strides = [1, 1]} : vector<32x49xf32> to vector<32x1xf32>
    %267 = vector.broadcast %266 : vector<32x1xf32> to vector<32x256xf32>
    %268 = arith.mulf %59, %267 : vector<32x256xf32>
    %269 = arith.addf %265, %268 : vector<32x256xf32>
    %270 = vector.extract_strided_slice %45 {offsets = [0, 45], sizes = [32, 1], strides = [1, 1]} : vector<32x49xf32> to vector<32x1xf32>
    %271 = vector.broadcast %270 : vector<32x1xf32> to vector<32x256xf32>
    %272 = arith.mulf %44, %271 : vector<32x256xf32>
    %273 = arith.addf %269, %272 : vector<32x256xf32>
    %274 = vector.extract_strided_slice %45 {offsets = [0, 46], sizes = [32, 1], strides = [1, 1]} : vector<32x49xf32> to vector<32x1xf32>
    %275 = vector.broadcast %274 : vector<32x1xf32> to vector<32x256xf32>
    %276 = arith.mulf %63, %275 : vector<32x256xf32>
    %277 = arith.addf %273, %276 : vector<32x256xf32>
    %278 = vector.extract_strided_slice %45 {offsets = [0, 47], sizes = [32, 1], strides = [1, 1]} : vector<32x49xf32> to vector<32x1xf32>
    %279 = vector.broadcast %278 : vector<32x1xf32> to vector<32x256xf32>
    %280 = arith.mulf %67, %279 : vector<32x256xf32>
    %281 = arith.addf %277, %280 : vector<32x256xf32>
    %282 = vector.extract_strided_slice %45 {offsets = [0, 48], sizes = [32, 1], strides = [1, 1]} : vector<32x49xf32> to vector<32x1xf32>
    %283 = vector.broadcast %282 : vector<32x1xf32> to vector<32x256xf32>
    %284 = arith.mulf %71, %283 : vector<32x256xf32>
    %285 = arith.addf %281, %284 : vector<32x256xf32>
    %c208_i32 = arith.constant 208 : i32
    %286 = tpu.dynamic_rotate %285 by %c208_i32 dim 1 : vector<32x256xf32>, i32 -> vector<32x256xf32>
    %287 = vector.extract_strided_slice %47 {offsets = [6, 0], sizes = [1, 256], strides = [1, 1]} : vector<7x256xf32> to vector<1x256xf32>
    %288 = vector.broadcast %287 : vector<1x256xf32> to vector<32x256xf32>
    %289 = arith.mulf %286, %288 : vector<32x256xf32>
    %290 = arith.addf %258, %289 : vector<32x256xf32>
    %291 = vector.broadcast %5 : vector<1x256xf32> to vector<32x256xf32>
    %292 = arith.mulf %290, %291 : vector<32x256xf32>
    %293 = arith.addf %18, %292 : vector<32x256xf32>
    %cst_29 = arith.constant dense<0.000000e+00> : vector<256xf32>
    %294 = vector.multi_reduction <add>, %293, %cst_29 [0] : vector<32x256xf32> to vector<256xf32>
    %295 = vector.shape_cast %294 : vector<256xf32> to vector<1x256xf32>
    %cst_30 = arith.constant 3.125000e-02 : f32
    %296 = vector.broadcast %cst_30 : f32 to vector<1x256xf32>
    %297 = arith.mulf %295, %296 : vector<1x256xf32>
    %298 = vector.broadcast %297 : vector<1x256xf32> to vector<32x256xf32>
    %299 = arith.subf %293, %298 : vector<32x256xf32>
    %300 = arith.mulf %299, %299 : vector<32x256xf32>
    %cst_31 = arith.constant dense<0.000000e+00> : vector<256xf32>
    %301 = vector.multi_reduction <add>, %300, %cst_31 [0] : vector<32x256xf32> to vector<256xf32>
    %302 = vector.shape_cast %301 : vector<256xf32> to vector<1x256xf32>
    %cst_32 = arith.constant 3.125000e-02 : f32
    %303 = vector.broadcast %cst_32 : f32 to vector<1x256xf32>
    %304 = arith.mulf %302, %303 : vector<1x256xf32>
    %cst_33 = arith.constant 9.99999974E-6 : f32
    %305 = vector.broadcast %cst_33 : f32 to vector<1x256xf32>
    %306 = arith.addf %304, %305 : vector<1x256xf32>
    %307 = math.rsqrt %306 : vector<1x256xf32>
    %308 = vector.broadcast %307 : vector<1x256xf32> to vector<32x256xf32>
    %309 = arith.mulf %299, %308 : vector<32x256xf32>
    %310 = vector.broadcast %23 : vector<32x1xf32> to vector<32x256xf32>
    %311 = arith.mulf %309, %310 : vector<32x256xf32>
    %312 = vector.broadcast %24 : vector<32x1xf32> to vector<32x256xf32>
    %313 = arith.addf %311, %312 : vector<32x256xf32>
    %c0_34 = arith.constant 0 : index
    %c0_35 = arith.constant 0 : index
    %314 = vector.load %arg10[%c0_34, %c0_35] : memref<64x32xbf16, #tpu.memory_space<vmem>>, vector<64x32xbf16>
    %315 = arith.truncf %313 : vector<32x256xf32> to vector<32x256xbf16>
    %cst_36 = arith.constant dense<0.000000e+00> : vector<64x256xf32>
    %316 = tpu.matmul %314, %315, %cst_36 {dimension_numbers = #tpu.dot_dimension_numbers<[1], [0], [0], [1], [0, 0, 1, 1], [], []>} : vector<64x32xbf16>, vector<32x256xbf16>, vector<64x256xf32> -> vector<64x256xf32>
    %317 = vector.broadcast %2 : vector<64x1xf32> to vector<64x256xf32>
    %318 = arith.addf %316, %317 : vector<64x256xf32>
    %cst_37 = arith.constant 5.000000e-01 : f32
    %319 = vector.broadcast %cst_37 : f32 to vector<64x256xf32>
    %320 = arith.mulf %319, %318 : vector<64x256xf32>
    %cst_38 = arith.constant 4.471500e-02 : f32
    %321 = vector.broadcast %cst_38 : f32 to vector<64x256xf32>
    %322 = arith.mulf %321, %318 : vector<64x256xf32>
    %323 = arith.mulf %322, %318 : vector<64x256xf32>
    %324 = arith.mulf %323, %318 : vector<64x256xf32>
    %325 = arith.addf %318, %324 : vector<64x256xf32>
    %cst_39 = arith.constant 0.797884583 : f32
    %326 = vector.broadcast %cst_39 : f32 to vector<64x256xf32>
    %327 = arith.mulf %326, %325 : vector<64x256xf32>
    %328 = math.tanh %327 : vector<64x256xf32>
    %cst_40 = arith.constant 1.000000e+00 : f32
    %329 = vector.broadcast %cst_40 : f32 to vector<64x256xf32>
    %330 = arith.addf %329, %328 : vector<64x256xf32>
    %331 = arith.mulf %320, %330 : vector<64x256xf32>
    %c0_41 = arith.constant 0 : index
    %c0_42 = arith.constant 0 : index
    %332 = vector.load %arg11[%c0_41, %c0_42] : memref<32x64xbf16, #tpu.memory_space<vmem>>, vector<32x64xbf16>
    %333 = arith.truncf %331 : vector<64x256xf32> to vector<64x256xbf16>
    %cst_43 = arith.constant dense<0.000000e+00> : vector<32x256xf32>
    %334 = tpu.matmul %332, %333, %cst_43 {dimension_numbers = #tpu.dot_dimension_numbers<[1], [0], [0], [1], [0, 0, 1, 1], [], []>} : vector<32x64xbf16>, vector<64x256xbf16>, vector<32x256xf32> -> vector<32x256xf32>
    %335 = vector.broadcast %3 : vector<32x1xf32> to vector<32x256xf32>
    %336 = arith.addf %334, %335 : vector<32x256xf32>
    %337 = arith.addf %293, %336 : vector<32x256xf32>
    %c0_44 = arith.constant 0 : index
    %c0_45 = arith.constant 0 : index
    %c0_46 = arith.constant 0 : index
    %338 = vector.load %arg13[%c0_44, %c0_45, %c0_46] : memref<1x32x256xf32, #tpu.memory_space<vmem>>, vector<1x32x256xf32>
    %339 = vector.shape_cast %338 : vector<1x32x256xf32> to vector<32x256xf32>
    %340 = vector.shape_cast %337 : vector<32x256xf32> to vector<1x32x256xf32>
    tpu.vector_store %arg13[%c0_44, %c0_45, %c0_46], %340 {strides = array<i32>} : memref<1x32x256xf32, #tpu.memory_space<vmem>>, vector<1x32x256xf32>,
    return
  }
  func.func @transform_0(%arg0: i32) -> (i32, i32, i32) {
    %c0_i32 = arith.constant 0 : i32
    %c0_i32_0 = arith.constant 0 : i32
    %c0_i32_1 = arith.constant 0 : i32
    return %arg0, %c0_i32, %c0_i32_0 : i32, i32, i32
  }
  func.func @transform_1(%arg0: i32) -> (i32, i32, i32) {
    %c0_i32 = arith.constant 0 : i32
    %c0_i32_0 = arith.constant 0 : i32
    %c0_i32_1 = arith.constant 0 : i32
    return %arg0, %c0_i32, %c0_i32_0 : i32, i32, i32
  }
  func.func @transform_2(%arg0: i32) -> (i32, i32, i32) {
    %c0_i32 = arith.constant 0 : i32
    %c0_i32_0 = arith.constant 0 : i32
    %c0_i32_1 = arith.constant 0 : i32
    return %arg0, %c0_i32, %c0_i32_0 : i32, i32, i32
  }
  func.func @transform_3(%arg0: i32) -> (i32, i32, i32) {
    %c0_i32 = arith.constant 0 : i32
    %c0_i32_0 = arith.constant 0 : i32
    %c0_i32_1 = arith.constant 0 : i32
    return %arg0, %c0_i32, %c0_i32_0 : i32, i32, i32
  }
  func.func @transform_4(%arg0: i32) -> (i32, i32) {
    %c0_i32 = arith.constant 0 : i32
    %c0_i32_0 = arith.constant 0 : i32
    %c0_i32_1 = arith.constant 0 : i32
    return %c0_i32, %c0_i32_0 : i32, i32
  }
  func.func @transform_5(%arg0: i32) -> (i32, i32) {
    %c0_i32 = arith.constant 0 : i32
    %c0_i32_0 = arith.constant 0 : i32
    %c0_i32_1 = arith.constant 0 : i32
    return %c0_i32, %c0_i32_0 : i32, i32
  }
  func.func @transform_6(%arg0: i32) -> (i32, i32) {
    %c0_i32 = arith.constant 0 : i32
    %c0_i32_0 = arith.constant 0 : i32
    %c0_i32_1 = arith.constant 0 : i32
    return %c0_i32, %c0_i32_0 : i32, i32
  }
  func.func @transform_7(%arg0: i32) -> (i32, i32) {
    %c0_i32 = arith.constant 0 : i32
    %c0_i32_0 = arith.constant 0 : i32
    %c0_i32_1 = arith.constant 0 : i32
    return %c0_i32, %c0_i32_0 : i32, i32
  }
  func.func @transform_8(%arg0: i32) -> (i32, i32) {
    %c0_i32 = arith.constant 0 : i32
    %c0_i32_0 = arith.constant 0 : i32
    %c0_i32_1 = arith.constant 0 : i32
    return %c0_i32, %c0_i32_0 : i32, i32
  }
  func.func @transform_9(%arg0: i32) -> (i32, i32) {
    %c0_i32 = arith.constant 0 : i32
    %c0_i32_0 = arith.constant 0 : i32
    %c0_i32_1 = arith.constant 0 : i32
    return %c0_i32, %c0_i32_0 : i32, i32
  }
  func.func @transform_10(%arg0: i32) -> (i32, i32) {
    %c0_i32 = arith.constant 0 : i32
    %c0_i32_0 = arith.constant 0 : i32
    %c0_i32_1 = arith.constant 0 : i32
    return %c0_i32, %c0_i32_0 : i32, i32
  }
  func.func @transform_11(%arg0: i32) -> (i32, i32) {
    %c0_i32 = arith.constant 0 : i32
    %c0_i32_0 = arith.constant 0 : i32
    %c0_i32_1 = arith.constant 0 : i32
    return %c0_i32, %c0_i32_0 : i32, i32
  }
  func.func @transform_12(%arg0: i32) -> (i32, i32, i32) {
    %c0_i32 = arith.constant 0 : i32
    %c0_i32_0 = arith.constant 0 : i32
    %c0_i32_1 = arith.constant 0 : i32
    return %arg0, %c0_i32, %c0_i32_0 : i32, i32, i32
  }
}

</mosaic_0001>

<llo_original>
// kernel: tpu_custom_call.1
$region0: #{tpu_custom_call.1}
  #allocation0 [shape = 'u32[]', space=smem, size = 0x4, offset = 0x4, fixed_abs, tag = 'smem constant byte address 0x4 - core index']
  #allocation1 [shape = 'u32[144,128]{1,0:T(1,128)}', space=vmem, size = 0x12000, scoped, tag = 'internal scratch']
  %s0 = inlined_call_operand.vmem [shape: f32[2,32,256], index: 0, kind: input, shape index: {}]
  %s1 = inlined_call_operand.vmem [shape: f32[2,16,256], index: 1, kind: input, shape index: {}]
  %s2 = inlined_call_operand.hbm [shape: f32[2,1,256], index: 2, kind: input, shape index: {}]
  %s3 = inlined_call_operand.vmem [shape: f32[2,32,4], index: 3, kind: input, shape index: {}]
  %s4 = inlined_call_operand.hbm [shape: bf16[32,32], index: 4, kind: input, shape index: {}]
  %s5 = inlined_call_operand.vmem [shape: bf16[32,16], index: 5, kind: input, shape index: {}]
  %s6 = inlined_call_operand.vmem [shape: f32[32,49], index: 6, kind: input, shape index: {}]
  %s7 = inlined_call_operand.hbm [shape: f32[7,256], index: 7, kind: input, shape index: {}]
  %s8 = inlined_call_operand.hbm [shape: f32[7,256], index: 8, kind: input, shape index: {}]
  %s9 = inlined_call_operand.vmem [shape: bf16[64,32], index: 9, kind: input, shape index: {}]
  %s10 = inlined_call_operand.hbm [shape: bf16[32,64], index: 10, kind: input, shape index: {}]
  %s11 = inlined_call_operand.vmem [shape: f32[64,2], index: 11, kind: input, shape index: {}]
  %s12 = inlined_call_operand.hbm [shape: f32[2,32,256], index: 12, kind: output, shape index: {}]
  %s13 = sld [smem:[#allocation0]]
  $region101: #{tpu_custom_call.1} parent=0
    _
  %s15 = ssub.s32 1, %s13
  %s16 = scalar_select 0, %s15, %s13
  $region1: #{tpu_custom_call.1} parent=0
    #allocation2 [shape = 'u8[2048]{0}', space=vmem, size = 0x800, scoped, tag = 'input window, operand 2']
    #allocation3 [shape = 's32[2]{0}', space=sflag, size = 0x8, scoped, tag = 'scoped memory for tpu_custom_call.1']
    #allocation4 [shape = 's32[2]{0}', space=sflag, size = 0x8, scoped, tag = 'scoped memory for tpu_custom_call.1']
    #allocation5 [shape = 'u8[8192]{0}', space=vmem, size = 0x2000, scoped, tag = 'input window, operand 4, single buffered']
    #allocation6 [shape = 's32[1]{0}', space=sflag, size = 0x4, scoped, tag = 'scoped memory for tpu_custom_call.1']
    #allocation7 [shape = 'u8[8192]{0}', space=vmem, size = 0x2000, scoped, tag = 'input window, operand 7, single buffered']
    #allocation8 [shape = 'u8[8192]{0}', space=vmem, size = 0x2000, scoped, tag = 'input window, operand 8, single buffered']
    #allocation9 [shape = 's32[1]{0}', space=sflag, size = 0x4, scoped, tag = 'scoped memory for tpu_custom_call.1']
    #allocation10 [shape = 'u8[8192]{0}', space=vmem, size = 0x2000, scoped, tag = 'input window, operand 10, single buffered']
    #allocation11 [shape = 'u8[65536]{0}', space=vmem, size = 0x10000, scoped, tag = 'output window, operand 0']
    %17 = vsyncpa [#allocation3], 0
    %s18 = scalar_lea.sflag [#allocation3], 1
    %19 = vsyncpa %s18, 0
    %20 = vsyncpa [#allocation6], 0
    %21 = vsyncpa [#allocation9], 0
    %22 = vsyncpa [#allocation4], 0
    %s23 = scalar_lea.sflag [#allocation4], 1
    %24 = vsyncpa %s23, 0
    loop: start=0, step=1, limit=4
    $region2: #{tpu_custom_call.1} parent=1 // loop_pre_header
      _
    $region3: #{tpu_custom_call.1} parent=1 // loop_header
      %s26 = sphi 0, %s30
      %p27 = scmp.ge.s32.totalorder %s26, 4
      %s36 = sphi 0, %s38
      %s39 = sphi 0, %s36
      %s40 = sphi 0, %s39
      %s56 = sphi 0, %s40
      %s62 = sphi 0, %s64
      %s65 = sphi 0, %s62
      %s66 = sphi 0, %s65
      %s82 = sphi 0, %s66
      %s88 = sphi 0, %s90
      %s91 = sphi 0, %s88
      %s92 = sphi 0, %s91
      %s108 = sphi 0, %s92
      %s114 = sphi 0, %s116
      %s117 = sphi 0, %s114
      %s118 = sphi 0, %s117
      %s134 = sphi 0, %s118
      %s138 = sphi 0, %s138
      %s140 = sphi 0, %s138
      %s141 = sphi 0, %s140
      %s155 = sphi 0, %s141
      %s159 = sphi 0, %s159
      %s161 = sphi 0, %s159
      %s162 = sphi 0, %s161
      %s176 = sphi 0, %s162
      %s180 = sphi 0, %s180
      %s182 = sphi 0, %s180
      %s183 = sphi 0, %s182
      %s197 = sphi 0, %s183
      %s201 = sphi 0, %s201
      %s203 = sphi 0, %s201
      %s204 = sphi 0, %s203
      %s218 = sphi 0, %s204
      %s222 = sphi 0, %s222
      %s224 = sphi 0, %s222
      %s225 = sphi 0, %s224
      %s239 = sphi 0, %s225
      %s243 = sphi 0, %s243
      %s245 = sphi 0, %s243
      %s246 = sphi 0, %s245
      %s260 = sphi 0, %s246
      %s264 = sphi 0, %s264
      %s266 = sphi 0, %s264
      %s267 = sphi 0, %s266
      %s281 = sphi 0, %s267
      %s285 = sphi 0, %s285
      %s287 = sphi 0, %s285
      %s288 = sphi 0, %s287
      %s302 = sphi 0, %s288
      %s308 = sphi 0, %s310
      %s311 = sphi 0, %s308
      %s312 = sphi 0, %s311
      %s328 = sphi 0, %s312
    $region4: #{tpu_custom_call.1} parent=1 // loop_header_branch
      %29 = sbr.rel (%p27) target = $region8
    $region5: #{tpu_custom_call.1} parent=1 // loop_body
      %s31 = ssub.s32 %s26, 1
      %s32 = ssub.s32 %s26, 2
      %s33 = sadd.s32 %s26, 1
      %s34 = ssub.s32 %s26, %s33
      %p35 = scmp.eq.s32.totalorder %s34, 0
      %s37 = sadd.s32 %s36, 1
      %s38 = scalar_select %p35, %s36, %s37
      %p41 = pneg %p35
      %p42 = scmp.eq.s32.totalorder %s26, 1
      %p43 = por %p41, %p42
      %p44 = scmp.ne.s32.totalorder %s36, %s39
      %p45 = scmp.eq.s32.totalorder %s26, 0
      %p46 = por %p44, %p45
      %p47 = scmp.ne.s32.totalorder %s36, %s39
      %p48 = scmp.eq.s32.totalorder %s31, 1
      %p49 = por %p47, %p48
      %p50 = scmp.ne.s32.totalorder %s39, %s40
      %p51 = scmp.eq.s32.totalorder %s31, 0
      %p52 = por %p50, %p51
      %p53 = scmp.ne.s32.totalorder %s39, %s40
      %p54 = scmp.eq.s32.totalorder %s32, 1
      %p55 = por %p53, %p54
      %p57 = scmp.ne.s32.totalorder %s40, %s56
      %p58 = scmp.eq.s32.totalorder %s32, 0
      %p59 = por %p57, %p58
      %s60 = ssub.s32 %s26, %s33
      %p61 = scmp.eq.s32.totalorder %s60, 0
      %s63 = sadd.s32 %s62, 1
      %s64 = scalar_select %p61, %s62, %s63
      %p67 = pneg %p61
      %p68 = scmp.eq.s32.totalorder %s26, 1
      %p69 = por %p67, %p68
      %p70 = scmp.ne.s32.totalorder %s62, %s65
      %p71 = scmp.eq.s32.totalorder %s26, 0
      %p72 = por %p70, %p71
      %p73 = scmp.ne.s32.totalorder %s62, %s65
      %p74 = scmp.eq.s32.totalorder %s31, 1
      %p75 = por %p73, %p74
      %p76 = scmp.ne.s32.totalorder %s65, %s66
      %p77 = scmp.eq.s32.totalorder %s31, 0
      %p78 = por %p76, %p77
      %p79 = scmp.ne.s32.totalorder %s65, %s66
      %p80 = scmp.eq.s32.totalorder %s32, 1
      %p81 = por %p79, %p80
      %p83 = scmp.ne.s32.totalorder %s66, %s82
      %p84 = scmp.eq.s32.totalorder %s32, 0
      %p85 = por %p83, %p84
      %s86 = ssub.s32 %s26, %s33
      %p87 = scmp.eq.s32.totalorder %s86, 0
      %s89 = sadd.s32 %s88, 1
      %s90 = scalar_select %p87, %s88, %s89
      %p93 = pneg %p87
      %p94 = scmp.eq.s32.totalorder %s26, 1
      %p95 = por %p93, %p94
      %p96 = scmp.ne.s32.totalorder %s88, %s91
      %p97 = scmp.eq.s32.totalorder %s26, 0
      %p98 = por %p96, %p97
      %p99 = scmp.ne.s32.totalorder %s88, %s91
      %p100 = scmp.eq.s32.totalorder %s31, 1
      %p101 = por %p99, %p100
      %p102 = scmp.ne.s32.totalorder %s91, %s92
      %p103 = scmp.eq.s32.totalorder %s31, 0
      %p104 = por %p102, %p103
      %p105 = scmp.ne.s32.totalorder %s91, %s92
      %p106 = scmp.eq.s32.totalorder %s32, 1
      %p107 = por %p105, %p106
      %p109 = scmp.ne.s32.totalorder %s92, %s108
      %p110 = scmp.eq.s32.totalorder %s32, 0
      %p111 = por %p109, %p110
      %s112 = ssub.s32 %s26, %s33
      %p113 = scmp.eq.s32.totalorder %s112, 0
      %s115 = sadd.s32 %s114, 1
      %s116 = scalar_select %p113, %s114, %s115
      %p119 = pneg %p113
      %p120 = scmp.eq.s32.totalorder %s26, 1
      %p121 = por %p119, %p120
      %p122 = scmp.ne.s32.totalorder %s114, %s117
      %p123 = scmp.eq.s32.totalorder %s26, 0
      %p124 = por %p122, %p123
      %p125 = scmp.ne.s32.totalorder %s114, %s117
      %p126 = scmp.eq.s32.totalorder %s31, 1
      %p127 = por %p125, %p126
      %p128 = scmp.ne.s32.totalorder %s117, %s118
      %p129 = scmp.eq.s32.totalorder %s31, 0
      %p130 = por %p128, %p129
      %p131 = scmp.ne.s32.totalorder %s117, %s118
      %p132 = scmp.eq.s32.totalorder %s32, 1
      %p133 = por %p131, %p132
      %p135 = scmp.ne.s32.totalorder %s118, %s134
      %p136 = scmp.eq.s32.totalorder %s32, 0
      %p137 = por %p135, %p136
      %s139 = sadd.s32 %s138, 1
      %p142 = scmp.eq.s32.totalorder %s26, 1
      %p143 = scmp.ne.s32.totalorder %s138, %s140
      %p144 = scmp.eq.s32.totalorder %s26, 0
      %p145 = por %p143, %p144
      %p146 = scmp.ne.s32.totalorder %s138, %s140
      %p147 = scmp.eq.s32.totalorder %s31, 1
      %p148 = por %p146, %p147
      %p149 = scmp.ne.s32.totalorder %s140, %s141
      %p150 = scmp.eq.s32.totalorder %s31, 0
      %p151 = por %p149, %p150
      %p152 = scmp.ne.s32.totalorder %s140, %s141
      %p153 = scmp.eq.s32.totalorder %s32, 1
      %p154 = por %p152, %p153
      %p156 = scmp.ne.s32.totalorder %s141, %s155
      %p157 = scmp.eq.s32.totalorder %s32, 0
      %p158 = por %p156, %p157
      %s160 = sadd.s32 %s159, 1
      %p163 = scmp.eq.s32.totalorder %s26, 1
      %p164 = scmp.ne.s32.totalorder %s159, %s161
      %p165 = scmp.eq.s32.totalorder %s26, 0
      %p166 = por %p164, %p165
      %p167 = scmp.ne.s32.totalorder %s159, %s161
      %p168 = scmp.eq.s32.totalorder %s31, 1
      %p169 = por %p167, %p168
      %p170 = scmp.ne.s32.totalorder %s161, %s162
      %p171 = scmp.eq.s32.totalorder %s31, 0
      %p172 = por %p170, %p171
      %p173 = scmp.ne.s32.totalorder %s161, %s162
      %p174 = scmp.eq.s32.totalorder %s32, 1
      %p175 = por %p173, %p174
      %p177 = scmp.ne.s32.totalorder %s162, %s176
      %p178 = scmp.eq.s32.totalorder %s32, 0
      %p179 = por %p177, %p178
      %s181 = sadd.s32 %s180, 1
      %p184 = scmp.eq.s32.totalorder %s26, 1
      %p185 = scmp.ne.s32.totalorder %s180, %s182
      %p186 = scmp.eq.s32.totalorder %s26, 0
      %p187 = por %p185, %p186
      %p188 = scmp.ne.s32.totalorder %s180, %s182
      %p189 = scmp.eq.s32.totalorder %s31, 1
      %p190 = por %p188, %p189
      %p191 = scmp.ne.s32.totalorder %s182, %s183
      %p192 = scmp.eq.s32.totalorder %s31, 0
      %p193 = por %p191, %p192
      %p194 = scmp.ne.s32.totalorder %s182, %s183
      %p195 = scmp.eq.s32.totalorder %s32, 1
      %p196 = por %p194, %p195
      %p198 = scmp.ne.s32.totalorder %s183, %s197
      %p199 = scmp.eq.s32.totalorder %s32, 0
      %p200 = por %p198, %p199
      %s202 = sadd.s32 %s201, 1
      %p205 = scmp.eq.s32.totalorder %s26, 1
      %p206 = scmp.ne.s32.totalorder %s201, %s203
      %p207 = scmp.eq.s32.totalorder %s26, 0
      %p208 = por %p206, %p207
      %p209 = scmp.ne.s32.totalorder %s201, %s203
      %p210 = scmp.eq.s32.totalorder %s31, 1
      %p211 = por %p209, %p210
      %p212 = scmp.ne.s32.totalorder %s203, %s204
      %p213 = scmp.eq.s32.totalorder %s31, 0
      %p214 = por %p212, %p213
      %p215 = scmp.ne.s32.totalorder %s203, %s204
      %p216 = scmp.eq.s32.totalorder %s32, 1
      %p217 = por %p215, %p216
      %p219 = scmp.ne.s32.totalorder %s204, %s218
      %p220 = scmp.eq.s32.totalorder %s32, 0
      %p221 = por %p219, %p220
      %s223 = sadd.s32 %s222, 1
      %p226 = scmp.eq.s32.totalorder %s26, 1
      %p227 = scmp.ne.s32.totalorder %s222, %s224
      %p228 = scmp.eq.s32.totalorder %s26, 0
      %p229 = por %p227, %p228
      %p230 = scmp.ne.s32.totalorder %s222, %s224
      %p231 = scmp.eq.s32.totalorder %s31, 1
      %p232 = por %p230, %p231
      %p233 = scmp.ne.s32.totalorder %s224, %s225
      %p234 = scmp.eq.s32.totalorder %s31, 0
      %p235 = por %p233, %p234
      %p236 = scmp.ne.s32.totalorder %s224, %s225
      %p237 = scmp.eq.s32.totalorder %s32, 1
      %p238 = por %p236, %p237
      %p240 = scmp.ne.s32.totalorder %s225, %s239
      %p241 = scmp.eq.s32.totalorder %s32, 0
      %p242 = por %p240, %p241
      %s244 = sadd.s32 %s243, 1
      %p247 = scmp.eq.s32.totalorder %s26, 1
      %p248 = scmp.ne.s32.totalorder %s243, %s245
      %p249 = scmp.eq.s32.totalorder %s26, 0
      %p250 = por %p248, %p249
      %p251 = scmp.ne.s32.totalorder %s243, %s245
      %p252 = scmp.eq.s32.totalorder %s31, 1
      %p253 = por %p251, %p252
      %p254 = scmp.ne.s32.totalorder %s245, %s246
      %p255 = scmp.eq.s32.totalorder %s31, 0
      %p256 = por %p254, %p255
      %p257 = scmp.ne.s32.totalorder %s245, %s246
      %p258 = scmp.eq.s32.totalorder %s32, 1
      %p259 = por %p257, %p258
      %p261 = scmp.ne.s32.totalorder %s246, %s260
      %p262 = scmp.eq.s32.totalorder %s32, 0
      %p263 = por %p261, %p262
      %s265 = sadd.s32 %s264, 1
      %p268 = scmp.eq.s32.totalorder %s26, 1
      %p269 = scmp.ne.s32.totalorder %s264, %s266
      %p270 = scmp.eq.s32.totalorder %s26, 0
      %p271 = por %p269, %p270
      %p272 = scmp.ne.s32.totalorder %s264, %s266
      %p273 = scmp.eq.s32.totalorder %s31, 1
      %p274 = por %p272, %p273
      %p275 = scmp.ne.s32.totalorder %s266, %s267
      %p276 = scmp.eq.s32.totalorder %s31, 0
      %p277 = por %p275, %p276
      %p278 = scmp.ne.s32.totalorder %s266, %s267
      %p279 = scmp.eq.s32.totalorder %s32, 1
      %p280 = por %p278, %p279
      %p282 = scmp.ne.s32.totalorder %s267, %s281
      %p283 = scmp.eq.s32.totalorder %s32, 0
      %p284 = por %p282, %p283
      %s286 = sadd.s32 %s285, 1
      %p289 = scmp.eq.s32.totalorder %s26, 1
      %p290 = scmp.ne.s32.totalorder %s285, %s287
      %p291 = scmp.eq.s32.totalorder %s26, 0
      %p292 = por %p290, %p291
      %p293 = scmp.ne.s32.totalorder %s285, %s287
      %p294 = scmp.eq.s32.totalorder %s31, 1
      %p295 = por %p293, %p294
      %p296 = scmp.ne.s32.totalorder %s287, %s288
      %p297 = scmp.eq.s32.totalorder %s31, 0
      %p298 = por %p296, %p297
      %p299 = scmp.ne.s32.totalorder %s287, %s288
      %p300 = scmp.eq.s32.totalorder %s32, 1
      %p301 = por %p299, %p300
      %p303 = scmp.ne.s32.totalorder %s288, %s302
      %p304 = scmp.eq.s32.totalorder %s32, 0
      %p305 = por %p303, %p304
      %s306 = ssub.s32 %s26, %s33
      %p307 = scmp.eq.s32.totalorder %s306, 0
      %s309 = sadd.s32 %s308, 1
      %s310 = scalar_select %p307, %s308, %s309
      %p313 = pneg %p307
      %p314 = scmp.eq.s32.totalorder %s26, 1
      %p315 = por %p313, %p314
      %p316 = scmp.ne.s32.totalorder %s308, %s311
      %p317 = scmp.eq.s32.totalorder %s26, 0
      %p318 = por %p316, %p317
      %p319 = scmp.ne.s32.totalorder %s308, %s311
      %p320 = scmp.eq.s32.totalorder %s31, 1
      %p321 = por %p319, %p320
      %p322 = scmp.ne.s32.totalorder %s311, %s312
      %p323 = scmp.eq.s32.totalorder %s31, 0
      %p324 = por %p322, %p323
      %p325 = scmp.ne.s32.totalorder %s311, %s312
      %p326 = scmp.eq.s32.totalorder %s32, 1
      %p327 = por %p325, %p326
      %p329 = scmp.ne.s32.totalorder %s312, %s328
      %p330 = scmp.eq.s32.totalorder %s32, 0
      %p331 = por %p329, %p330
      %p332 = scmp.le.s32.totalorder 1, %s26
      %p333 = scmp.lt.s32.totalorder %s26, 3
      %p334 = pnand %p332, %p333
      %p335 = pneg %p334
      // Predicated region
      $region9: #{tpu_custom_call.1} parent=5 // pred_check
        _
      $region10: #{tpu_custom_call.1} parent=5 // pred_check_branch
        %337 = sbr.rel (%p334) target = $region12
      $region11: #{tpu_custom_call.1} parent=5 // pred_region
        %s338 = ssub.s32 %s26, 1
        // Predicated region
        $region13: #{tpu_custom_call.1} parent=11 // pred_check
          %p339 = pneg %p151
        $region14: #{tpu_custom_call.1} parent=11 // pred_check_branch
          %341 = sbr.rel (%p339) target = $region16
        $region15: #{tpu_custom_call.1} parent=11 // pred_region
          %s343 = ssub.s32 256, 256
          %344 = vsyncadd [#allocation6], %s343
          %s345 = sshll.u32 [#allocation5], 4
          %s346 = int_to_ptr.vmem [resolvable:$true] %s345
          %351 = dma.hbm_to_vmem [thread:$0]  %s4, 256, %s346, [#allocation6], 64, 64, 4
        $region16: #{tpu_custom_call.1} parent=11 // pred_fallthru
          _
        // Predicated region
        $region17: #{tpu_custom_call.1} parent=11 // pred_check
          %p352 = pneg %p172
        $region18: #{tpu_custom_call.1} parent=11 // pred_check_branch
          %354 = sbr.rel (%p352) target = $region20
        $region19: #{tpu_custom_call.1} parent=11 // pred_region
          _
        $region20: #{tpu_custom_call.1} parent=11 // pred_fallthru
          _
        // Predicated region
        $region21: #{tpu_custom_call.1} parent=11 // pred_check
          %p355 = pneg %p193
        $region22: #{tpu_custom_call.1} parent=11 // pred_check_branch
          %357 = sbr.rel (%p355) target = $region24
        $region23: #{tpu_custom_call.1} parent=11 // pred_region
          _
        $region24: #{tpu_custom_call.1} parent=11 // pred_fallthru
          _
        // Predicated region
        $region25: #{tpu_custom_call.1} parent=11 // pred_check
          %p358 = pneg %p214
        $region26: #{tpu_custom_call.1} parent=11 // pred_check_branch
          %360 = sbr.rel (%p358) target = $region28
        $region27: #{tpu_custom_call.1} parent=11 // pred_region
          %s362 = ssub.s32 256, 256
          %363 = vsyncadd [#allocation6], %s362
          %s365 = sshll.u32 [#allocation7], 4
          %s366 = int_to_ptr.vmem [resolvable:$true] %s365
          %368 = dma.hbm_to_vmem [thread:$0]  %s7, 256, %s366, [#allocation6]
        $region28: #{tpu_custom_call.1} parent=11 // pred_fallthru
          _
        // Predicated region
        $region29: #{tpu_custom_call.1} parent=11 // pred_check
          %p369 = pneg %p235
        $region30: #{tpu_custom_call.1} parent=11 // pred_check_branch
          %371 = sbr.rel (%p369) target = $region32
        $region31: #{tpu_custom_call.1} parent=11 // pred_region
          %s373 = ssub.s32 256, 256
          %374 = vsyncadd [#allocation9], %s373
          %s376 = sshll.u32 [#allocation8], 4
          %s377 = int_to_ptr.vmem [resolvable:$true] %s376
          %379 = dma.hbm_to_vmem [thread:$0]  %s8, 256, %s377, [#allocation9]
        $region32: #{tpu_custom_call.1} parent=11 // pred_fallthru
          _
        // Predicated region
        $region33: #{tpu_custom_call.1} parent=11 // pred_check
          %p380 = pneg %p256
        $region34: #{tpu_custom_call.1} parent=11 // pred_check_branch
          %382 = sbr.rel (%p380) target = $region36
        $region35: #{tpu_custom_call.1} parent=11 // pred_region
          _
        $region36: #{tpu_custom_call.1} parent=11 // pred_fallthru
          _
        // Predicated region
        $region37: #{tpu_custom_call.1} parent=11 // pred_check
          %p383 = pneg %p277
        $region38: #{tpu_custom_call.1} parent=11 // pred_check_branch
          %385 = sbr.rel (%p383) target = $region40
        $region39: #{tpu_custom_call.1} parent=11 // pred_region
          %s387 = ssub.s32 256, 256
          %388 = vsyncadd [#allocation9], %s387
          %s389 = sshll.u32 [#allocation10], 4
          %s390 = int_to_ptr.vmem [resolvable:$true] %s389
          %395 = dma.hbm_to_vmem [thread:$0]  %s10, 256, %s390, [#allocation9], 64, 64, 4
        $region40: #{tpu_custom_call.1} parent=11 // pred_fallthru
          _
        // Predicated region
        $region41: #{tpu_custom_call.1} parent=11 // pred_check
          %p396 = pneg %p298
        $region42: #{tpu_custom_call.1} parent=11 // pred_check_branch
          %398 = sbr.rel (%p396) target = $region44
        $region43: #{tpu_custom_call.1} parent=11 // pred_region
          _
        $region44: #{tpu_custom_call.1} parent=11 // pred_fallthru
          _
      $region12: #{tpu_custom_call.1} parent=5 // pred_fallthru
        _
      %p399 = scmp.lt.s32.totalorder %s26, 2
      // Predicated region
      $region45: #{tpu_custom_call.1} parent=5 // pred_check
        %p400 = pneg %p399
      $region46: #{tpu_custom_call.1} parent=5 // pred_check_branch
        %402 = sbr.rel (%p400) target = $region48
      $region47: #{tpu_custom_call.1} parent=5 // pred_region
        // Predicated region
        $region49: #{tpu_custom_call.1} parent=47 // pred_check
          %p403 = pneg %p46
        $region50: #{tpu_custom_call.1} parent=47 // pred_check_branch
          %405 = sbr.rel (%p403) target = $region52
        $region51: #{tpu_custom_call.1} parent=47 // pred_region
          %p406 = scmp.lt.s32.totalorder %s26, 1
          %s407 = scalar_select %p406, %s26, 1
          %s408 = smul.addr %s407, 8
          %s409 = smul.addr %s408, 8
          %s410 = scalar_lea.vmem %s0, %s409
        $region52: #{tpu_custom_call.1} parent=47 // pred_fallthru
          _
        // Predicated region
        $region53: #{tpu_custom_call.1} parent=47 // pred_check
          %p411 = pneg %p72
        $region54: #{tpu_custom_call.1} parent=47 // pred_check_branch
          %413 = sbr.rel (%p411) target = $region56
        $region55: #{tpu_custom_call.1} parent=47 // pred_region
          %p414 = scmp.lt.s32.totalorder %s26, 1
          %s415 = scalar_select %p414, %s26, 1
          %s416 = smul.addr %s415, 4
          %s417 = smul.addr %s416, 8
          %s418 = scalar_lea.vmem %s1, %s417
        $region56: #{tpu_custom_call.1} parent=47 // pred_fallthru
          _
        // Predicated region
        $region57: #{tpu_custom_call.1} parent=47 // pred_check
          %p419 = pneg %p98
        $region58: #{tpu_custom_call.1} parent=47 // pred_check_branch
          %421 = sbr.rel (%p419) target = $region60
        $region59: #{tpu_custom_call.1} parent=47 // pred_region
          %s422 = sand.u32 %s88, 1
          %s423 = scalar_lea.sflag [#allocation3], %s422
          %s424 = sand.u32 %s88, 1
          %s425 = smul.addr %s424, 2
          %s426 = scalar_lea.vmem [#allocation2], %s425
          %s428 = ssub.s32 32, 32
          %429 = vsyncadd %s423, %s428
          %s430 = smul.addr %s26, 2
          %s431 = smul.addr %s430, 16
          %s432 = scalar_lea.hbm %s2, %s431
          %s434 = sshll.u32 %s426, 4
          %s435 = int_to_ptr.vmem [resolvable:$true] %s434
          %437 = dma.hbm_to_vmem [thread:$0]  %s432, 32, %s435, %s423
        $region60: #{tpu_custom_call.1} parent=47 // pred_fallthru
          _
        // Predicated region
        $region61: #{tpu_custom_call.1} parent=47 // pred_check
          %p438 = pneg %p124
        $region62: #{tpu_custom_call.1} parent=47 // pred_check_branch
          %440 = sbr.rel (%p438) target = $region64
        $region63: #{tpu_custom_call.1} parent=47 // pred_region
          %p441 = scmp.lt.s32.totalorder %s26, 1
          %s442 = scalar_select %p441, %s26, 1
          %s443 = smul.addr %s442, 4
          %s444 = smul.addr %s443, 8
          %s445 = scalar_lea.vmem %s3, %s444
        $region64: #{tpu_custom_call.1} parent=47 // pred_fallthru
          _
      $region48: #{tpu_custom_call.1} parent=5 // pred_fallthru
        _
      %p446 = scmp.le.s32.totalorder 1, %s26
      %p447 = scmp.lt.s32.totalorder %s26, 3
      %p448 = pnand %p446, %p447
      %p449 = pneg %p448
      // Predicated region
      $region65: #{tpu_custom_call.1} parent=5 // pred_check
        _
      $region66: #{tpu_custom_call.1} parent=5 // pred_check_branch
        %451 = sbr.rel (%p448) target = $region68
      $region67: #{tpu_custom_call.1} parent=5 // pred_region
        %s452 = ssub.s32 %s26, 1
        %s453 = sand.u32 %s91, 1
        %s454 = scalar_lea.sflag [#allocation3], %s453
        %s455 = sand.u32 %s91, 1
        %s456 = smul.addr %s455, 2
        %s457 = scalar_lea.vmem [#allocation2], %s456
        // Predicated region
        $region69: #{tpu_custom_call.1} parent=67 // pred_check
          %p458 = pneg %p104
        $region70: #{tpu_custom_call.1} parent=67 // pred_check_branch
          %460 = sbr.rel (%p458) target = $region72
        $region71: #{tpu_custom_call.1} parent=67 // pred_region
          %461 = dma.done %s454, 32
        $region72: #{tpu_custom_call.1} parent=67 // pred_fallthru
          _
        // Predicated region
        $region73: #{tpu_custom_call.1} parent=67 // pred_check
          %p462 = pneg %p151
        $region74: #{tpu_custom_call.1} parent=67 // pred_check_branch
          %464 = sbr.rel (%p462) target = $region76
        $region75: #{tpu_custom_call.1} parent=67 // pred_region
          %465 = dma.done [#allocation6], 256
        $region76: #{tpu_custom_call.1} parent=67 // pred_fallthru
          _
        // Predicated region
        $region77: #{tpu_custom_call.1} parent=67 // pred_check
          %p466 = pneg %p214
        $region78: #{tpu_custom_call.1} parent=67 // pred_check_branch
          %468 = sbr.rel (%p466) target = $region80
        $region79: #{tpu_custom_call.1} parent=67 // pred_region
          %469 = dma.done [#allocation6], 256
        $region80: #{tpu_custom_call.1} parent=67 // pred_fallthru
          _
        // Predicated region
        $region81: #{tpu_custom_call.1} parent=67 // pred_check
          %p470 = pneg %p235
        $region82: #{tpu_custom_call.1} parent=67 // pred_check_branch
          %472 = sbr.rel (%p470) target = $region84
        $region83: #{tpu_custom_call.1} parent=67 // pred_region
          %473 = dma.done [#allocation9], 256
        $region84: #{tpu_custom_call.1} parent=67 // pred_fallthru
          _
        // Predicated region
        $region85: #{tpu_custom_call.1} parent=67 // pred_check
          %p474 = pneg %p277
        $region86: #{tpu_custom_call.1} parent=67 // pred_check_branch
          %476 = sbr.rel (%p474) target = $region88
        $region87: #{tpu_custom_call.1} parent=67 // pred_region
          %477 = dma.done [#allocation9], 256
        $region88: #{tpu_custom_call.1} parent=67 // pred_fallthru
          _
        %p478 = scmp.lt.s32.totalorder %s31, 1
        %s479 = scalar_select %p478, %s31, 1
        %s480 = smul.addr %s479, 8
        %s481 = smul.addr %s480, 8
        %s482 = scalar_lea.vmem %s0, %s481
        %p483 = pneg %p52
        %p484 = pneg %p49
        %p485 = scmp.lt.s32.totalorder %s31, 1
        %s486 = scalar_select %p485, %s31, 1
        %s487 = smul.addr %s486, 4
        %s488 = smul.addr %s487, 8
        %s489 = scalar_lea.vmem %s1, %s488
        %p490 = pneg %p78
        %p491 = pneg %p75
        %s492 = sand.u32 %s91, 1
        %s493 = scalar_lea.sflag [#allocation3], %s492
        %s494 = sand.u32 %s91, 1
        %s495 = smul.addr %s494, 2
        %s496 = scalar_lea.vmem [#allocation2], %s495
        %p497 = pneg %p104
        %p498 = pneg %p101
        %p499 = scmp.lt.s32.totalorder %s31, 1
        %s500 = scalar_select %p499, %s31, 1
        %s501 = smul.addr %s500, 4
        %s502 = smul.addr %s501, 8
        %s503 = scalar_lea.vmem %s3, %s502
        %p504 = pneg %p130
        %p505 = pneg %p127
        %p506 = pneg %p151
        %p507 = pneg %p148
        %p508 = pneg %p172
        %p509 = pneg %p169
        %p510 = pneg %p193
        %p511 = pneg %p190
        %p512 = pneg %p214
        %p513 = pneg %p211
        %p514 = pneg %p235
        %p515 = pneg %p232
        %p516 = pneg %p256
        %p517 = pneg %p253
        %p518 = pneg %p277
        %p519 = pneg %p274
        %p520 = pneg %p298
        %p521 = pneg %p295
        %p522 = pneg %p324
        %p523 = pneg %p321
        %s524 = sand.u32 %s311, 1
        %s525 = scalar_lea.sflag [#allocation4], %s524
        %s526 = sand.u32 %s311, 1
        %s527 = smul.addr %s526, 64
        %s528 = scalar_lea.vmem [#allocation11], %s527
        %p529 = scmp.lt.s32.totalorder %s31, 1
        %s530 = scalar_select %p529, %s31, 1
        %s531 = smul.addr %s530, 8
        %s532 = smul.addr %s531, 8
        %s533 = scalar_lea.vmem %s0, %s532
        %p534 = scmp.lt.s32.totalorder %s31, 1
        %s535 = scalar_select %p534, %s31, 1
        %s536 = smul.addr %s535, 4
        %s537 = smul.addr %s536, 8
        %s538 = scalar_lea.vmem %s1, %s537
        %p539 = scmp.lt.s32.totalorder %s31, 1
        %s540 = scalar_select %p539, %s31, 1
        %s541 = smul.addr %s540, 4
        %s542 = smul.addr %s541, 8
        %s543 = scalar_lea.vmem %s3, %s542
        %v545 = vld [vmem:[%s11] sm:$0xff]
        %v546 = vld [vmem:[%s11 + $0x8] sm:$0xff]
        %v547 = vld [vmem:[%s11 + $0x10] sm:$0xff]
        %v548 = vld [vmem:[%s11 + $0x18] sm:$0xff]
        %v549 = vld [vmem:[%s11 + $0x20] sm:$0xff]
        %v550 = vld [vmem:[%s11 + $0x28] sm:$0xff]
        %v551 = vld [vmem:[%s11 + $0x30] sm:$0xff]
        %v552 = vld [vmem:[%s11 + $0x38] sm:$0xff]
        %v553 = vld [vmem:[%s457] sm:$0x3]
        %v554 = vld [vmem:[#allocation5] sm:$0xf]
        %v555 = vld [vmem:[#allocation5 + $0x4] sm:$0xf]
        %v556 = vld [vmem:[#allocation5 + $0x8] sm:$0xf]
        %v557 = vld [vmem:[#allocation5 + $0xc] sm:$0xf]
        %v558 = vld [vmem:[%s533] sm:$0xff]
        %v559 = vld [vmem:[%s533 + $0x8] sm:$0xff]
        %v560 = vld [vmem:[%s533 + $0x10] sm:$0xff]
        %v561 = vld [vmem:[%s533 + $0x18] sm:$0xff]
        %v562 = vld [vmem:[%s533 + $0x20] sm:$0xff]
        %v563 = vld [vmem:[%s533 + $0x28] sm:$0xff]
        %v564 = vld [vmem:[%s533 + $0x30] sm:$0xff]
        %v565 = vld [vmem:[%s533 + $0x38] sm:$0xff]
        %v566 = vpack.c.bf16 %v560, %v558
        %v567 = vpack.c.bf16 %v561, %v559
        %v568 = vpack.c.bf16 %v564, %v562
        %v569 = vpack.c.bf16 %v565, %v563
        %v570 = vld [vmem:[%s5] sm:$0xf]
        %v571 = vld [vmem:[%s5 + $0x4] sm:$0xf]
        %v572 = vld [vmem:[%s5 + $0x8] sm:$0xf]
        %v573 = vld [vmem:[%s5 + $0xc] sm:$0xf]
        %v574 = vld [vmem:[%s538] sm:$0xff]
        %v575 = vld [vmem:[%s538 + $0x8] sm:$0xff]
        %v576 = vld [vmem:[%s538 + $0x10] sm:$0xff]
        %v577 = vld [vmem:[%s538 + $0x18] sm:$0xff]
        %v578 = vpack.c.bf16 %v576, %v574
        %v579 = vpack.c.bf16 %v577, %v575
        %v584 = vunpack.c.l.b16 %v570
        %v585 = vunpack.c.l.b16 %v571
        %v586 = vunpack.c.l.b16 %v572
        %v587 = vunpack.c.l.b16 %v573
        %v588 = vpack.c.b16 %v585, %v584
        %v589 = vpack.c.b16 %v587, %v586
        %vm590 = vcmask 130048
        %v592 = vsel %vm590, %v588, 0
        %v595 = vsel %vm590, %v589, 0
        %597 = vmatprep.subr.bf16.mxu0 %v579
        %598 = vmatpush1.bf16.msra.mxu0 %v578
        %599 = vmatprep.subr.bf16.mxu0 0
        %600 = vmatpush1.bf16.msra.mxu0 0
        %601 = vmatprep.subr.bf16.mxu0 0
        %602 = vmatpush1.bf16.msra.mxu0 0
        %603 = vmatprep.subr.bf16.mxu0 0
        %604 = vmatpush1.bf16.msra.mxu0 0
        %605 = vmatprep.subr.bf16.mxu0 0
        %606 = vmatpush1.bf16.msra.mxu0 0
        %607 = vmatprep.subr.bf16.mxu0 0
        %608 = vmatpush1.bf16.msra.mxu0 0
        %609 = vmatprep.subr.bf16.mxu0 0
        %610 = vmatpush1.bf16.msra.mxu0 0
        %611 = vmatprep.subr.bf16.mxu0 0
        %612 = vmatpush1.bf16.msra.mxu0 0
        %613 = vmatprep.subr.bf16.mxu0 0
        %614 = vmatpush1.bf16.msra.mxu0 0
        %615 = vmatprep.subr.bf16.mxu0 0
        %616 = vmatpush1.bf16.msra.mxu0 0
        %617 = vmatprep.subr.bf16.mxu0 0
        %618 = vmatpush1.bf16.msra.mxu0 0
        %619 = vmatprep.subr.bf16.mxu0 0
        %620 = vmatpush1.bf16.msra.mxu0 0
        %621 = vmatprep.subr.bf16.mxu0 0
        %622 = vmatpush1.bf16.msra.mxu0 0
        %623 = vmatprep.subr.bf16.mxu0 0
        %624 = vmatpush1.bf16.msra.mxu0 0
        %625 = vmatprep.subr.bf16.mxu0 0
        %626 = vmatpush1.bf16.msra.mxu0 0
        %627 = vmatprep.subr.bf16.mxu0 0
        %628 = vmatpush1.bf16.msra.mxu0 0
        %629 = vmatprep.mubr.bf16.mxu0 0
        %630 = vmatmul.mubr.bf16.gmra.mrb[0].mxu0 %v592
        %v631 = vpop.f32.mrb[0].mxu0
        %v632 = vadd.f32 0.0, %v631
        %v633 = vpop.f32.mrb[0].mxu0
        %v634 = vadd.f32 0.0, %v633
        %v635 = vpop.f32.mrb[0].mxu0
        %v636 = vadd.f32 0.0, %v635
        %v637 = vpop.f32.mrb[0].mxu0
        %v638 = vadd.f32 0.0, %v637
        %639 = vmatprep.mubr.bf16.mxu0 0
        %640 = vmatmul.mubr.bf16.gmra.mrb[0].mxu0 %v595
        %v641 = vpop.f32.mrb[0].mxu0
        %v642 = vadd.f32 0.0, %v641
        %v643 = vpop.f32.mrb[0].mxu0
        %v644 = vadd.f32 0.0, %v643
        %v645 = vpop.f32.mrb[0].mxu0
        %v646 = vadd.f32 0.0, %v645
        %v647 = vpop.f32.mrb[0].mxu0
        %v648 = vadd.f32 0.0, %v647
        %649 = vdwg.mxu0
        %v654 = vunpack.c.l.b16 %v554
        %v655 = vunpack.c.l.b16 %v555
        %v656 = vunpack.c.l.b16 %v556
        %v657 = vunpack.c.l.b16 %v557
        %v658 = vpack.c.b16 %v655, %v654
        %v659 = vpack.c.b16 %v657, %v656
        %vm660 = vcmask 261120
        %v662 = vsel %vm660, %v658, 0
        %v665 = vsel %vm660, %v659, 0
        %667 = vmatprep.subr.bf16.mxu0 %v567
        %668 = vmatpush1.bf16.msra.mxu0 %v566
        %669 = vmatprep.subr.bf16.mxu0 %v569
        %670 = vmatpush1.bf16.msra.mxu0 %v568
        %671 = vmatprep.subr.bf16.mxu0 0
        %672 = vmatpush1.bf16.msra.mxu0 0
        %673 = vmatprep.subr.bf16.mxu0 0
        %674 = vmatpush1.bf16.msra.mxu0 0
        %675 = vmatprep.subr.bf16.mxu0 0
        %676 = vmatpush1.bf16.msra.mxu0 0
        %677 = vmatprep.subr.bf16.mxu0 0
        %678 = vmatpush1.bf16.msra.mxu0 0
        %679 = vmatprep.subr.bf16.mxu0 0
        %680 = vmatpush1.bf16.msra.mxu0 0
        %681 = vmatprep.subr.bf16.mxu0 0
        %682 = vmatpush1.bf16.msra.mxu0 0
        %683 = vmatprep.subr.bf16.mxu0 0
        %684 = vmatpush1.bf16.msra.mxu0 0
        %685 = vmatprep.subr.bf16.mxu0 0
        %686 = vmatpush1.bf16.msra.mxu0 0
        %687 = vmatprep.subr.bf16.mxu0 0
        %688 = vmatpush1.bf16.msra.mxu0 0
        %689 = vmatprep.subr.bf16.mxu0 0
        %690 = vmatpush1.bf16.msra.mxu0 0
        %691 = vmatprep.subr.bf16.mxu0 0
        %692 = vmatpush1.bf16.msra.mxu0 0
        %693 = vmatprep.subr.bf16.mxu0 0
        %694 = vmatpush1.bf16.msra.mxu0 0
        %695 = vmatprep.subr.bf16.mxu0 0
        %696 = vmatpush1.bf16.msra.mxu0 0
        %697 = vmatprep.subr.bf16.mxu0 0
        %698 = vmatpush1.bf16.msra.mxu0 0
        %699 = vmatprep.mubr.bf16.mxu0 0
        %700 = vmatmul.mubr.bf16.gmra.mrb[0].mxu0 %v662
        %v701 = vpop.f32.mrb[0].mxu0
        %v702 = vadd.f32 %v632, %v701
        %v703 = vpop.f32.mrb[0].mxu0
        %v704 = vadd.f32 %v634, %v703
        %v705 = vpop.f32.mrb[0].mxu0
        %v706 = vadd.f32 %v636, %v705
        %v707 = vpop.f32.mrb[0].mxu0
        %v708 = vadd.f32 %v638, %v707
        %709 = vmatprep.mubr.bf16.mxu0 0
        %710 = vmatmul.mubr.bf16.gmra.mrb[0].mxu0 %v665
        %v711 = vpop.f32.mrb[0].mxu0
        %v712 = vadd.f32 %v642, %v711
        %v713 = vpop.f32.mrb[0].mxu0
        %v714 = vadd.f32 %v644, %v713
        %v715 = vpop.f32.mrb[0].mxu0
        %v716 = vadd.f32 %v646, %v715
        %v717 = vpop.f32.mrb[0].mxu0
        %v718 = vadd.f32 %v648, %v717
        %719 = vdwg.mxu0
        %721 = vset.pattern.permute.xlu0 0
        %722 = vperm.xlu0 %721, %v545
        %v723 = vpop.permute.xlu0 %722
        %726 = vset.pattern.permute.xlu0 0
        %727 = vperm.xlu0 %726, %v546
        %v728 = vpop.permute.xlu0 %727
        %731 = vset.pattern.permute.xlu0 0
        %732 = vperm.xlu0 %731, %v547
        %v733 = vpop.permute.xlu0 %732
        %736 = vset.pattern.permute.xlu0 0
        %737 = vperm.xlu0 %736, %v548
        %v738 = vpop.permute.xlu0 %737
        %v740 = vadd.f32 %v702, %v723
        %v741 = vadd.f32 %v704, %v723
        %v742 = vadd.f32 %v706, %v728
        %v743 = vadd.f32 %v708, %v728
        %v744 = vadd.f32 %v712, %v733
        %v745 = vadd.f32 %v714, %v733
        %v746 = vadd.f32 %v716, %v738
        %v747 = vadd.f32 %v718, %v738
        %v748 = vld [vmem:[%s543] sm:$0xff]
        %v749 = vld [vmem:[%s543 + $0x8] sm:$0xff]
        %v750 = vld [vmem:[%s543 + $0x10] sm:$0xff]
        %v751 = vld [vmem:[%s543 + $0x18] sm:$0xff]
        %v752 = vadd.f32 %v740, %v742
        %v753 = vadd.f32 %v752, %v744
        %v754 = vadd.f32 %v753, %v746
        %v755 = vrot.slane %v754, 4
        %v756 = vadd.f32 %v754, %v755
        %v757 = vrot.slane %v756, 2
        %v758 = vadd.f32 %v756, %v757
        %v759 = vrot.slane %v758, 1
        %v760 = vadd.f32 %v758, %v759
        %v761 = vadd.f32 %v741, %v743
        %v762 = vadd.f32 %v761, %v745
        %v763 = vadd.f32 %v762, %v747
        %v764 = vrot.slane %v763, 4
        %v765 = vadd.f32 %v763, %v764
        %v766 = vrot.slane %v765, 2
        %v767 = vadd.f32 %v765, %v766
        %v768 = vrot.slane %v767, 1
        %v769 = vadd.f32 %v767, %v768
        %v770 = vmul.f32 %v760, 0.03125
        %v771 = vmul.f32 %v769, 0.03125
        %v772 = vsub.f32 %v740, %v770
        %v773 = vsub.f32 %v741, %v771
        %v774 = vsub.f32 %v742, %v770
        %v775 = vsub.f32 %v743, %v771
        %v776 = vsub.f32 %v744, %v770
        %v777 = vsub.f32 %v745, %v771
        %v778 = vsub.f32 %v746, %v770
        %v779 = vsub.f32 %v747, %v771
        %v780 = vmul.f32 %v772, %v772
        %v781 = vmul.f32 %v773, %v773
        %v782 = vmul.f32 %v774, %v774
        %v783 = vmul.f32 %v775, %v775
        %v784 = vmul.f32 %v776, %v776
        %v785 = vmul.f32 %v777, %v777
        %v786 = vmul.f32 %v778, %v778
        %v787 = vmul.f32 %v779, %v779
        %v788 = vadd.f32 %v780, %v782
        %v789 = vadd.f32 %v788, %v784
        %v790 = vadd.f32 %v789, %v786
        %v791 = vrot.slane %v790, 4
        %v792 = vadd.f32 %v790, %v791
        %v793 = vrot.slane %v792, 2
        %v794 = vadd.f32 %v792, %v793
        %v795 = vrot.slane %v794, 1
        %v796 = vadd.f32 %v794, %v795
        %v797 = vadd.f32 %v781, %v783
        %v798 = vadd.f32 %v797, %v785
        %v799 = vadd.f32 %v798, %v787
        %v800 = vrot.slane %v799, 4
        %v801 = vadd.f32 %v799, %v800
        %v802 = vrot.slane %v801, 2
        %v803 = vadd.f32 %v801, %v802
        %v804 = vrot.slane %v803, 1
        %v805 = vadd.f32 %v803, %v804
        %v806 = vmul.f32 %v796, 0.03125
        %v807 = vmul.f32 %v805, 0.03125
        %v808 = vadd.f32 %v806, 1e-05
        %v809 = vadd.f32 %v807, 1e-05
        %v810 = vrsqrt.pop %v808
        %v811 = vrsqrt.pop %v809
        %v812 = vmul.f32 %v772, %v810
        %v813 = vmul.f32 %v773, %v811
        %v814 = vmul.f32 %v774, %v810
        %v815 = vmul.f32 %v775, %v811
        %v816 = vmul.f32 %v776, %v810
        %v817 = vmul.f32 %v777, %v811
        %v818 = vmul.f32 %v778, %v810
        %v819 = vmul.f32 %v779, %v811
        %821 = vset.pattern.permute.xlu0 0
        %822 = vperm.xlu0 %821, %v748
        %v823 = vpop.permute.xlu0 %822
        %826 = vset.pattern.permute.xlu0 0
        %827 = vperm.xlu0 %826, %v749
        %v828 = vpop.permute.xlu0 %827
        %831 = vset.pattern.permute.xlu0 0
        %832 = vperm.xlu0 %831, %v750
        %v833 = vpop.permute.xlu0 %832
        %836 = vset.pattern.permute.xlu0 0
        %837 = vperm.xlu0 %836, %v751
        %v838 = vpop.permute.xlu0 %837
        %v840 = vmul.f32 %v812, %v823
        %v841 = vmul.f32 %v813, %v823
        %v842 = vmul.f32 %v814, %v828
        %v843 = vmul.f32 %v815, %v828
        %v844 = vmul.f32 %v816, %v833
        %v845 = vmul.f32 %v817, %v833
        %v846 = vmul.f32 %v818, %v838
        %v847 = vmul.f32 %v819, %v838
        %848 = vset.pattern.permute.xlu0 1
        %849 = vperm.xlu0 %848, %v748
        %v850 = vpop.permute.xlu0 %849
        %852 = vset.pattern.permute.xlu0 1
        %853 = vperm.xlu0 %852, %v749
        %v854 = vpop.permute.xlu0 %853
        %856 = vset.pattern.permute.xlu0 1
        %857 = vperm.xlu0 %856, %v750
        %v858 = vpop.permute.xlu0 %857
        %860 = vset.pattern.permute.xlu0 1
        %861 = vperm.xlu0 %860, %v751
        %v862 = vpop.permute.xlu0 %861
        %v864 = vadd.f32 %v840, %v850
        %v865 = vadd.f32 %v841, %v850
        %v866 = vadd.f32 %v842, %v854
        %v867 = vadd.f32 %v843, %v854
        %v868 = vadd.f32 %v844, %v858
        %v869 = vadd.f32 %v845, %v858
        %v870 = vadd.f32 %v846, %v862
        %v871 = vadd.f32 %v847, %v862
        %v872 = vld [vmem:[%s6] sm:$0xff]
        %v873 = vld [vmem:[%s6 + $0x8] sm:$0xff]
        %v874 = vld [vmem:[%s6 + $0x10] sm:$0xff]
        %v875 = vld [vmem:[%s6 + $0x18] sm:$0xff]
        %v876 = vld [vmem:[#allocation7] sm:$0x7f]
        %v877 = vld [vmem:[#allocation7 + $0x8] sm:$0x7f]
        %v878 = vld [vmem:[#allocation8] sm:$0x7f]
        %v879 = vld [vmem:[#allocation8 + $0x8] sm:$0x7f]
        %880 = vrot.lane.b32.xlu0 %v864, 3
        %v881 = vpop.permute.xlu0 %880
        %882 = vrot.lane.b32.xlu0 %v866, 3
        %v883 = vpop.permute.xlu0 %882
        %884 = vrot.lane.b32.xlu0 %v868, 3
        %v885 = vpop.permute.xlu0 %884
        %886 = vrot.lane.b32.xlu0 %v870, 3
        %v887 = vpop.permute.xlu0 %886
        %888 = vrot.lane.b32.xlu0 %v865, 3
        %v889 = vpop.permute.xlu0 %888
        %890 = vrot.lane.b32.xlu0 %v867, 3
        %v891 = vpop.permute.xlu0 %890
        %892 = vrot.lane.b32.xlu0 %v869, 3
        %v893 = vpop.permute.xlu0 %892
        %894 = vrot.lane.b32.xlu0 %v871, 3
        %v895 = vpop.permute.xlu0 %894
        %v896 = vlaneseq
        %v897 = vand.u32 %v896, 127
        %vm898 = vcmp.lt.s32.totalorder %v897, 3
        %v899 = vsel %vm898, %v881, %v889
        %v900 = vsel %vm898, %v883, %v891
        %v901 = vsel %vm898, %v885, %v893
        %v902 = vsel %vm898, %v887, %v895
        %v903 = vsel %vm898, %v889, %v881
        %v904 = vsel %vm898, %v891, %v883
        %v905 = vsel %vm898, %v893, %v885
        %v906 = vsel %vm898, %v895, %v887
        %v907 = vlaneseq
        %v908 = vshrl.u32 %v907, 7
        %v909 = vsub.s32 0, %v908
        %v910 = vrot.slane %v876, %v909
        %v911 = vlaneseq
        %v912 = vshrl.u32 %v911, 7
        %v913 = vsub.s32 0, %v912
        %v914 = vrot.slane %v877, %v913
        %v915 = vmul.f32 %v903, %v910
        %v916 = vmul.f32 %v899, %v914
        %v917 = vmul.f32 %v904, %v910
        %v918 = vmul.f32 %v900, %v914
        %v919 = vmul.f32 %v905, %v910
        %v920 = vmul.f32 %v901, %v914
        %v921 = vmul.f32 %v906, %v910
        %v922 = vmul.f32 %v902, %v914
        %923 = vrot.lane.b32.xlu0 %v864, 2
        %v924 = vpop.permute.xlu0 %923
        %925 = vrot.lane.b32.xlu0 %v866, 2
        %v926 = vpop.permute.xlu0 %925
        %927 = vrot.lane.b32.xlu0 %v868, 2
        %v928 = vpop.permute.xlu0 %927
        %929 = vrot.lane.b32.xlu0 %v870, 2
        %v930 = vpop.permute.xlu0 %929
        %931 = vrot.lane.b32.xlu0 %v865, 2
        %v932 = vpop.permute.xlu0 %931
        %933 = vrot.lane.b32.xlu0 %v867, 2
        %v934 = vpop.permute.xlu0 %933
        %935 = vrot.lane.b32.xlu0 %v869, 2
        %v936 = vpop.permute.xlu0 %935
        %937 = vrot.lane.b32.xlu0 %v871, 2
        %v938 = vpop.permute.xlu0 %937
        %vm939 = vcmp.lt.s32.totalorder %v897, 2
        %v940 = vsel %vm939, %v924, %v932
        %v941 = vsel %vm939, %v926, %v934
        %v942 = vsel %vm939, %v928, %v936
        %v943 = vsel %vm939, %v930, %v938
        %v944 = vsel %vm939, %v932, %v924
        %v945 = vsel %vm939, %v934, %v926
        %v946 = vsel %vm939, %v936, %v928
        %v947 = vsel %vm939, %v938, %v930
        %v948 = vlaneseq
        %v949 = vshrl.u32 %v948, 7
        %v950 = vsub.s32 1, %v949
        %v951 = vrot.slane %v876, %v950
        %v952 = vlaneseq
        %v953 = vshrl.u32 %v952, 7
        %v954 = vsub.s32 1, %v953
        %v955 = vrot.slane %v877, %v954
        %v956 = vmul.f32 %v944, %v951
        %v957 = vmul.f32 %v940, %v955
        %v958 = vmul.f32 %v945, %v951
        %v959 = vmul.f32 %v941, %v955
        %v960 = vmul.f32 %v946, %v951
        %v961 = vmul.f32 %v942, %v955
        %v962 = vmul.f32 %v947, %v951
        %v963 = vmul.f32 %v943, %v955
        %964 = vrot.lane.b32.xlu0 %v864, 1
        %v965 = vpop.permute.xlu0 %964
        %966 = vrot.lane.b32.xlu0 %v866, 1
        %v967 = vpop.permute.xlu0 %966
        %968 = vrot.lane.b32.xlu0 %v868, 1
        %v969 = vpop.permute.xlu0 %968
        %970 = vrot.lane.b32.xlu0 %v870, 1
        %v971 = vpop.permute.xlu0 %970
        %972 = vrot.lane.b32.xlu0 %v865, 1
        %v973 = vpop.permute.xlu0 %972
        %974 = vrot.lane.b32.xlu0 %v867, 1
        %v975 = vpop.permute.xlu0 %974
        %976 = vrot.lane.b32.xlu0 %v869, 1
        %v977 = vpop.permute.xlu0 %976
        %978 = vrot.lane.b32.xlu0 %v871, 1
        %v979 = vpop.permute.xlu0 %978
        %vm980 = vcmp.lt.s32.totalorder %v897, 1
        %v981 = vsel %vm980, %v965, %v973
        %v982 = vsel %vm980, %v967, %v975
        %v983 = vsel %vm980, %v969, %v977
        %v984 = vsel %vm980, %v971, %v979
        %v985 = vsel %vm980, %v973, %v965
        %v986 = vsel %vm980, %v975, %v967
        %v987 = vsel %vm980, %v977, %v969
        %v988 = vsel %vm980, %v979, %v971
        %v989 = vlaneseq
        %v990 = vshrl.u32 %v989, 7
        %v991 = vsub.s32 2, %v990
        %v992 = vrot.slane %v876, %v991
        %v993 = vlaneseq
        %v994 = vshrl.u32 %v993, 7
        %v995 = vsub.s32 2, %v994
        %v996 = vrot.slane %v877, %v995
        %v997 = vmul.f32 %v985, %v992
        %v998 = vmul.f32 %v981, %v996
        %v999 = vmul.f32 %v986, %v992
        %v1000 = vmul.f32 %v982, %v996
        %v1001 = vmul.f32 %v987, %v992
        %v1002 = vmul.f32 %v983, %v996
        %v1003 = vmul.f32 %v988, %v992
        %v1004 = vmul.f32 %v984, %v996
        %1005 = vrot.lane.b32.xlu0 %v864, 127
        %v1006 = vpop.permute.xlu0 %1005
        %1007 = vrot.lane.b32.xlu0 %v866, 127
        %v1008 = vpop.permute.xlu0 %1007
        %1009 = vrot.lane.b32.xlu0 %v868, 127
        %v1010 = vpop.permute.xlu0 %1009
        %1011 = vrot.lane.b32.xlu0 %v870, 127
        %v1012 = vpop.permute.xlu0 %1011
        %1013 = vrot.lane.b32.xlu0 %v865, 127
        %v1014 = vpop.permute.xlu0 %1013
        %1015 = vrot.lane.b32.xlu0 %v867, 127
        %v1016 = vpop.permute.xlu0 %1015
        %1017 = vrot.lane.b32.xlu0 %v869, 127
        %v1018 = vpop.permute.xlu0 %1017
        %1019 = vrot.lane.b32.xlu0 %v871, 127
        %v1020 = vpop.permute.xlu0 %1019
        %vm1021 = vcmp.lt.s32.totalorder %v897, 127
        %v1022 = vsel %vm1021, %v1006, %v1014
        %v1023 = vsel %vm1021, %v1008, %v1016
        %v1024 = vsel %vm1021, %v1010, %v1018
        %v1025 = vsel %vm1021, %v1012, %v1020
        %v1026 = vsel %vm1021, %v1014, %v1006
        %v1027 = vsel %vm1021, %v1016, %v1008
        %v1028 = vsel %vm1021, %v1018, %v1010
        %v1029 = vsel %vm1021, %v1020, %v1012
        %v1030 = vlaneseq
        %v1031 = vshrl.u32 %v1030, 7
        %v1032 = vsub.s32 4, %v1031
        %v1033 = vrot.slane %v876, %v1032
        %v1034 = vlaneseq
        %v1035 = vshrl.u32 %v1034, 7
        %v1036 = vsub.s32 4, %v1035
        %v1037 = vrot.slane %v877, %v1036
        %v1038 = vmul.f32 %v1022, %v1033
        %v1039 = vmul.f32 %v1026, %v1037
        %v1040 = vmul.f32 %v1023, %v1033
        %v1041 = vmul.f32 %v1027, %v1037
        %v1042 = vmul.f32 %v1024, %v1033
        %v1043 = vmul.f32 %v1028, %v1037
        %v1044 = vmul.f32 %v1025, %v1033
        %v1045 = vmul.f32 %v1029, %v1037
        %1046 = vrot.lane.b32.xlu0 %v864, 126
        %v1047 = vpop.permute.xlu0 %1046
        %1048 = vrot.lane.b32.xlu0 %v866, 126
        %v1049 = vpop.permute.xlu0 %1048
        %1050 = vrot.lane.b32.xlu0 %v868, 126
        %v1051 = vpop.permute.xlu0 %1050
        %1052 = vrot.lane.b32.xlu0 %v870, 126
        %v1053 = vpop.permute.xlu0 %1052
        %1054 = vrot.lane.b32.xlu0 %v865, 126
        %v1055 = vpop.permute.xlu0 %1054
        %1056 = vrot.lane.b32.xlu0 %v867, 126
        %v1057 = vpop.permute.xlu0 %1056
        %1058 = vrot.lane.b32.xlu0 %v869, 126
        %v1059 = vpop.permute.xlu0 %1058
        %1060 = vrot.lane.b32.xlu0 %v871, 126
        %v1061 = vpop.permute.xlu0 %1060
        %vm1062 = vcmp.lt.s32.totalorder %v897, 126
        %v1063 = vsel %vm1062, %v1047, %v1055
        %v1064 = vsel %vm1062, %v1049, %v1057
        %v1065 = vsel %vm1062, %v1051, %v1059
        %v1066 = vsel %vm1062, %v1053, %v1061
        %v1067 = vsel %vm1062, %v1055, %v1047
        %v1068 = vsel %vm1062, %v1057, %v1049
        %v1069 = vsel %vm1062, %v1059, %v1051
        %v1070 = vsel %vm1062, %v1061, %v1053
        %v1071 = vlaneseq
        %v1072 = vshrl.u32 %v1071, 7
        %v1073 = vsub.s32 5, %v1072
        %v1074 = vrot.slane %v876, %v1073
        %v1075 = vlaneseq
        %v1076 = vshrl.u32 %v1075, 7
        %v1077 = vsub.s32 5, %v1076
        %v1078 = vrot.slane %v877, %v1077
        %v1079 = vmul.f32 %v1063, %v1074
        %v1080 = vmul.f32 %v1067, %v1078
        %v1081 = vmul.f32 %v1064, %v1074
        %v1082 = vmul.f32 %v1068, %v1078
        %v1083 = vmul.f32 %v1065, %v1074
        %v1084 = vmul.f32 %v1069, %v1078
        %v1085 = vmul.f32 %v1066, %v1074
        %v1086 = vmul.f32 %v1070, %v1078
        %1087 = vrot.lane.b32.xlu0 %v864, 125
        %v1088 = vpop.permute.xlu0 %1087
        %1089 = vrot.lane.b32.xlu0 %v866, 125
        %v1090 = vpop.permute.xlu0 %1089
        %1091 = vrot.lane.b32.xlu0 %v868, 125
        %v1092 = vpop.permute.xlu0 %1091
        %1093 = vrot.lane.b32.xlu0 %v870, 125
        %v1094 = vpop.permute.xlu0 %1093
        %1095 = vrot.lane.b32.xlu0 %v865, 125
        %v1096 = vpop.permute.xlu0 %1095
        %1097 = vrot.lane.b32.xlu0 %v867, 125
        %v1098 = vpop.permute.xlu0 %1097
        %1099 = vrot.lane.b32.xlu0 %v869, 125
        %v1100 = vpop.permute.xlu0 %1099
        %1101 = vrot.lane.b32.xlu0 %v871, 125
        %v1102 = vpop.permute.xlu0 %1101
        %vm1103 = vcmp.lt.s32.totalorder %v897, 125
        %v1104 = vsel %vm1103, %v1088, %v1096
        %v1105 = vsel %vm1103, %v1090, %v1098
        %v1106 = vsel %vm1103, %v1092, %v1100
        %v1107 = vsel %vm1103, %v1094, %v1102
        %v1108 = vsel %vm1103, %v1096, %v1088
        %v1109 = vsel %vm1103, %v1098, %v1090
        %v1110 = vsel %vm1103, %v1100, %v1092
        %v1111 = vsel %vm1103, %v1102, %v1094
        %v1112 = vlaneseq
        %v1113 = vshrl.u32 %v1112, 7
        %v1114 = vsub.s32 6, %v1113
        %v1115 = vrot.slane %v876, %v1114
        %v1116 = vlaneseq
        %v1117 = vshrl.u32 %v1116, 7
        %v1118 = vsub.s32 6, %v1117
        %v1119 = vrot.slane %v877, %v1118
        %v1120 = vmul.f32 %v1104, %v1115
        %v1121 = vmul.f32 %v1108, %v1119
        %v1122 = vmul.f32 %v1105, %v1115
        %v1123 = vmul.f32 %v1109, %v1119
        %v1124 = vmul.f32 %v1106, %v1115
        %v1125 = vmul.f32 %v1110, %v1119
        %v1126 = vmul.f32 %v1107, %v1115
        %v1127 = vmul.f32 %v1111, %v1119
        %1129 = vset.pattern.permute.xlu0 21
        %1130 = vperm.xlu0 %1129, %v872
        %v1131 = vpop.permute.xlu0 %1130
        %1134 = vset.pattern.permute.xlu0 21
        %1135 = vperm.xlu0 %1134, %v873
        %v1136 = vpop.permute.xlu0 %1135
        %1139 = vset.pattern.permute.xlu0 21
        %1140 = vperm.xlu0 %1139, %v874
        %v1141 = vpop.permute.xlu0 %1140
        %1144 = vset.pattern.permute.xlu0 21
        %1145 = vperm.xlu0 %1144, %v875
        %v1146 = vpop.permute.xlu0 %1145
        %v1148 = vmul.f32 %v915, %v1131
        %v1149 = vmul.f32 %v916, %v1131
        %v1150 = vmul.f32 %v917, %v1136
        %v1151 = vmul.f32 %v918, %v1136
        %v1152 = vmul.f32 %v919, %v1141
        %v1153 = vmul.f32 %v920, %v1141
        %v1154 = vmul.f32 %v921, %v1146
        %v1155 = vmul.f32 %v922, %v1146
        %1156 = vset.pattern.permute.xlu0 22
        %1157 = vperm.xlu0 %1156, %v872
        %v1158 = vpop.permute.xlu0 %1157
        %1160 = vset.pattern.permute.xlu0 22
        %1161 = vperm.xlu0 %1160, %v873
        %v1162 = vpop.permute.xlu0 %1161
        %1164 = vset.pattern.permute.xlu0 22
        %1165 = vperm.xlu0 %1164, %v874
        %v1166 = vpop.permute.xlu0 %1165
        %1168 = vset.pattern.permute.xlu0 22
        %1169 = vperm.xlu0 %1168, %v875
        %v1170 = vpop.permute.xlu0 %1169
        %v1172 = vmul.f32 %v956, %v1158
        %v1173 = vmul.f32 %v957, %v1158
        %v1174 = vmul.f32 %v958, %v1162
        %v1175 = vmul.f32 %v959, %v1162
        %v1176 = vmul.f32 %v960, %v1166
        %v1177 = vmul.f32 %v961, %v1166
        %v1178 = vmul.f32 %v962, %v1170
        %v1179 = vmul.f32 %v963, %v1170
        %v1180 = vadd.f32 %v1148, %v1172
        %v1181 = vadd.f32 %v1149, %v1173
        %v1182 = vadd.f32 %v1150, %v1174
        %v1183 = vadd.f32 %v1151, %v1175
        %v1184 = vadd.f32 %v1152, %v1176
        %v1185 = vadd.f32 %v1153, %v1177
        %v1186 = vadd.f32 %v1154, %v1178
        %v1187 = vadd.f32 %v1155, %v1179
        %1188 = vset.pattern.permute.xlu0 23
        %1189 = vperm.xlu0 %1188, %v872
        %v1190 = vpop.permute.xlu0 %1189
        %1192 = vset.pattern.permute.xlu0 23
        %1193 = vperm.xlu0 %1192, %v873
        %v1194 = vpop.permute.xlu0 %1193
        %1196 = vset.pattern.permute.xlu0 23
        %1197 = vperm.xlu0 %1196, %v874
        %v1198 = vpop.permute.xlu0 %1197
        %1200 = vset.pattern.permute.xlu0 23
        %1201 = vperm.xlu0 %1200, %v875
        %v1202 = vpop.permute.xlu0 %1201
        %v1204 = vmul.f32 %v997, %v1190
        %v1205 = vmul.f32 %v998, %v1190
        %v1206 = vmul.f32 %v999, %v1194
        %v1207 = vmul.f32 %v1000, %v1194
        %v1208 = vmul.f32 %v1001, %v1198
        %v1209 = vmul.f32 %v1002, %v1198
        %v1210 = vmul.f32 %v1003, %v1202
        %v1211 = vmul.f32 %v1004, %v1202
        %v1212 = vadd.f32 %v1180, %v1204
        %v1213 = vadd.f32 %v1181, %v1205
        %v1214 = vadd.f32 %v1182, %v1206
        %v1215 = vadd.f32 %v1183, %v1207
        %v1216 = vadd.f32 %v1184, %v1208
        %v1217 = vadd.f32 %v1185, %v1209
        %v1218 = vadd.f32 %v1186, %v1210
        %v1219 = vadd.f32 %v1187, %v1211
        %1220 = vset.pattern.permute.xlu0 24
        %1221 = vperm.xlu0 %1220, %v872
        %v1222 = vpop.permute.xlu0 %1221
        %1224 = vset.pattern.permute.xlu0 24
        %1225 = vperm.xlu0 %1224, %v873
        %v1226 = vpop.permute.xlu0 %1225
        %1228 = vset.pattern.permute.xlu0 24
        %1229 = vperm.xlu0 %1228, %v874
        %v1230 = vpop.permute.xlu0 %1229
        %1232 = vset.pattern.permute.xlu0 24
        %1233 = vperm.xlu0 %1232, %v875
        %v1234 = vpop.permute.xlu0 %1233
        %v1236 = vmul.f32 %v864, %v1222
        %v1237 = vmul.f32 %v865, %v1222
        %v1238 = vmul.f32 %v866, %v1226
        %v1239 = vmul.f32 %v867, %v1226
        %v1240 = vmul.f32 %v868, %v1230
        %v1241 = vmul.f32 %v869, %v1230
        %v1242 = vmul.f32 %v870, %v1234
        %v1243 = vmul.f32 %v871, %v1234
        %v1244 = vadd.f32 %v1212, %v1236
        %v1245 = vadd.f32 %v1213, %v1237
        %v1246 = vadd.f32 %v1214, %v1238
        %v1247 = vadd.f32 %v1215, %v1239
        %v1248 = vadd.f32 %v1216, %v1240
        %v1249 = vadd.f32 %v1217, %v1241
        %v1250 = vadd.f32 %v1218, %v1242
        %v1251 = vadd.f32 %v1219, %v1243
        %1252 = vset.pattern.permute.xlu0 25
        %1253 = vperm.xlu0 %1252, %v872
        %v1254 = vpop.permute.xlu0 %1253
        %1256 = vset.pattern.permute.xlu0 25
        %1257 = vperm.xlu0 %1256, %v873
        %v1258 = vpop.permute.xlu0 %1257
        %1260 = vset.pattern.permute.xlu0 25
        %1261 = vperm.xlu0 %1260, %v874
        %v1262 = vpop.permute.xlu0 %1261
        %1264 = vset.pattern.permute.xlu0 25
        %1265 = vperm.xlu0 %1264, %v875
        %v1266 = vpop.permute.xlu0 %1265
        %v1268 = vmul.f32 %v1038, %v1254
        %v1269 = vmul.f32 %v1039, %v1254
        %v1270 = vmul.f32 %v1040, %v1258
        %v1271 = vmul.f32 %v1041, %v1258
        %v1272 = vmul.f32 %v1042, %v1262
        %v1273 = vmul.f32 %v1043, %v1262
        %v1274 = vmul.f32 %v1044, %v1266
        %v1275 = vmul.f32 %v1045, %v1266
        %v1276 = vadd.f32 %v1244, %v1268
        %v1277 = vadd.f32 %v1245, %v1269
        %v1278 = vadd.f32 %v1246, %v1270
        %v1279 = vadd.f32 %v1247, %v1271
        %v1280 = vadd.f32 %v1248, %v1272
        %v1281 = vadd.f32 %v1249, %v1273
        %v1282 = vadd.f32 %v1250, %v1274
        %v1283 = vadd.f32 %v1251, %v1275
        %1284 = vset.pattern.permute.xlu0 26
        %1285 = vperm.xlu0 %1284, %v872
        %v1286 = vpop.permute.xlu0 %1285
        %1288 = vset.pattern.permute.xlu0 26
        %1289 = vperm.xlu0 %1288, %v873
        %v1290 = vpop.permute.xlu0 %1289
        %1292 = vset.pattern.permute.xlu0 26
        %1293 = vperm.xlu0 %1292, %v874
        %v1294 = vpop.permute.xlu0 %1293
        %1296 = vset.pattern.permute.xlu0 26
        %1297 = vperm.xlu0 %1296, %v875
        %v1298 = vpop.permute.xlu0 %1297
        %v1300 = vmul.f32 %v1079, %v1286
        %v1301 = vmul.f32 %v1080, %v1286
        %v1302 = vmul.f32 %v1081, %v1290
        %v1303 = vmul.f32 %v1082, %v1290
        %v1304 = vmul.f32 %v1083, %v1294
        %v1305 = vmul.f32 %v1084, %v1294
        %v1306 = vmul.f32 %v1085, %v1298
        %v1307 = vmul.f32 %v1086, %v1298
        %v1308 = vadd.f32 %v1276, %v1300
        %v1309 = vadd.f32 %v1277, %v1301
        %v1310 = vadd.f32 %v1278, %v1302
        %v1311 = vadd.f32 %v1279, %v1303
        %v1312 = vadd.f32 %v1280, %v1304
        %v1313 = vadd.f32 %v1281, %v1305
        %v1314 = vadd.f32 %v1282, %v1306
        %v1315 = vadd.f32 %v1283, %v1307
        %1316 = vset.pattern.permute.xlu0 27
        %1317 = vperm.xlu0 %1316, %v872
        %v1318 = vpop.permute.xlu0 %1317
        %1320 = vset.pattern.permute.xlu0 27
        %1321 = vperm.xlu0 %1320, %v873
        %v1322 = vpop.permute.xlu0 %1321
        %1324 = vset.pattern.permute.xlu0 27
        %1325 = vperm.xlu0 %1324, %v874
        %v1326 = vpop.permute.xlu0 %1325
        %1328 = vset.pattern.permute.xlu0 27
        %1329 = vperm.xlu0 %1328, %v875
        %v1330 = vpop.permute.xlu0 %1329
        %v1332 = vmul.f32 %v1120, %v1318
        %v1333 = vmul.f32 %v1121, %v1318
        %v1334 = vmul.f32 %v1122, %v1322
        %v1335 = vmul.f32 %v1123, %v1322
        %v1336 = vmul.f32 %v1124, %v1326
        %v1337 = vmul.f32 %v1125, %v1326
        %v1338 = vmul.f32 %v1126, %v1330
        %v1339 = vmul.f32 %v1127, %v1330
        %v1340 = vadd.f32 %v1308, %v1332
        %v1341 = vadd.f32 %v1309, %v1333
        %v1342 = vadd.f32 %v1310, %v1334
        %v1343 = vadd.f32 %v1311, %v1335
        %v1344 = vadd.f32 %v1312, %v1336
        %v1345 = vadd.f32 %v1313, %v1337
        %v1346 = vadd.f32 %v1314, %v1338
        %v1347 = vadd.f32 %v1315, %v1339
        %1348 = vset.pattern.permute.xlu0 0
        %1349 = vperm.xlu0 %1348, %v872
        %v1350 = vpop.permute.xlu0 %1349
        %1352 = vset.pattern.permute.xlu0 0
        %1353 = vperm.xlu0 %1352, %v873
        %v1354 = vpop.permute.xlu0 %1353
        %1356 = vset.pattern.permute.xlu0 0
        %1357 = vperm.xlu0 %1356, %v874
        %v1358 = vpop.permute.xlu0 %1357
        %1360 = vset.pattern.permute.xlu0 0
        %1361 = vperm.xlu0 %1360, %v875
        %v1362 = vpop.permute.xlu0 %1361
        %v1364 = vmul.f32 %v915, %v1350
        %v1365 = vmul.f32 %v916, %v1350
        %v1366 = vmul.f32 %v917, %v1354
        %v1367 = vmul.f32 %v918, %v1354
        %v1368 = vmul.f32 %v919, %v1358
        %v1369 = vmul.f32 %v920, %v1358
        %v1370 = vmul.f32 %v921, %v1362
        %v1371 = vmul.f32 %v922, %v1362
        %1372 = vset.pattern.permute.xlu0 1
        %1373 = vperm.xlu0 %1372, %v872
        %v1374 = vpop.permute.xlu0 %1373
        %1376 = vset.pattern.permute.xlu0 1
        %1377 = vperm.xlu0 %1376, %v873
        %v1378 = vpop.permute.xlu0 %1377
        %1380 = vset.pattern.permute.xlu0 1
        %1381 = vperm.xlu0 %1380, %v874
        %v1382 = vpop.permute.xlu0 %1381
        %1384 = vset.pattern.permute.xlu0 1
        %1385 = vperm.xlu0 %1384, %v875
        %v1386 = vpop.permute.xlu0 %1385
        %v1388 = vmul.f32 %v956, %v1374
        %v1389 = vmul.f32 %v957, %v1374
        %v1390 = vmul.f32 %v958, %v1378
        %v1391 = vmul.f32 %v959, %v1378
        %v1392 = vmul.f32 %v960, %v1382
        %v1393 = vmul.f32 %v961, %v1382
        %v1394 = vmul.f32 %v962, %v1386
        %v1395 = vmul.f32 %v963, %v1386
        %v1396 = vadd.f32 %v1364, %v1388
        %v1397 = vadd.f32 %v1365, %v1389
        %v1398 = vadd.f32 %v1366, %v1390
        %v1399 = vadd.f32 %v1367, %v1391
        %v1400 = vadd.f32 %v1368, %v1392
        %v1401 = vadd.f32 %v1369, %v1393
        %v1402 = vadd.f32 %v1370, %v1394
        %v1403 = vadd.f32 %v1371, %v1395
        %1404 = vset.pattern.permute.xlu0 2
        %1405 = vperm.xlu0 %1404, %v872
        %v1406 = vpop.permute.xlu0 %1405
        %1408 = vset.pattern.permute.xlu0 2
        %1409 = vperm.xlu0 %1408, %v873
        %v1410 = vpop.permute.xlu0 %1409
        %1412 = vset.pattern.permute.xlu0 2
        %1413 = vperm.xlu0 %1412, %v874
        %v1414 = vpop.permute.xlu0 %1413
        %1416 = vset.pattern.permute.xlu0 2
        %1417 = vperm.xlu0 %1416, %v875
        %v1418 = vpop.permute.xlu0 %1417
        %v1420 = vmul.f32 %v997, %v1406
        %v1421 = vmul.f32 %v998, %v1406
        %v1422 = vmul.f32 %v999, %v1410
        %v1423 = vmul.f32 %v1000, %v1410
        %v1424 = vmul.f32 %v1001, %v1414
        %v1425 = vmul.f32 %v1002, %v1414
        %v1426 = vmul.f32 %v1003, %v1418
        %v1427 = vmul.f32 %v1004, %v1418
        %v1428 = vadd.f32 %v1396, %v1420
        %v1429 = vadd.f32 %v1397, %v1421
        %v1430 = vadd.f32 %v1398, %v1422
        %v1431 = vadd.f32 %v1399, %v1423
        %v1432 = vadd.f32 %v1400, %v1424
        %v1433 = vadd.f32 %v1401, %v1425
        %v1434 = vadd.f32 %v1402, %v1426
        %v1435 = vadd.f32 %v1403, %v1427
        %1436 = vset.pattern.permute.xlu0 3
        %1437 = vperm.xlu0 %1436, %v872
        %v1438 = vpop.permute.xlu0 %1437
        %1440 = vset.pattern.permute.xlu0 3
        %1441 = vperm.xlu0 %1440, %v873
        %v1442 = vpop.permute.xlu0 %1441
        %1444 = vset.pattern.permute.xlu0 3
        %1445 = vperm.xlu0 %1444, %v874
        %v1446 = vpop.permute.xlu0 %1445
        %1448 = vset.pattern.permute.xlu0 3
        %1449 = vperm.xlu0 %1448, %v875
        %v1450 = vpop.permute.xlu0 %1449
        %v1452 = vmul.f32 %v864, %v1438
        %v1453 = vmul.f32 %v865, %v1438
        %v1454 = vmul.f32 %v866, %v1442
        %v1455 = vmul.f32 %v867, %v1442
        %v1456 = vmul.f32 %v868, %v1446
        %v1457 = vmul.f32 %v869, %v1446
        %v1458 = vmul.f32 %v870, %v1450
        %v1459 = vmul.f32 %v871, %v1450
        %v1460 = vadd.f32 %v1428, %v1452
        %v1461 = vadd.f32 %v1429, %v1453
        %v1462 = vadd.f32 %v1430, %v1454
        %v1463 = vadd.f32 %v1431, %v1455
        %v1464 = vadd.f32 %v1432, %v1456
        %v1465 = vadd.f32 %v1433, %v1457
        %v1466 = vadd.f32 %v1434, %v1458
        %v1467 = vadd.f32 %v1435, %v1459
        %1468 = vset.pattern.permute.xlu0 4
        %1469 = vperm.xlu0 %1468, %v872
        %v1470 = vpop.permute.xlu0 %1469
        %1472 = vset.pattern.permute.xlu0 4
        %1473 = vperm.xlu0 %1472, %v873
        %v1474 = vpop.permute.xlu0 %1473
        %1476 = vset.pattern.permute.xlu0 4
        %1477 = vperm.xlu0 %1476, %v874
        %v1478 = vpop.permute.xlu0 %1477
        %1480 = vset.pattern.permute.xlu0 4
        %1481 = vperm.xlu0 %1480, %v875
        %v1482 = vpop.permute.xlu0 %1481
        %v1484 = vmul.f32 %v1038, %v1470
        %v1485 = vmul.f32 %v1039, %v1470
        %v1486 = vmul.f32 %v1040, %v1474
        %v1487 = vmul.f32 %v1041, %v1474
        %v1488 = vmul.f32 %v1042, %v1478
        %v1489 = vmul.f32 %v1043, %v1478
        %v1490 = vmul.f32 %v1044, %v1482
        %v1491 = vmul.f32 %v1045, %v1482
        %v1492 = vadd.f32 %v1460, %v1484
        %v1493 = vadd.f32 %v1461, %v1485
        %v1494 = vadd.f32 %v1462, %v1486
        %v1495 = vadd.f32 %v1463, %v1487
        %v1496 = vadd.f32 %v1464, %v1488
        %v1497 = vadd.f32 %v1465, %v1489
        %v1498 = vadd.f32 %v1466, %v1490
        %v1499 = vadd.f32 %v1467, %v1491
        %1500 = vset.pattern.permute.xlu0 5
        %1501 = vperm.xlu0 %1500, %v872
        %v1502 = vpop.permute.xlu0 %1501
        %1504 = vset.pattern.permute.xlu0 5
        %1505 = vperm.xlu0 %1504, %v873
        %v1506 = vpop.permute.xlu0 %1505
        %1508 = vset.pattern.permute.xlu0 5
        %1509 = vperm.xlu0 %1508, %v874
        %v1510 = vpop.permute.xlu0 %1509
        %1512 = vset.pattern.permute.xlu0 5
        %1513 = vperm.xlu0 %1512, %v875
        %v1514 = vpop.permute.xlu0 %1513
        %v1516 = vmul.f32 %v1079, %v1502
        %v1517 = vmul.f32 %v1080, %v1502
        %v1518 = vmul.f32 %v1081, %v1506
        %v1519 = vmul.f32 %v1082, %v1506
        %v1520 = vmul.f32 %v1083, %v1510
        %v1521 = vmul.f32 %v1084, %v1510
        %v1522 = vmul.f32 %v1085, %v1514
        %v1523 = vmul.f32 %v1086, %v1514
        %v1524 = vadd.f32 %v1492, %v1516
        %v1525 = vadd.f32 %v1493, %v1517
        %v1526 = vadd.f32 %v1494, %v1518
        %v1527 = vadd.f32 %v1495, %v1519
        %v1528 = vadd.f32 %v1496, %v1520
        %v1529 = vadd.f32 %v1497, %v1521
        %v1530 = vadd.f32 %v1498, %v1522
        %v1531 = vadd.f32 %v1499, %v1523
        %1532 = vset.pattern.permute.xlu0 6
        %1533 = vperm.xlu0 %1532, %v872
        %v1534 = vpop.permute.xlu0 %1533
        %1536 = vset.pattern.permute.xlu0 6
        %1537 = vperm.xlu0 %1536, %v873
        %v1538 = vpop.permute.xlu0 %1537
        %1540 = vset.pattern.permute.xlu0 6
        %1541 = vperm.xlu0 %1540, %v874
        %v1542 = vpop.permute.xlu0 %1541
        %1544 = vset.pattern.permute.xlu0 6
        %1545 = vperm.xlu0 %1544, %v875
        %v1546 = vpop.permute.xlu0 %1545
        %v1548 = vmul.f32 %v1120, %v1534
        %v1549 = vmul.f32 %v1121, %v1534
        %v1550 = vmul.f32 %v1122, %v1538
        %v1551 = vmul.f32 %v1123, %v1538
        %v1552 = vmul.f32 %v1124, %v1542
        %v1553 = vmul.f32 %v1125, %v1542
        %v1554 = vmul.f32 %v1126, %v1546
        %v1555 = vmul.f32 %v1127, %v1546
        %v1556 = vadd.f32 %v1524, %v1548
        %v1557 = vadd.f32 %v1525, %v1549
        %v1558 = vadd.f32 %v1526, %v1550
        %v1559 = vadd.f32 %v1527, %v1551
        %v1560 = vadd.f32 %v1528, %v1552
        %v1561 = vadd.f32 %v1529, %v1553
        %v1562 = vadd.f32 %v1530, %v1554
        %v1563 = vadd.f32 %v1531, %v1555
        %1564 = vrot.lane.b32.xlu0 %v1556, 48
        %v1565 = vpop.permute.xlu0 %1564
        %1566 = vrot.lane.b32.xlu0 %v1558, 48
        %v1567 = vpop.permute.xlu0 %1566
        %1568 = vrot.lane.b32.xlu0 %v1560, 48
        %v1569 = vpop.permute.xlu0 %1568
        %1570 = vrot.lane.b32.xlu0 %v1562, 48
        %v1571 = vpop.permute.xlu0 %1570
        %1572 = vrot.lane.b32.xlu0 %v1557, 48
        %v1573 = vpop.permute.xlu0 %1572
        %1574 = vrot.lane.b32.xlu0 %v1559, 48
        %v1575 = vpop.permute.xlu0 %1574
        %1576 = vrot.lane.b32.xlu0 %v1561, 48
        %v1577 = vpop.permute.xlu0 %1576
        %1578 = vrot.lane.b32.xlu0 %v1563, 48
        %v1579 = vpop.permute.xlu0 %1578
        %vm1580 = vcmp.lt.s32.totalorder %v897, 48
        %v1581 = vsel %vm1580, %v1565, %v1573
        %v1582 = vsel %vm1580, %v1567, %v1575
        %v1583 = vsel %vm1580, %v1569, %v1577
        %v1584 = vsel %vm1580, %v1571, %v1579
        %v1585 = vsel %vm1580, %v1573, %v1565
        %v1586 = vsel %vm1580, %v1575, %v1567
        %v1587 = vsel %vm1580, %v1577, %v1569
        %v1588 = vsel %vm1580, %v1579, %v1571
        %v1589 = vlaneseq
        %v1590 = vshrl.u32 %v1589, 7
        %v1591 = vsub.s32 0, %v1590
        %v1592 = vrot.slane %v878, %v1591
        %v1593 = vlaneseq
        %v1594 = vshrl.u32 %v1593, 7
        %v1595 = vsub.s32 0, %v1594
        %v1596 = vrot.slane %v879, %v1595
        %v1597 = vmul.f32 %v1585, %v1592
        %v1598 = vmul.f32 %v1581, %v1596
        %v1599 = vmul.f32 %v1586, %v1592
        %v1600 = vmul.f32 %v1582, %v1596
        %v1601 = vmul.f32 %v1587, %v1592
        %v1602 = vmul.f32 %v1583, %v1596
        %v1603 = vmul.f32 %v1588, %v1592
        %v1604 = vmul.f32 %v1584, %v1596
        %v1605 = vadd.f32 %v1340, %v1597
        %v1606 = vadd.f32 %v1341, %v1598
        %v1607 = vadd.f32 %v1342, %v1599
        %v1608 = vadd.f32 %v1343, %v1600
        %v1609 = vadd.f32 %v1344, %v1601
        %v1610 = vadd.f32 %v1345, %v1602
        %v1611 = vadd.f32 %v1346, %v1603
        %v1612 = vadd.f32 %v1347, %v1604
        %1613 = vset.pattern.permute.xlu0 7
        %1614 = vperm.xlu0 %1613, %v872
        %v1615 = vpop.permute.xlu0 %1614
        %1617 = vset.pattern.permute.xlu0 7
        %1618 = vperm.xlu0 %1617, %v873
        %v1619 = vpop.permute.xlu0 %1618
        %1621 = vset.pattern.permute.xlu0 7
        %1622 = vperm.xlu0 %1621, %v874
        %v1623 = vpop.permute.xlu0 %1622
        %1625 = vset.pattern.permute.xlu0 7
        %1626 = vperm.xlu0 %1625, %v875
        %v1627 = vpop.permute.xlu0 %1626
        %v1629 = vmul.f32 %v915, %v1615
        %v1630 = vmul.f32 %v916, %v1615
        %v1631 = vmul.f32 %v917, %v1619
        %v1632 = vmul.f32 %v918, %v1619
        %v1633 = vmul.f32 %v919, %v1623
        %v1634 = vmul.f32 %v920, %v1623
        %v1635 = vmul.f32 %v921, %v1627
        %v1636 = vmul.f32 %v922, %v1627
        %1637 = vset.pattern.permute.xlu0 8
        %1638 = vperm.xlu0 %1637, %v872
        %v1639 = vpop.permute.xlu0 %1638
        %1641 = vset.pattern.permute.xlu0 8
        %1642 = vperm.xlu0 %1641, %v873
        %v1643 = vpop.permute.xlu0 %1642
        %1645 = vset.pattern.permute.xlu0 8
        %1646 = vperm.xlu0 %1645, %v874
        %v1647 = vpop.permute.xlu0 %1646
        %1649 = vset.pattern.permute.xlu0 8
        %1650 = vperm.xlu0 %1649, %v875
        %v1651 = vpop.permute.xlu0 %1650
        %v1653 = vmul.f32 %v956, %v1639
        %v1654 = vmul.f32 %v957, %v1639
        %v1655 = vmul.f32 %v958, %v1643
        %v1656 = vmul.f32 %v959, %v1643
        %v1657 = vmul.f32 %v960, %v1647
        %v1658 = vmul.f32 %v961, %v1647
        %v1659 = vmul.f32 %v962, %v1651
        %v1660 = vmul.f32 %v963, %v1651
        %v1661 = vadd.f32 %v1629, %v1653
        %v1662 = vadd.f32 %v1630, %v1654
        %v1663 = vadd.f32 %v1631, %v1655
        %v1664 = vadd.f32 %v1632, %v1656
        %v1665 = vadd.f32 %v1633, %v1657
        %v1666 = vadd.f32 %v1634, %v1658
        %v1667 = vadd.f32 %v1635, %v1659
        %v1668 = vadd.f32 %v1636, %v1660
        %1669 = vset.pattern.permute.xlu0 9
        %1670 = vperm.xlu0 %1669, %v872
        %v1671 = vpop.permute.xlu0 %1670
        %1673 = vset.pattern.permute.xlu0 9
        %1674 = vperm.xlu0 %1673, %v873
        %v1675 = vpop.permute.xlu0 %1674
        %1677 = vset.pattern.permute.xlu0 9
        %1678 = vperm.xlu0 %1677, %v874
        %v1679 = vpop.permute.xlu0 %1678
        %1681 = vset.pattern.permute.xlu0 9
        %1682 = vperm.xlu0 %1681, %v875
        %v1683 = vpop.permute.xlu0 %1682
        %v1685 = vmul.f32 %v997, %v1671
        %v1686 = vmul.f32 %v998, %v1671
        %v1687 = vmul.f32 %v999, %v1675
        %v1688 = vmul.f32 %v1000, %v1675
        %v1689 = vmul.f32 %v1001, %v1679
        %v1690 = vmul.f32 %v1002, %v1679
        %v1691 = vmul.f32 %v1003, %v1683
        %v1692 = vmul.f32 %v1004, %v1683
        %v1693 = vadd.f32 %v1661, %v1685
        %v1694 = vadd.f32 %v1662, %v1686
        %v1695 = vadd.f32 %v1663, %v1687
        %v1696 = vadd.f32 %v1664, %v1688
        %v1697 = vadd.f32 %v1665, %v1689
        %v1698 = vadd.f32 %v1666, %v1690
        %v1699 = vadd.f32 %v1667, %v1691
        %v1700 = vadd.f32 %v1668, %v1692
        %1701 = vset.pattern.permute.xlu0 10
        %1702 = vperm.xlu0 %1701, %v872
        %v1703 = vpop.permute.xlu0 %1702
        %1705 = vset.pattern.permute.xlu0 10
        %1706 = vperm.xlu0 %1705, %v873
        %v1707 = vpop.permute.xlu0 %1706
        %1709 = vset.pattern.permute.xlu0 10
        %1710 = vperm.xlu0 %1709, %v874
        %v1711 = vpop.permute.xlu0 %1710
        %1713 = vset.pattern.permute.xlu0 10
        %1714 = vperm.xlu0 %1713, %v875
        %v1715 = vpop.permute.xlu0 %1714
        %v1717 = vmul.f32 %v864, %v1703
        %v1718 = vmul.f32 %v865, %v1703
        %v1719 = vmul.f32 %v866, %v1707
        %v1720 = vmul.f32 %v867, %v1707
        %v1721 = vmul.f32 %v868, %v1711
        %v1722 = vmul.f32 %v869, %v1711
        %v1723 = vmul.f32 %v870, %v1715
        %v1724 = vmul.f32 %v871, %v1715
        %v1725 = vadd.f32 %v1693, %v1717
        %v1726 = vadd.f32 %v1694, %v1718
        %v1727 = vadd.f32 %v1695, %v1719
        %v1728 = vadd.f32 %v1696, %v1720
        %v1729 = vadd.f32 %v1697, %v1721
        %v1730 = vadd.f32 %v1698, %v1722
        %v1731 = vadd.f32 %v1699, %v1723
        %v1732 = vadd.f32 %v1700, %v1724
        %1733 = vset.pattern.permute.xlu0 11
        %1734 = vperm.xlu0 %1733, %v872
        %v1735 = vpop.permute.xlu0 %1734
        %1737 = vset.pattern.permute.xlu0 11
        %1738 = vperm.xlu0 %1737, %v873
        %v1739 = vpop.permute.xlu0 %1738
        %1741 = vset.pattern.permute.xlu0 11
        %1742 = vperm.xlu0 %1741, %v874
        %v1743 = vpop.permute.xlu0 %1742
        %1745 = vset.pattern.permute.xlu0 11
        %1746 = vperm.xlu0 %1745, %v875
        %v1747 = vpop.permute.xlu0 %1746
        %v1749 = vmul.f32 %v1038, %v1735
        %v1750 = vmul.f32 %v1039, %v1735
        %v1751 = vmul.f32 %v1040, %v1739
        %v1752 = vmul.f32 %v1041, %v1739
        %v1753 = vmul.f32 %v1042, %v1743
        %v1754 = vmul.f32 %v1043, %v1743
        %v1755 = vmul.f32 %v1044, %v1747
        %v1756 = vmul.f32 %v1045, %v1747
        %v1757 = vadd.f32 %v1725, %v1749
        %v1758 = vadd.f32 %v1726, %v1750
        %v1759 = vadd.f32 %v1727, %v1751
        %v1760 = vadd.f32 %v1728, %v1752
        %v1761 = vadd.f32 %v1729, %v1753
        %v1762 = vadd.f32 %v1730, %v1754
        %v1763 = vadd.f32 %v1731, %v1755
        %v1764 = vadd.f32 %v1732, %v1756
        %1765 = vset.pattern.permute.xlu0 12
        %1766 = vperm.xlu0 %1765, %v872
        %v1767 = vpop.permute.xlu0 %1766
        %1769 = vset.pattern.permute.xlu0 12
        %1770 = vperm.xlu0 %1769, %v873
        %v1771 = vpop.permute.xlu0 %1770
        %1773 = vset.pattern.permute.xlu0 12
        %1774 = vperm.xlu0 %1773, %v874
        %v1775 = vpop.permute.xlu0 %1774
        %1777 = vset.pattern.permute.xlu0 12
        %1778 = vperm.xlu0 %1777, %v875
        %v1779 = vpop.permute.xlu0 %1778
        %v1781 = vmul.f32 %v1079, %v1767
        %v1782 = vmul.f32 %v1080, %v1767
        %v1783 = vmul.f32 %v1081, %v1771
        %v1784 = vmul.f32 %v1082, %v1771
        %v1785 = vmul.f32 %v1083, %v1775
        %v1786 = vmul.f32 %v1084, %v1775
        %v1787 = vmul.f32 %v1085, %v1779
        %v1788 = vmul.f32 %v1086, %v1779
        %v1789 = vadd.f32 %v1757, %v1781
        %v1790 = vadd.f32 %v1758, %v1782
        %v1791 = vadd.f32 %v1759, %v1783
        %v1792 = vadd.f32 %v1760, %v1784
        %v1793 = vadd.f32 %v1761, %v1785
        %v1794 = vadd.f32 %v1762, %v1786
        %v1795 = vadd.f32 %v1763, %v1787
        %v1796 = vadd.f32 %v1764, %v1788
        %1797 = vset.pattern.permute.xlu0 13
        %1798 = vperm.xlu0 %1797, %v872
        %v1799 = vpop.permute.xlu0 %1798
        %1801 = vset.pattern.permute.xlu0 13
        %1802 = vperm.xlu0 %1801, %v873
        %v1803 = vpop.permute.xlu0 %1802
        %1805 = vset.pattern.permute.xlu0 13
        %1806 = vperm.xlu0 %1805, %v874
        %v1807 = vpop.permute.xlu0 %1806
        %1809 = vset.pattern.permute.xlu0 13
        %1810 = vperm.xlu0 %1809, %v875
        %v1811 = vpop.permute.xlu0 %1810
        %v1813 = vmul.f32 %v1120, %v1799
        %v1814 = vmul.f32 %v1121, %v1799
        %v1815 = vmul.f32 %v1122, %v1803
        %v1816 = vmul.f32 %v1123, %v1803
        %v1817 = vmul.f32 %v1124, %v1807
        %v1818 = vmul.f32 %v1125, %v1807
        %v1819 = vmul.f32 %v1126, %v1811
        %v1820 = vmul.f32 %v1127, %v1811
        %v1821 = vadd.f32 %v1789, %v1813
        %v1822 = vadd.f32 %v1790, %v1814
        %v1823 = vadd.f32 %v1791, %v1815
        %v1824 = vadd.f32 %v1792, %v1816
        %v1825 = vadd.f32 %v1793, %v1817
        %v1826 = vadd.f32 %v1794, %v1818
        %v1827 = vadd.f32 %v1795, %v1819
        %v1828 = vadd.f32 %v1796, %v1820
        %1829 = vrot.lane.b32.xlu0 %v1821, 32
        %v1830 = vpop.permute.xlu0 %1829
        %1831 = vrot.lane.b32.xlu0 %v1823, 32
        %v1832 = vpop.permute.xlu0 %1831
        %1833 = vrot.lane.b32.xlu0 %v1825, 32
        %v1834 = vpop.permute.xlu0 %1833
        %1835 = vrot.lane.b32.xlu0 %v1827, 32
        %v1836 = vpop.permute.xlu0 %1835
        %1837 = vrot.lane.b32.xlu0 %v1822, 32
        %v1838 = vpop.permute.xlu0 %1837
        %1839 = vrot.lane.b32.xlu0 %v1824, 32
        %v1840 = vpop.permute.xlu0 %1839
        %1841 = vrot.lane.b32.xlu0 %v1826, 32
        %v1842 = vpop.permute.xlu0 %1841
        %1843 = vrot.lane.b32.xlu0 %v1828, 32
        %v1844 = vpop.permute.xlu0 %1843
        %vm1845 = vcmp.lt.s32.totalorder %v897, 32
        %v1846 = vsel %vm1845, %v1830, %v1838
        %v1847 = vsel %vm1845, %v1832, %v1840
        %v1848 = vsel %vm1845, %v1834, %v1842
        %v1849 = vsel %vm1845, %v1836, %v1844
        %v1850 = vsel %vm1845, %v1838, %v1830
        %v1851 = vsel %vm1845, %v1840, %v1832
        %v1852 = vsel %vm1845, %v1842, %v1834
        %v1853 = vsel %vm1845, %v1844, %v1836
        %v1854 = vlaneseq
        %v1855 = vshrl.u32 %v1854, 7
        %v1856 = vsub.s32 1, %v1855
        %v1857 = vrot.slane %v878, %v1856
        %v1858 = vlaneseq
        %v1859 = vshrl.u32 %v1858, 7
        %v1860 = vsub.s32 1, %v1859
        %v1861 = vrot.slane %v879, %v1860
        %v1862 = vmul.f32 %v1850, %v1857
        %v1863 = vmul.f32 %v1846, %v1861
        %v1864 = vmul.f32 %v1851, %v1857
        %v1865 = vmul.f32 %v1847, %v1861
        %v1866 = vmul.f32 %v1852, %v1857
        %v1867 = vmul.f32 %v1848, %v1861
        %v1868 = vmul.f32 %v1853, %v1857
        %v1869 = vmul.f32 %v1849, %v1861
        %v1870 = vadd.f32 %v1605, %v1862
        %v1871 = vadd.f32 %v1606, %v1863
        %v1872 = vadd.f32 %v1607, %v1864
        %v1873 = vadd.f32 %v1608, %v1865
        %v1874 = vadd.f32 %v1609, %v1866
        %v1875 = vadd.f32 %v1610, %v1867
        %v1876 = vadd.f32 %v1611, %v1868
        %v1877 = vadd.f32 %v1612, %v1869
        %1878 = vset.pattern.permute.xlu0 14
        %1879 = vperm.xlu0 %1878, %v872
        %v1880 = vpop.permute.xlu0 %1879
        %1882 = vset.pattern.permute.xlu0 14
        %1883 = vperm.xlu0 %1882, %v873
        %v1884 = vpop.permute.xlu0 %1883
        %1886 = vset.pattern.permute.xlu0 14
        %1887 = vperm.xlu0 %1886, %v874
        %v1888 = vpop.permute.xlu0 %1887
        %1890 = vset.pattern.permute.xlu0 14
        %1891 = vperm.xlu0 %1890, %v875
        %v1892 = vpop.permute.xlu0 %1891
        %v1894 = vmul.f32 %v915, %v1880
        %v1895 = vmul.f32 %v916, %v1880
        %v1896 = vmul.f32 %v917, %v1884
        %v1897 = vmul.f32 %v918, %v1884
        %v1898 = vmul.f32 %v919, %v1888
        %v1899 = vmul.f32 %v920, %v1888
        %v1900 = vmul.f32 %v921, %v1892
        %v1901 = vmul.f32 %v922, %v1892
        %1902 = vset.pattern.permute.xlu0 15
        %1903 = vperm.xlu0 %1902, %v872
        %v1904 = vpop.permute.xlu0 %1903
        %1906 = vset.pattern.permute.xlu0 15
        %1907 = vperm.xlu0 %1906, %v873
        %v1908 = vpop.permute.xlu0 %1907
        %1910 = vset.pattern.permute.xlu0 15
        %1911 = vperm.xlu0 %1910, %v874
        %v1912 = vpop.permute.xlu0 %1911
        %1914 = vset.pattern.permute.xlu0 15
        %1915 = vperm.xlu0 %1914, %v875
        %v1916 = vpop.permute.xlu0 %1915
        %v1918 = vmul.f32 %v956, %v1904
        %v1919 = vmul.f32 %v957, %v1904
        %v1920 = vmul.f32 %v958, %v1908
        %v1921 = vmul.f32 %v959, %v1908
        %v1922 = vmul.f32 %v960, %v1912
        %v1923 = vmul.f32 %v961, %v1912
        %v1924 = vmul.f32 %v962, %v1916
        %v1925 = vmul.f32 %v963, %v1916
        %v1926 = vadd.f32 %v1894, %v1918
        %v1927 = vadd.f32 %v1895, %v1919
        %v1928 = vadd.f32 %v1896, %v1920
        %v1929 = vadd.f32 %v1897, %v1921
        %v1930 = vadd.f32 %v1898, %v1922
        %v1931 = vadd.f32 %v1899, %v1923
        %v1932 = vadd.f32 %v1900, %v1924
        %v1933 = vadd.f32 %v1901, %v1925
        %1934 = vset.pattern.permute.xlu0 16
        %1935 = vperm.xlu0 %1934, %v872
        %v1936 = vpop.permute.xlu0 %1935
        %1938 = vset.pattern.permute.xlu0 16
        %1939 = vperm.xlu0 %1938, %v873
        %v1940 = vpop.permute.xlu0 %1939
        %1942 = vset.pattern.permute.xlu0 16
        %1943 = vperm.xlu0 %1942, %v874
        %v1944 = vpop.permute.xlu0 %1943
        %1946 = vset.pattern.permute.xlu0 16
        %1947 = vperm.xlu0 %1946, %v875
        %v1948 = vpop.permute.xlu0 %1947
        %v1950 = vmul.f32 %v997, %v1936
        %v1951 = vmul.f32 %v998, %v1936
        %v1952 = vmul.f32 %v999, %v1940
        %v1953 = vmul.f32 %v1000, %v1940
        %v1954 = vmul.f32 %v1001, %v1944
        %v1955 = vmul.f32 %v1002, %v1944
        %v1956 = vmul.f32 %v1003, %v1948
        %v1957 = vmul.f32 %v1004, %v1948
        %v1958 = vadd.f32 %v1926, %v1950
        %v1959 = vadd.f32 %v1927, %v1951
        %v1960 = vadd.f32 %v1928, %v1952
        %v1961 = vadd.f32 %v1929, %v1953
        %v1962 = vadd.f32 %v1930, %v1954
        %v1963 = vadd.f32 %v1931, %v1955
        %v1964 = vadd.f32 %v1932, %v1956
        %v1965 = vadd.f32 %v1933, %v1957
        %1966 = vset.pattern.permute.xlu0 17
        %1967 = vperm.xlu0 %1966, %v872
        %v1968 = vpop.permute.xlu0 %1967
        %1970 = vset.pattern.permute.xlu0 17
        %1971 = vperm.xlu0 %1970, %v873
        %v1972 = vpop.permute.xlu0 %1971
        %1974 = vset.pattern.permute.xlu0 17
        %1975 = vperm.xlu0 %1974, %v874
        %v1976 = vpop.permute.xlu0 %1975
        %1978 = vset.pattern.permute.xlu0 17
        %1979 = vperm.xlu0 %1978, %v875
        %v1980 = vpop.permute.xlu0 %1979
        %v1982 = vmul.f32 %v864, %v1968
        %v1983 = vmul.f32 %v865, %v1968
        %v1984 = vmul.f32 %v866, %v1972
        %v1985 = vmul.f32 %v867, %v1972
        %v1986 = vmul.f32 %v868, %v1976
        %v1987 = vmul.f32 %v869, %v1976
        %v1988 = vmul.f32 %v870, %v1980
        %v1989 = vmul.f32 %v871, %v1980
        %v1990 = vadd.f32 %v1958, %v1982
        %v1991 = vadd.f32 %v1959, %v1983
        %v1992 = vadd.f32 %v1960, %v1984
        %v1993 = vadd.f32 %v1961, %v1985
        %v1994 = vadd.f32 %v1962, %v1986
        %v1995 = vadd.f32 %v1963, %v1987
        %v1996 = vadd.f32 %v1964, %v1988
        %v1997 = vadd.f32 %v1965, %v1989
        %1998 = vset.pattern.permute.xlu0 18
        %1999 = vperm.xlu0 %1998, %v872
        %v2000 = vpop.permute.xlu0 %1999
        %2002 = vset.pattern.permute.xlu0 18
        %2003 = vperm.xlu0 %2002, %v873
        %v2004 = vpop.permute.xlu0 %2003
        %2006 = vset.pattern.permute.xlu0 18
        %2007 = vperm.xlu0 %2006, %v874
        %v2008 = vpop.permute.xlu0 %2007
        %2010 = vset.pattern.permute.xlu0 18
        %2011 = vperm.xlu0 %2010, %v875
        %v2012 = vpop.permute.xlu0 %2011
        %v2014 = vmul.f32 %v1038, %v2000
        %v2015 = vmul.f32 %v1039, %v2000
        %v2016 = vmul.f32 %v1040, %v2004
        %v2017 = vmul.f32 %v1041, %v2004
        %v2018 = vmul.f32 %v1042, %v2008
        %v2019 = vmul.f32 %v1043, %v2008
        %v2020 = vmul.f32 %v1044, %v2012
        %v2021 = vmul.f32 %v1045, %v2012
        %v2022 = vadd.f32 %v1990, %v2014
        %v2023 = vadd.f32 %v1991, %v2015
        %v2024 = vadd.f32 %v1992, %v2016
        %v2025 = vadd.f32 %v1993, %v2017
        %v2026 = vadd.f32 %v1994, %v2018
        %v2027 = vadd.f32 %v1995, %v2019
        %v2028 = vadd.f32 %v1996, %v2020
        %v2029 = vadd.f32 %v1997, %v2021
        %2030 = vset.pattern.permute.xlu0 19
        %2031 = vperm.xlu0 %2030, %v872
        %v2032 = vpop.permute.xlu0 %2031
        %2034 = vset.pattern.permute.xlu0 19
        %2035 = vperm.xlu0 %2034, %v873
        %v2036 = vpop.permute.xlu0 %2035
        %2038 = vset.pattern.permute.xlu0 19
        %2039 = vperm.xlu0 %2038, %v874
        %v2040 = vpop.permute.xlu0 %2039
        %2042 = vset.pattern.permute.xlu0 19
        %2043 = vperm.xlu0 %2042, %v875
        %v2044 = vpop.permute.xlu0 %2043
        %v2046 = vmul.f32 %v1079, %v2032
        %v2047 = vmul.f32 %v1080, %v2032
        %v2048 = vmul.f32 %v1081, %v2036
        %v2049 = vmul.f32 %v1082, %v2036
        %v2050 = vmul.f32 %v1083, %v2040
        %v2051 = vmul.f32 %v1084, %v2040
        %v2052 = vmul.f32 %v1085, %v2044
        %v2053 = vmul.f32 %v1086, %v2044
        %v2054 = vadd.f32 %v2022, %v2046
        %v2055 = vadd.f32 %v2023, %v2047
        %v2056 = vadd.f32 %v2024, %v2048
        %v2057 = vadd.f32 %v2025, %v2049
        %v2058 = vadd.f32 %v2026, %v2050
        %v2059 = vadd.f32 %v2027, %v2051
        %v2060 = vadd.f32 %v2028, %v2052
        %v2061 = vadd.f32 %v2029, %v2053
        %2062 = vset.pattern.permute.xlu0 20
        %2063 = vperm.xlu0 %2062, %v872
        %v2064 = vpop.permute.xlu0 %2063
        %2066 = vset.pattern.permute.xlu0 20
        %2067 = vperm.xlu0 %2066, %v873
        %v2068 = vpop.permute.xlu0 %2067
        %2070 = vset.pattern.permute.xlu0 20
        %2071 = vperm.xlu0 %2070, %v874
        %v2072 = vpop.permute.xlu0 %2071
        %2074 = vset.pattern.permute.xlu0 20
        %2075 = vperm.xlu0 %2074, %v875
        %v2076 = vpop.permute.xlu0 %2075
        %v2078 = vmul.f32 %v1120, %v2064
        %v2079 = vmul.f32 %v1121, %v2064
        %v2080 = vmul.f32 %v1122, %v2068
        %v2081 = vmul.f32 %v1123, %v2068
        %v2082 = vmul.f32 %v1124, %v2072
        %v2083 = vmul.f32 %v1125, %v2072
        %v2084 = vmul.f32 %v1126, %v2076
        %v2085 = vmul.f32 %v1127, %v2076
        %v2086 = vadd.f32 %v2054, %v2078
        %v2087 = vadd.f32 %v2055, %v2079
        %v2088 = vadd.f32 %v2056, %v2080
        %v2089 = vadd.f32 %v2057, %v2081
        %v2090 = vadd.f32 %v2058, %v2082
        %v2091 = vadd.f32 %v2059, %v2083
        %v2092 = vadd.f32 %v2060, %v2084
        %v2093 = vadd.f32 %v2061, %v2085
        %2094 = vrot.lane.b32.xlu0 %v2086, 16
        %v2095 = vpop.permute.xlu0 %2094
        %2096 = vrot.lane.b32.xlu0 %v2088, 16
        %v2097 = vpop.permute.xlu0 %2096
        %2098 = vrot.lane.b32.xlu0 %v2090, 16
        %v2099 = vpop.permute.xlu0 %2098
        %2100 = vrot.lane.b32.xlu0 %v2092, 16
        %v2101 = vpop.permute.xlu0 %2100
        %2102 = vrot.lane.b32.xlu0 %v2087, 16
        %v2103 = vpop.permute.xlu0 %2102
        %2104 = vrot.lane.b32.xlu0 %v2089, 16
        %v2105 = vpop.permute.xlu0 %2104
        %2106 = vrot.lane.b32.xlu0 %v2091, 16
        %v2107 = vpop.permute.xlu0 %2106
        %2108 = vrot.lane.b32.xlu0 %v2093, 16
        %v2109 = vpop.permute.xlu0 %2108
        %vm2110 = vcmp.lt.s32.totalorder %v897, 16
        %v2111 = vsel %vm2110, %v2095, %v2103
        %v2112 = vsel %vm2110, %v2097, %v2105
        %v2113 = vsel %vm2110, %v2099, %v2107
        %v2114 = vsel %vm2110, %v2101, %v2109
        %v2115 = vsel %vm2110, %v2103, %v2095
        %v2116 = vsel %vm2110, %v2105, %v2097
        %v2117 = vsel %vm2110, %v2107, %v2099
        %v2118 = vsel %vm2110, %v2109, %v2101
        %v2119 = vlaneseq
        %v2120 = vshrl.u32 %v2119, 7
        %v2121 = vsub.s32 2, %v2120
        %v2122 = vrot.slane %v878, %v2121
        %v2123 = vlaneseq
        %v2124 = vshrl.u32 %v2123, 7
        %v2125 = vsub.s32 2, %v2124
        %v2126 = vrot.slane %v879, %v2125
        %v2127 = vmul.f32 %v2115, %v2122
        %v2128 = vmul.f32 %v2111, %v2126
        %v2129 = vmul.f32 %v2116, %v2122
        %v2130 = vmul.f32 %v2112, %v2126
        %v2131 = vmul.f32 %v2117, %v2122
        %v2132 = vmul.f32 %v2113, %v2126
        %v2133 = vmul.f32 %v2118, %v2122
        %v2134 = vmul.f32 %v2114, %v2126
        %v2135 = vadd.f32 %v1870, %v2127
        %v2136 = vadd.f32 %v1871, %v2128
        %v2137 = vadd.f32 %v1872, %v2129
        %v2138 = vadd.f32 %v1873, %v2130
        %v2139 = vadd.f32 %v1874, %v2131
        %v2140 = vadd.f32 %v1875, %v2132
        %v2141 = vadd.f32 %v1876, %v2133
        %v2142 = vadd.f32 %v1877, %v2134
        %2143 = vset.pattern.permute.xlu0 28
        %2144 = vperm.xlu0 %2143, %v872
        %v2145 = vpop.permute.xlu0 %2144
        %2147 = vset.pattern.permute.xlu0 28
        %2148 = vperm.xlu0 %2147, %v873
        %v2149 = vpop.permute.xlu0 %2148
        %2151 = vset.pattern.permute.xlu0 28
        %2152 = vperm.xlu0 %2151, %v874
        %v2153 = vpop.permute.xlu0 %2152
        %2155 = vset.pattern.permute.xlu0 28
        %2156 = vperm.xlu0 %2155, %v875
        %v2157 = vpop.permute.xlu0 %2156
        %v2159 = vmul.f32 %v915, %v2145
        %v2160 = vmul.f32 %v916, %v2145
        %v2161 = vmul.f32 %v917, %v2149
        %v2162 = vmul.f32 %v918, %v2149
        %v2163 = vmul.f32 %v919, %v2153
        %v2164 = vmul.f32 %v920, %v2153
        %v2165 = vmul.f32 %v921, %v2157
        %v2166 = vmul.f32 %v922, %v2157
        %2167 = vset.pattern.permute.xlu0 29
        %2168 = vperm.xlu0 %2167, %v872
        %v2169 = vpop.permute.xlu0 %2168
        %2171 = vset.pattern.permute.xlu0 29
        %2172 = vperm.xlu0 %2171, %v873
        %v2173 = vpop.permute.xlu0 %2172
        %2175 = vset.pattern.permute.xlu0 29
        %2176 = vperm.xlu0 %2175, %v874
        %v2177 = vpop.permute.xlu0 %2176
        %2179 = vset.pattern.permute.xlu0 29
        %2180 = vperm.xlu0 %2179, %v875
        %v2181 = vpop.permute.xlu0 %2180
        %v2183 = vmul.f32 %v956, %v2169
        %v2184 = vmul.f32 %v957, %v2169
        %v2185 = vmul.f32 %v958, %v2173
        %v2186 = vmul.f32 %v959, %v2173
        %v2187 = vmul.f32 %v960, %v2177
        %v2188 = vmul.f32 %v961, %v2177
        %v2189 = vmul.f32 %v962, %v2181
        %v2190 = vmul.f32 %v963, %v2181
        %v2191 = vadd.f32 %v2159, %v2183
        %v2192 = vadd.f32 %v2160, %v2184
        %v2193 = vadd.f32 %v2161, %v2185
        %v2194 = vadd.f32 %v2162, %v2186
        %v2195 = vadd.f32 %v2163, %v2187
        %v2196 = vadd.f32 %v2164, %v2188
        %v2197 = vadd.f32 %v2165, %v2189
        %v2198 = vadd.f32 %v2166, %v2190
        %2199 = vset.pattern.permute.xlu0 30
        %2200 = vperm.xlu0 %2199, %v872
        %v2201 = vpop.permute.xlu0 %2200
        %2203 = vset.pattern.permute.xlu0 30
        %2204 = vperm.xlu0 %2203, %v873
        %v2205 = vpop.permute.xlu0 %2204
        %2207 = vset.pattern.permute.xlu0 30
        %2208 = vperm.xlu0 %2207, %v874
        %v2209 = vpop.permute.xlu0 %2208
        %2211 = vset.pattern.permute.xlu0 30
        %2212 = vperm.xlu0 %2211, %v875
        %v2213 = vpop.permute.xlu0 %2212
        %v2215 = vmul.f32 %v997, %v2201
        %v2216 = vmul.f32 %v998, %v2201
        %v2217 = vmul.f32 %v999, %v2205
        %v2218 = vmul.f32 %v1000, %v2205
        %v2219 = vmul.f32 %v1001, %v2209
        %v2220 = vmul.f32 %v1002, %v2209
        %v2221 = vmul.f32 %v1003, %v2213
        %v2222 = vmul.f32 %v1004, %v2213
        %v2223 = vadd.f32 %v2191, %v2215
        %v2224 = vadd.f32 %v2192, %v2216
        %v2225 = vadd.f32 %v2193, %v2217
        %v2226 = vadd.f32 %v2194, %v2218
        %v2227 = vadd.f32 %v2195, %v2219
        %v2228 = vadd.f32 %v2196, %v2220
        %v2229 = vadd.f32 %v2197, %v2221
        %v2230 = vadd.f32 %v2198, %v2222
        %2231 = vset.pattern.permute.xlu0 31
        %2232 = vperm.xlu0 %2231, %v872
        %v2233 = vpop.permute.xlu0 %2232
        %2235 = vset.pattern.permute.xlu0 31
        %2236 = vperm.xlu0 %2235, %v873
        %v2237 = vpop.permute.xlu0 %2236
        %2239 = vset.pattern.permute.xlu0 31
        %2240 = vperm.xlu0 %2239, %v874
        %v2241 = vpop.permute.xlu0 %2240
        %2243 = vset.pattern.permute.xlu0 31
        %2244 = vperm.xlu0 %2243, %v875
        %v2245 = vpop.permute.xlu0 %2244
        %v2247 = vmul.f32 %v864, %v2233
        %v2248 = vmul.f32 %v865, %v2233
        %v2249 = vmul.f32 %v866, %v2237
        %v2250 = vmul.f32 %v867, %v2237
        %v2251 = vmul.f32 %v868, %v2241
        %v2252 = vmul.f32 %v869, %v2241
        %v2253 = vmul.f32 %v870, %v2245
        %v2254 = vmul.f32 %v871, %v2245
        %v2255 = vadd.f32 %v2223, %v2247
        %v2256 = vadd.f32 %v2224, %v2248
        %v2257 = vadd.f32 %v2225, %v2249
        %v2258 = vadd.f32 %v2226, %v2250
        %v2259 = vadd.f32 %v2227, %v2251
        %v2260 = vadd.f32 %v2228, %v2252
        %v2261 = vadd.f32 %v2229, %v2253
        %v2262 = vadd.f32 %v2230, %v2254
        %2263 = vset.pattern.permute.xlu0 32
        %2264 = vperm.xlu0 %2263, %v872
        %v2265 = vpop.permute.xlu0 %2264
        %2267 = vset.pattern.permute.xlu0 32
        %2268 = vperm.xlu0 %2267, %v873
        %v2269 = vpop.permute.xlu0 %2268
        %2271 = vset.pattern.permute.xlu0 32
        %2272 = vperm.xlu0 %2271, %v874
        %v2273 = vpop.permute.xlu0 %2272
        %2275 = vset.pattern.permute.xlu0 32
        %2276 = vperm.xlu0 %2275, %v875
        %v2277 = vpop.permute.xlu0 %2276
        %v2279 = vmul.f32 %v1038, %v2265
        %v2280 = vmul.f32 %v1039, %v2265
        %v2281 = vmul.f32 %v1040, %v2269
        %v2282 = vmul.f32 %v1041, %v2269
        %v2283 = vmul.f32 %v1042, %v2273
        %v2284 = vmul.f32 %v1043, %v2273
        %v2285 = vmul.f32 %v1044, %v2277
        %v2286 = vmul.f32 %v1045, %v2277
        %v2287 = vadd.f32 %v2255, %v2279
        %v2288 = vadd.f32 %v2256, %v2280
        %v2289 = vadd.f32 %v2257, %v2281
        %v2290 = vadd.f32 %v2258, %v2282
        %v2291 = vadd.f32 %v2259, %v2283
        %v2292 = vadd.f32 %v2260, %v2284
        %v2293 = vadd.f32 %v2261, %v2285
        %v2294 = vadd.f32 %v2262, %v2286
        %2295 = vset.pattern.permute.xlu0 33
        %2296 = vperm.xlu0 %2295, %v872
        %v2297 = vpop.permute.xlu0 %2296
        %2299 = vset.pattern.permute.xlu0 33
        %2300 = vperm.xlu0 %2299, %v873
        %v2301 = vpop.permute.xlu0 %2300
        %2303 = vset.pattern.permute.xlu0 33
        %2304 = vperm.xlu0 %2303, %v874
        %v2305 = vpop.permute.xlu0 %2304
        %2307 = vset.pattern.permute.xlu0 33
        %2308 = vperm.xlu0 %2307, %v875
        %v2309 = vpop.permute.xlu0 %2308
        %v2311 = vmul.f32 %v1079, %v2297
        %v2312 = vmul.f32 %v1080, %v2297
        %v2313 = vmul.f32 %v1081, %v2301
        %v2314 = vmul.f32 %v1082, %v2301
        %v2315 = vmul.f32 %v1083, %v2305
        %v2316 = vmul.f32 %v1084, %v2305
        %v2317 = vmul.f32 %v1085, %v2309
        %v2318 = vmul.f32 %v1086, %v2309
        %v2319 = vadd.f32 %v2287, %v2311
        %v2320 = vadd.f32 %v2288, %v2312
        %v2321 = vadd.f32 %v2289, %v2313
        %v2322 = vadd.f32 %v2290, %v2314
        %v2323 = vadd.f32 %v2291, %v2315
        %v2324 = vadd.f32 %v2292, %v2316
        %v2325 = vadd.f32 %v2293, %v2317
        %v2326 = vadd.f32 %v2294, %v2318
        %2327 = vset.pattern.permute.xlu0 34
        %2328 = vperm.xlu0 %2327, %v872
        %v2329 = vpop.permute.xlu0 %2328
        %2331 = vset.pattern.permute.xlu0 34
        %2332 = vperm.xlu0 %2331, %v873
        %v2333 = vpop.permute.xlu0 %2332
        %2335 = vset.pattern.permute.xlu0 34
        %2336 = vperm.xlu0 %2335, %v874
        %v2337 = vpop.permute.xlu0 %2336
        %2339 = vset.pattern.permute.xlu0 34
        %2340 = vperm.xlu0 %2339, %v875
        %v2341 = vpop.permute.xlu0 %2340
        %v2343 = vmul.f32 %v1120, %v2329
        %v2344 = vmul.f32 %v1121, %v2329
        %v2345 = vmul.f32 %v1122, %v2333
        %v2346 = vmul.f32 %v1123, %v2333
        %v2347 = vmul.f32 %v1124, %v2337
        %v2348 = vmul.f32 %v1125, %v2337
        %v2349 = vmul.f32 %v1126, %v2341
        %v2350 = vmul.f32 %v1127, %v2341
        %v2351 = vadd.f32 %v2319, %v2343
        %v2352 = vadd.f32 %v2320, %v2344
        %v2353 = vadd.f32 %v2321, %v2345
        %v2354 = vadd.f32 %v2322, %v2346
        %v2355 = vadd.f32 %v2323, %v2347
        %v2356 = vadd.f32 %v2324, %v2348
        %v2357 = vadd.f32 %v2325, %v2349
        %v2358 = vadd.f32 %v2326, %v2350
        %2359 = vrot.lane.b32.xlu0 %v2351, 112
        %v2360 = vpop.permute.xlu0 %2359
        %2361 = vrot.lane.b32.xlu0 %v2353, 112
        %v2362 = vpop.permute.xlu0 %2361
        %2363 = vrot.lane.b32.xlu0 %v2355, 112
        %v2364 = vpop.permute.xlu0 %2363
        %2365 = vrot.lane.b32.xlu0 %v2357, 112
        %v2366 = vpop.permute.xlu0 %2365
        %2367 = vrot.lane.b32.xlu0 %v2352, 112
        %v2368 = vpop.permute.xlu0 %2367
        %2369 = vrot.lane.b32.xlu0 %v2354, 112
        %v2370 = vpop.permute.xlu0 %2369
        %2371 = vrot.lane.b32.xlu0 %v2356, 112
        %v2372 = vpop.permute.xlu0 %2371
        %2373 = vrot.lane.b32.xlu0 %v2358, 112
        %v2374 = vpop.permute.xlu0 %2373
        %vm2375 = vcmp.lt.s32.totalorder %v897, 112
        %v2376 = vsel %vm2375, %v2360, %v2368
        %v2377 = vsel %vm2375, %v2362, %v2370
        %v2378 = vsel %vm2375, %v2364, %v2372
        %v2379 = vsel %vm2375, %v2366, %v2374
        %v2380 = vsel %vm2375, %v2368, %v2360
        %v2381 = vsel %vm2375, %v2370, %v2362
        %v2382 = vsel %vm2375, %v2372, %v2364
        %v2383 = vsel %vm2375, %v2374, %v2366
        %v2384 = vlaneseq
        %v2385 = vshrl.u32 %v2384, 7
        %v2386 = vsub.s32 4, %v2385
        %v2387 = vrot.slane %v878, %v2386
        %v2388 = vlaneseq
        %v2389 = vshrl.u32 %v2388, 7
        %v2390 = vsub.s32 4, %v2389
        %v2391 = vrot.slane %v879, %v2390
        %v2392 = vmul.f32 %v2376, %v2387
        %v2393 = vmul.f32 %v2380, %v2391
        %v2394 = vmul.f32 %v2377, %v2387
        %v2395 = vmul.f32 %v2381, %v2391
        %v2396 = vmul.f32 %v2378, %v2387
        %v2397 = vmul.f32 %v2382, %v2391
        %v2398 = vmul.f32 %v2379, %v2387
        %v2399 = vmul.f32 %v2383, %v2391
        %v2400 = vadd.f32 %v2135, %v2392
        %v2401 = vadd.f32 %v2136, %v2393
        %v2402 = vadd.f32 %v2137, %v2394
        %v2403 = vadd.f32 %v2138, %v2395
        %v2404 = vadd.f32 %v2139, %v2396
        %v2405 = vadd.f32 %v2140, %v2397
        %v2406 = vadd.f32 %v2141, %v2398
        %v2407 = vadd.f32 %v2142, %v2399
        %2408 = vset.pattern.permute.xlu0 35
        %2409 = vperm.xlu0 %2408, %v872
        %v2410 = vpop.permute.xlu0 %2409
        %2412 = vset.pattern.permute.xlu0 35
        %2413 = vperm.xlu0 %2412, %v873
        %v2414 = vpop.permute.xlu0 %2413
        %2416 = vset.pattern.permute.xlu0 35
        %2417 = vperm.xlu0 %2416, %v874
        %v2418 = vpop.permute.xlu0 %2417
        %2420 = vset.pattern.permute.xlu0 35
        %2421 = vperm.xlu0 %2420, %v875
        %v2422 = vpop.permute.xlu0 %2421
        %v2424 = vmul.f32 %v915, %v2410
        %v2425 = vmul.f32 %v916, %v2410
        %v2426 = vmul.f32 %v917, %v2414
        %v2427 = vmul.f32 %v918, %v2414
        %v2428 = vmul.f32 %v919, %v2418
        %v2429 = vmul.f32 %v920, %v2418
        %v2430 = vmul.f32 %v921, %v2422
        %v2431 = vmul.f32 %v922, %v2422
        %2432 = vset.pattern.permute.xlu0 36
        %2433 = vperm.xlu0 %2432, %v872
        %v2434 = vpop.permute.xlu0 %2433
        %2436 = vset.pattern.permute.xlu0 36
        %2437 = vperm.xlu0 %2436, %v873
        %v2438 = vpop.permute.xlu0 %2437
        %2440 = vset.pattern.permute.xlu0 36
        %2441 = vperm.xlu0 %2440, %v874
        %v2442 = vpop.permute.xlu0 %2441
        %2444 = vset.pattern.permute.xlu0 36
        %2445 = vperm.xlu0 %2444, %v875
        %v2446 = vpop.permute.xlu0 %2445
        %v2448 = vmul.f32 %v956, %v2434
        %v2449 = vmul.f32 %v957, %v2434
        %v2450 = vmul.f32 %v958, %v2438
        %v2451 = vmul.f32 %v959, %v2438
        %v2452 = vmul.f32 %v960, %v2442
        %v2453 = vmul.f32 %v961, %v2442
        %v2454 = vmul.f32 %v962, %v2446
        %v2455 = vmul.f32 %v963, %v2446
        %v2456 = vadd.f32 %v2424, %v2448
        %v2457 = vadd.f32 %v2425, %v2449
        %v2458 = vadd.f32 %v2426, %v2450
        %v2459 = vadd.f32 %v2427, %v2451
        %v2460 = vadd.f32 %v2428, %v2452
        %v2461 = vadd.f32 %v2429, %v2453
        %v2462 = vadd.f32 %v2430, %v2454
        %v2463 = vadd.f32 %v2431, %v2455
        %2464 = vset.pattern.permute.xlu0 37
        %2465 = vperm.xlu0 %2464, %v872
        %v2466 = vpop.permute.xlu0 %2465
        %2468 = vset.pattern.permute.xlu0 37
        %2469 = vperm.xlu0 %2468, %v873
        %v2470 = vpop.permute.xlu0 %2469
        %2472 = vset.pattern.permute.xlu0 37
        %2473 = vperm.xlu0 %2472, %v874
        %v2474 = vpop.permute.xlu0 %2473
        %2476 = vset.pattern.permute.xlu0 37
        %2477 = vperm.xlu0 %2476, %v875
        %v2478 = vpop.permute.xlu0 %2477
        %v2480 = vmul.f32 %v997, %v2466
        %v2481 = vmul.f32 %v998, %v2466
        %v2482 = vmul.f32 %v999, %v2470
        %v2483 = vmul.f32 %v1000, %v2470
        %v2484 = vmul.f32 %v1001, %v2474
        %v2485 = vmul.f32 %v1002, %v2474
        %v2486 = vmul.f32 %v1003, %v2478
        %v2487 = vmul.f32 %v1004, %v2478
        %v2488 = vadd.f32 %v2456, %v2480
        %v2489 = vadd.f32 %v2457, %v2481
        %v2490 = vadd.f32 %v2458, %v2482
        %v2491 = vadd.f32 %v2459, %v2483
        %v2492 = vadd.f32 %v2460, %v2484
        %v2493 = vadd.f32 %v2461, %v2485
        %v2494 = vadd.f32 %v2462, %v2486
        %v2495 = vadd.f32 %v2463, %v2487
        %2496 = vset.pattern.permute.xlu0 38
        %2497 = vperm.xlu0 %2496, %v872
        %v2498 = vpop.permute.xlu0 %2497
        %2500 = vset.pattern.permute.xlu0 38
        %2501 = vperm.xlu0 %2500, %v873
        %v2502 = vpop.permute.xlu0 %2501
        %2504 = vset.pattern.permute.xlu0 38
        %2505 = vperm.xlu0 %2504, %v874
        %v2506 = vpop.permute.xlu0 %2505
        %2508 = vset.pattern.permute.xlu0 38
        %2509 = vperm.xlu0 %2508, %v875
        %v2510 = vpop.permute.xlu0 %2509
        %v2512 = vmul.f32 %v864, %v2498
        %v2513 = vmul.f32 %v865, %v2498
        %v2514 = vmul.f32 %v866, %v2502
        %v2515 = vmul.f32 %v867, %v2502
        %v2516 = vmul.f32 %v868, %v2506
        %v2517 = vmul.f32 %v869, %v2506
        %v2518 = vmul.f32 %v870, %v2510
        %v2519 = vmul.f32 %v871, %v2510
        %v2520 = vadd.f32 %v2488, %v2512
        %v2521 = vadd.f32 %v2489, %v2513
        %v2522 = vadd.f32 %v2490, %v2514
        %v2523 = vadd.f32 %v2491, %v2515
        %v2524 = vadd.f32 %v2492, %v2516
        %v2525 = vadd.f32 %v2493, %v2517
        %v2526 = vadd.f32 %v2494, %v2518
        %v2527 = vadd.f32 %v2495, %v2519
        %2528 = vset.pattern.permute.xlu0 39
        %2529 = vperm.xlu0 %2528, %v872
        %v2530 = vpop.permute.xlu0 %2529
        %2532 = vset.pattern.permute.xlu0 39
        %2533 = vperm.xlu0 %2532, %v873
        %v2534 = vpop.permute.xlu0 %2533
        %2536 = vset.pattern.permute.xlu0 39
        %2537 = vperm.xlu0 %2536, %v874
        %v2538 = vpop.permute.xlu0 %2537
        %2540 = vset.pattern.permute.xlu0 39
        %2541 = vperm.xlu0 %2540, %v875
        %v2542 = vpop.permute.xlu0 %2541
        %v2544 = vmul.f32 %v1038, %v2530
        %v2545 = vmul.f32 %v1039, %v2530
        %v2546 = vmul.f32 %v1040, %v2534
        %v2547 = vmul.f32 %v1041, %v2534
        %v2548 = vmul.f32 %v1042, %v2538
        %v2549 = vmul.f32 %v1043, %v2538
        %v2550 = vmul.f32 %v1044, %v2542
        %v2551 = vmul.f32 %v1045, %v2542
        %v2552 = vadd.f32 %v2520, %v2544
        %v2553 = vadd.f32 %v2521, %v2545
        %v2554 = vadd.f32 %v2522, %v2546
        %v2555 = vadd.f32 %v2523, %v2547
        %v2556 = vadd.f32 %v2524, %v2548
        %v2557 = vadd.f32 %v2525, %v2549
        %v2558 = vadd.f32 %v2526, %v2550
        %v2559 = vadd.f32 %v2527, %v2551
        %2560 = vset.pattern.permute.xlu0 40
        %2561 = vperm.xlu0 %2560, %v872
        %v2562 = vpop.permute.xlu0 %2561
        %2564 = vset.pattern.permute.xlu0 40
        %2565 = vperm.xlu0 %2564, %v873
        %v2566 = vpop.permute.xlu0 %2565
        %2568 = vset.pattern.permute.xlu0 40
        %2569 = vperm.xlu0 %2568, %v874
        %v2570 = vpop.permute.xlu0 %2569
        %2572 = vset.pattern.permute.xlu0 40
        %2573 = vperm.xlu0 %2572, %v875
        %v2574 = vpop.permute.xlu0 %2573
        %v2576 = vmul.f32 %v1079, %v2562
        %v2577 = vmul.f32 %v1080, %v2562
        %v2578 = vmul.f32 %v1081, %v2566
        %v2579 = vmul.f32 %v1082, %v2566
        %v2580 = vmul.f32 %v1083, %v2570
        %v2581 = vmul.f32 %v1084, %v2570
        %v2582 = vmul.f32 %v1085, %v2574
        %v2583 = vmul.f32 %v1086, %v2574
        %v2584 = vadd.f32 %v2552, %v2576
        %v2585 = vadd.f32 %v2553, %v2577
        %v2586 = vadd.f32 %v2554, %v2578
        %v2587 = vadd.f32 %v2555, %v2579
        %v2588 = vadd.f32 %v2556, %v2580
        %v2589 = vadd.f32 %v2557, %v2581
        %v2590 = vadd.f32 %v2558, %v2582
        %v2591 = vadd.f32 %v2559, %v2583
        %2592 = vset.pattern.permute.xlu0 41
        %2593 = vperm.xlu0 %2592, %v872
        %v2594 = vpop.permute.xlu0 %2593
        %2596 = vset.pattern.permute.xlu0 41
        %2597 = vperm.xlu0 %2596, %v873
        %v2598 = vpop.permute.xlu0 %2597
        %2600 = vset.pattern.permute.xlu0 41
        %2601 = vperm.xlu0 %2600, %v874
        %v2602 = vpop.permute.xlu0 %2601
        %2604 = vset.pattern.permute.xlu0 41
        %2605 = vperm.xlu0 %2604, %v875
        %v2606 = vpop.permute.xlu0 %2605
        %v2608 = vmul.f32 %v1120, %v2594
        %v2609 = vmul.f32 %v1121, %v2594
        %v2610 = vmul.f32 %v1122, %v2598
        %v2611 = vmul.f32 %v1123, %v2598
        %v2612 = vmul.f32 %v1124, %v2602
        %v2613 = vmul.f32 %v1125, %v2602
        %v2614 = vmul.f32 %v1126, %v2606
        %v2615 = vmul.f32 %v1127, %v2606
        %v2616 = vadd.f32 %v2584, %v2608
        %v2617 = vadd.f32 %v2585, %v2609
        %v2618 = vadd.f32 %v2586, %v2610
        %v2619 = vadd.f32 %v2587, %v2611
        %v2620 = vadd.f32 %v2588, %v2612
        %v2621 = vadd.f32 %v2589, %v2613
        %v2622 = vadd.f32 %v2590, %v2614
        %v2623 = vadd.f32 %v2591, %v2615
        %2624 = vrot.lane.b32.xlu0 %v2616, 96
        %v2625 = vpop.permute.xlu0 %2624
        %2626 = vrot.lane.b32.xlu0 %v2618, 96
        %v2627 = vpop.permute.xlu0 %2626
        %2628 = vrot.lane.b32.xlu0 %v2620, 96
        %v2629 = vpop.permute.xlu0 %2628
        %2630 = vrot.lane.b32.xlu0 %v2622, 96
        %v2631 = vpop.permute.xlu0 %2630
        %2632 = vrot.lane.b32.xlu0 %v2617, 96
        %v2633 = vpop.permute.xlu0 %2632
        %2634 = vrot.lane.b32.xlu0 %v2619, 96
        %v2635 = vpop.permute.xlu0 %2634
        %2636 = vrot.lane.b32.xlu0 %v2621, 96
        %v2637 = vpop.permute.xlu0 %2636
        %2638 = vrot.lane.b32.xlu0 %v2623, 96
        %v2639 = vpop.permute.xlu0 %2638
        %vm2640 = vcmp.lt.s32.totalorder %v897, 96
        %v2641 = vsel %vm2640, %v2625, %v2633
        %v2642 = vsel %vm2640, %v2627, %v2635
        %v2643 = vsel %vm2640, %v2629, %v2637
        %v2644 = vsel %vm2640, %v2631, %v2639
        %v2645 = vsel %vm2640, %v2633, %v2625
        %v2646 = vsel %vm2640, %v2635, %v2627
        %v2647 = vsel %vm2640, %v2637, %v2629
        %v2648 = vsel %vm2640, %v2639, %v2631
        %v2649 = vlaneseq
        %v2650 = vshrl.u32 %v2649, 7
        %v2651 = vsub.s32 5, %v2650
        %v2652 = vrot.slane %v878, %v2651
        %v2653 = vlaneseq
        %v2654 = vshrl.u32 %v2653, 7
        %v2655 = vsub.s32 5, %v2654
        %v2656 = vrot.slane %v879, %v2655
        %v2657 = vmul.f32 %v2641, %v2652
        %v2658 = vmul.f32 %v2645, %v2656
        %v2659 = vmul.f32 %v2642, %v2652
        %v2660 = vmul.f32 %v2646, %v2656
        %v2661 = vmul.f32 %v2643, %v2652
        %v2662 = vmul.f32 %v2647, %v2656
        %v2663 = vmul.f32 %v2644, %v2652
        %v2664 = vmul.f32 %v2648, %v2656
        %v2665 = vadd.f32 %v2400, %v2657
        %v2666 = vadd.f32 %v2401, %v2658
        %v2667 = vadd.f32 %v2402, %v2659
        %v2668 = vadd.f32 %v2403, %v2660
        %v2669 = vadd.f32 %v2404, %v2661
        %v2670 = vadd.f32 %v2405, %v2662
        %v2671 = vadd.f32 %v2406, %v2663
        %v2672 = vadd.f32 %v2407, %v2664
        %2673 = vset.pattern.permute.xlu0 42
        %2674 = vperm.xlu0 %2673, %v872
        %v2675 = vpop.permute.xlu0 %2674
        %2677 = vset.pattern.permute.xlu0 42
        %2678 = vperm.xlu0 %2677, %v873
        %v2679 = vpop.permute.xlu0 %2678
        %2681 = vset.pattern.permute.xlu0 42
        %2682 = vperm.xlu0 %2681, %v874
        %v2683 = vpop.permute.xlu0 %2682
        %2685 = vset.pattern.permute.xlu0 42
        %2686 = vperm.xlu0 %2685, %v875
        %v2687 = vpop.permute.xlu0 %2686
        %v2689 = vmul.f32 %v915, %v2675
        %v2690 = vmul.f32 %v916, %v2675
        %v2691 = vmul.f32 %v917, %v2679
        %v2692 = vmul.f32 %v918, %v2679
        %v2693 = vmul.f32 %v919, %v2683
        %v2694 = vmul.f32 %v920, %v2683
        %v2695 = vmul.f32 %v921, %v2687
        %v2696 = vmul.f32 %v922, %v2687
        %2697 = vset.pattern.permute.xlu0 43
        %2698 = vperm.xlu0 %2697, %v872
        %v2699 = vpop.permute.xlu0 %2698
        %2701 = vset.pattern.permute.xlu0 43
        %2702 = vperm.xlu0 %2701, %v873
        %v2703 = vpop.permute.xlu0 %2702
        %2705 = vset.pattern.permute.xlu0 43
        %2706 = vperm.xlu0 %2705, %v874
        %v2707 = vpop.permute.xlu0 %2706
        %2709 = vset.pattern.permute.xlu0 43
        %2710 = vperm.xlu0 %2709, %v875
        %v2711 = vpop.permute.xlu0 %2710
        %v2713 = vmul.f32 %v956, %v2699
        %v2714 = vmul.f32 %v957, %v2699
        %v2715 = vmul.f32 %v958, %v2703
        %v2716 = vmul.f32 %v959, %v2703
        %v2717 = vmul.f32 %v960, %v2707
        %v2718 = vmul.f32 %v961, %v2707
        %v2719 = vmul.f32 %v962, %v2711
        %v2720 = vmul.f32 %v963, %v2711
        %v2721 = vadd.f32 %v2689, %v2713
        %v2722 = vadd.f32 %v2690, %v2714
        %v2723 = vadd.f32 %v2691, %v2715
        %v2724 = vadd.f32 %v2692, %v2716
        %v2725 = vadd.f32 %v2693, %v2717
        %v2726 = vadd.f32 %v2694, %v2718
        %v2727 = vadd.f32 %v2695, %v2719
        %v2728 = vadd.f32 %v2696, %v2720
        %2729 = vset.pattern.permute.xlu0 44
        %2730 = vperm.xlu0 %2729, %v872
        %v2731 = vpop.permute.xlu0 %2730
        %2733 = vset.pattern.permute.xlu0 44
        %2734 = vperm.xlu0 %2733, %v873
        %v2735 = vpop.permute.xlu0 %2734
        %2737 = vset.pattern.permute.xlu0 44
        %2738 = vperm.xlu0 %2737, %v874
        %v2739 = vpop.permute.xlu0 %2738
        %2741 = vset.pattern.permute.xlu0 44
        %2742 = vperm.xlu0 %2741, %v875
        %v2743 = vpop.permute.xlu0 %2742
        %v2745 = vmul.f32 %v997, %v2731
        %v2746 = vmul.f32 %v998, %v2731
        %v2747 = vmul.f32 %v999, %v2735
        %v2748 = vmul.f32 %v1000, %v2735
        %v2749 = vmul.f32 %v1001, %v2739
        %v2750 = vmul.f32 %v1002, %v2739
        %v2751 = vmul.f32 %v1003, %v2743
        %v2752 = vmul.f32 %v1004, %v2743
        %v2753 = vadd.f32 %v2721, %v2745
        %v2754 = vadd.f32 %v2722, %v2746
        %v2755 = vadd.f32 %v2723, %v2747
        %v2756 = vadd.f32 %v2724, %v2748
        %v2757 = vadd.f32 %v2725, %v2749
        %v2758 = vadd.f32 %v2726, %v2750
        %v2759 = vadd.f32 %v2727, %v2751
        %v2760 = vadd.f32 %v2728, %v2752
        %2761 = vset.pattern.permute.xlu0 45
        %2762 = vperm.xlu0 %2761, %v872
        %v2763 = vpop.permute.xlu0 %2762
        %2765 = vset.pattern.permute.xlu0 45
        %2766 = vperm.xlu0 %2765, %v873
        %v2767 = vpop.permute.xlu0 %2766
        %2769 = vset.pattern.permute.xlu0 45
        %2770 = vperm.xlu0 %2769, %v874
        %v2771 = vpop.permute.xlu0 %2770
        %2773 = vset.pattern.permute.xlu0 45
        %2774 = vperm.xlu0 %2773, %v875
        %v2775 = vpop.permute.xlu0 %2774
        %v2777 = vmul.f32 %v864, %v2763
        %v2778 = vmul.f32 %v865, %v2763
        %v2779 = vmul.f32 %v866, %v2767
        %v2780 = vmul.f32 %v867, %v2767
        %v2781 = vmul.f32 %v868, %v2771
        %v2782 = vmul.f32 %v869, %v2771
        %v2783 = vmul.f32 %v870, %v2775
        %v2784 = vmul.f32 %v871, %v2775
        %v2785 = vadd.f32 %v2753, %v2777
        %v2786 = vadd.f32 %v2754, %v2778
        %v2787 = vadd.f32 %v2755, %v2779
        %v2788 = vadd.f32 %v2756, %v2780
        %v2789 = vadd.f32 %v2757, %v2781
        %v2790 = vadd.f32 %v2758, %v2782
        %v2791 = vadd.f32 %v2759, %v2783
        %v2792 = vadd.f32 %v2760, %v2784
        %2793 = vset.pattern.permute.xlu0 46
        %2794 = vperm.xlu0 %2793, %v872
        %v2795 = vpop.permute.xlu0 %2794
        %2797 = vset.pattern.permute.xlu0 46
        %2798 = vperm.xlu0 %2797, %v873
        %v2799 = vpop.permute.xlu0 %2798
        %2801 = vset.pattern.permute.xlu0 46
        %2802 = vperm.xlu0 %2801, %v874
        %v2803 = vpop.permute.xlu0 %2802
        %2805 = vset.pattern.permute.xlu0 46
        %2806 = vperm.xlu0 %2805, %v875
        %v2807 = vpop.permute.xlu0 %2806
        %v2809 = vmul.f32 %v1038, %v2795
        %v2810 = vmul.f32 %v1039, %v2795
        %v2811 = vmul.f32 %v1040, %v2799
        %v2812 = vmul.f32 %v1041, %v2799
        %v2813 = vmul.f32 %v1042, %v2803
        %v2814 = vmul.f32 %v1043, %v2803
        %v2815 = vmul.f32 %v1044, %v2807
        %v2816 = vmul.f32 %v1045, %v2807
        %v2817 = vadd.f32 %v2785, %v2809
        %v2818 = vadd.f32 %v2786, %v2810
        %v2819 = vadd.f32 %v2787, %v2811
        %v2820 = vadd.f32 %v2788, %v2812
        %v2821 = vadd.f32 %v2789, %v2813
        %v2822 = vadd.f32 %v2790, %v2814
        %v2823 = vadd.f32 %v2791, %v2815
        %v2824 = vadd.f32 %v2792, %v2816
        %2825 = vset.pattern.permute.xlu0 47
        %2826 = vperm.xlu0 %2825, %v872
        %v2827 = vpop.permute.xlu0 %2826
        %2829 = vset.pattern.permute.xlu0 47
        %2830 = vperm.xlu0 %2829, %v873
        %v2831 = vpop.permute.xlu0 %2830
        %2833 = vset.pattern.permute.xlu0 47
        %2834 = vperm.xlu0 %2833, %v874
        %v2835 = vpop.permute.xlu0 %2834
        %2837 = vset.pattern.permute.xlu0 47
        %2838 = vperm.xlu0 %2837, %v875
        %v2839 = vpop.permute.xlu0 %2838
        %v2841 = vmul.f32 %v1079, %v2827
        %v2842 = vmul.f32 %v1080, %v2827
        %v2843 = vmul.f32 %v1081, %v2831
        %v2844 = vmul.f32 %v1082, %v2831
        %v2845 = vmul.f32 %v1083, %v2835
        %v2846 = vmul.f32 %v1084, %v2835
        %v2847 = vmul.f32 %v1085, %v2839
        %v2848 = vmul.f32 %v1086, %v2839
        %v2849 = vadd.f32 %v2817, %v2841
        %v2850 = vadd.f32 %v2818, %v2842
        %v2851 = vadd.f32 %v2819, %v2843
        %v2852 = vadd.f32 %v2820, %v2844
        %v2853 = vadd.f32 %v2821, %v2845
        %v2854 = vadd.f32 %v2822, %v2846
        %v2855 = vadd.f32 %v2823, %v2847
        %v2856 = vadd.f32 %v2824, %v2848
        %2857 = vset.pattern.permute.xlu0 48
        %2858 = vperm.xlu0 %2857, %v872
        %v2859 = vpop.permute.xlu0 %2858
        %2861 = vset.pattern.permute.xlu0 48
        %2862 = vperm.xlu0 %2861, %v873
        %v2863 = vpop.permute.xlu0 %2862
        %2865 = vset.pattern.permute.xlu0 48
        %2866 = vperm.xlu0 %2865, %v874
        %v2867 = vpop.permute.xlu0 %2866
        %2869 = vset.pattern.permute.xlu0 48
        %2870 = vperm.xlu0 %2869, %v875
        %v2871 = vpop.permute.xlu0 %2870
        %v2873 = vmul.f32 %v1120, %v2859
        %v2874 = vmul.f32 %v1121, %v2859
        %v2875 = vmul.f32 %v1122, %v2863
        %v2876 = vmul.f32 %v1123, %v2863
        %v2877 = vmul.f32 %v1124, %v2867
        %v2878 = vmul.f32 %v1125, %v2867
        %v2879 = vmul.f32 %v1126, %v2871
        %v2880 = vmul.f32 %v1127, %v2871
        %v2881 = vadd.f32 %v2849, %v2873
        %v2882 = vadd.f32 %v2850, %v2874
        %v2883 = vadd.f32 %v2851, %v2875
        %v2884 = vadd.f32 %v2852, %v2876
        %v2885 = vadd.f32 %v2853, %v2877
        %v2886 = vadd.f32 %v2854, %v2878
        %v2887 = vadd.f32 %v2855, %v2879
        %v2888 = vadd.f32 %v2856, %v2880
        %2889 = vrot.lane.b32.xlu0 %v2881, 80
        %v2890 = vpop.permute.xlu0 %2889
        %2891 = vrot.lane.b32.xlu0 %v2883, 80
        %v2892 = vpop.permute.xlu0 %2891
        %2893 = vrot.lane.b32.xlu0 %v2885, 80
        %v2894 = vpop.permute.xlu0 %2893
        %2895 = vrot.lane.b32.xlu0 %v2887, 80
        %v2896 = vpop.permute.xlu0 %2895
        %2897 = vrot.lane.b32.xlu0 %v2882, 80
        %v2898 = vpop.permute.xlu0 %2897
        %2899 = vrot.lane.b32.xlu0 %v2884, 80
        %v2900 = vpop.permute.xlu0 %2899
        %2901 = vrot.lane.b32.xlu0 %v2886, 80
        %v2902 = vpop.permute.xlu0 %2901
        %2903 = vrot.lane.b32.xlu0 %v2888, 80
        %v2904 = vpop.permute.xlu0 %2903
        %vm2905 = vcmp.lt.s32.totalorder %v897, 80
        %v2906 = vsel %vm2905, %v2890, %v2898
        %v2907 = vsel %vm2905, %v2892, %v2900
        %v2908 = vsel %vm2905, %v2894, %v2902
        %v2909 = vsel %vm2905, %v2896, %v2904
        %v2910 = vsel %vm2905, %v2898, %v2890
        %v2911 = vsel %vm2905, %v2900, %v2892
        %v2912 = vsel %vm2905, %v2902, %v2894
        %v2913 = vsel %vm2905, %v2904, %v2896
        %v2914 = vlaneseq
        %v2915 = vshrl.u32 %v2914, 7
        %v2916 = vsub.s32 6, %v2915
        %v2917 = vrot.slane %v878, %v2916
        %v2918 = vlaneseq
        %v2919 = vshrl.u32 %v2918, 7
        %v2920 = vsub.s32 6, %v2919
        %v2921 = vrot.slane %v879, %v2920
        %v2922 = vmul.f32 %v2906, %v2917
        %v2923 = vmul.f32 %v2910, %v2921
        %v2924 = vmul.f32 %v2907, %v2917
        %v2925 = vmul.f32 %v2911, %v2921
        %v2926 = vmul.f32 %v2908, %v2917
        %v2927 = vmul.f32 %v2912, %v2921
        %v2928 = vmul.f32 %v2909, %v2917
        %v2929 = vmul.f32 %v2913, %v2921
        %v2930 = vadd.f32 %v2665, %v2922
        %v2931 = vadd.f32 %v2666, %v2923
        %v2932 = vadd.f32 %v2667, %v2924
        %v2933 = vadd.f32 %v2668, %v2925
        %v2934 = vadd.f32 %v2669, %v2926
        %v2935 = vadd.f32 %v2670, %v2927
        %v2936 = vadd.f32 %v2671, %v2928
        %v2937 = vadd.f32 %v2672, %v2929
        %v2939 = vlaneseq
        %v2940 = vshrl.u32 %v2939, 7
        %v2941 = vsub.s32 0, %v2940
        %v2942 = vrot.slane %v553, %v2941
        %v2943 = vlaneseq
        %v2944 = vshrl.u32 %v2943, 7
        %v2945 = vsub.s32 1, %v2944
        %v2946 = vrot.slane %v553, %v2945
        %v2949 = vmul.f32 %v2930, %v2942
        %v2950 = vmul.f32 %v2931, %v2946
        %v2951 = vmul.f32 %v2932, %v2942
        %v2952 = vmul.f32 %v2933, %v2946
        %v2953 = vmul.f32 %v2934, %v2942
        %v2954 = vmul.f32 %v2935, %v2946
        %v2955 = vmul.f32 %v2936, %v2942
        %v2956 = vmul.f32 %v2937, %v2946
        %v2957 = vadd.f32 %v740, %v2949
        %v2958 = vadd.f32 %v741, %v2950
        %v2959 = vadd.f32 %v742, %v2951
        %v2960 = vadd.f32 %v743, %v2952
        %v2961 = vadd.f32 %v744, %v2953
        %v2962 = vadd.f32 %v745, %v2954
        %v2963 = vadd.f32 %v746, %v2955
        %v2964 = vadd.f32 %v747, %v2956
        %v2965 = vadd.f32 %v2957, %v2959
        %v2966 = vadd.f32 %v2965, %v2961
        %v2967 = vadd.f32 %v2966, %v2963
        %v2968 = vrot.slane %v2967, 4
        %v2969 = vadd.f32 %v2967, %v2968
        %v2970 = vrot.slane %v2969, 2
        %v2971 = vadd.f32 %v2969, %v2970
        %v2972 = vrot.slane %v2971, 1
        %v2973 = vadd.f32 %v2971, %v2972
        %v2974 = vadd.f32 %v2958, %v2960
        %v2975 = vadd.f32 %v2974, %v2962
        %v2976 = vadd.f32 %v2975, %v2964
        %v2977 = vrot.slane %v2976, 4
        %v2978 = vadd.f32 %v2976, %v2977
        %v2979 = vrot.slane %v2978, 2
        %v2980 = vadd.f32 %v2978, %v2979
        %v2981 = vrot.slane %v2980, 1
        %v2982 = vadd.f32 %v2980, %v2981
        %v2983 = vmul.f32 %v2973, 0.03125
        %v2984 = vmul.f32 %v2982, 0.03125
        %v2985 = vsub.f32 %v2957, %v2983
        %v2986 = vsub.f32 %v2958, %v2984
        %v2987 = vsub.f32 %v2959, %v2983
        %v2988 = vsub.f32 %v2960, %v2984
        %v2989 = vsub.f32 %v2961, %v2983
        %v2990 = vsub.f32 %v2962, %v2984
        %v2991 = vsub.f32 %v2963, %v2983
        %v2992 = vsub.f32 %v2964, %v2984
        %v2993 = vmul.f32 %v2985, %v2985
        %v2994 = vmul.f32 %v2986, %v2986
        %v2995 = vmul.f32 %v2987, %v2987
        %v2996 = vmul.f32 %v2988, %v2988
        %v2997 = vmul.f32 %v2989, %v2989
        %v2998 = vmul.f32 %v2990, %v2990
        %v2999 = vmul.f32 %v2991, %v2991
        %v3000 = vmul.f32 %v2992, %v2992
        %v3001 = vadd.f32 %v2993, %v2995
        %v3002 = vadd.f32 %v3001, %v2997
        %v3003 = vadd.f32 %v3002, %v2999
        %v3004 = vrot.slane %v3003, 4
        %v3005 = vadd.f32 %v3003, %v3004
        %v3006 = vrot.slane %v3005, 2
        %v3007 = vadd.f32 %v3005, %v3006
        %v3008 = vrot.slane %v3007, 1
        %v3009 = vadd.f32 %v3007, %v3008
        %v3010 = vadd.f32 %v2994, %v2996
        %v3011 = vadd.f32 %v3010, %v2998
        %v3012 = vadd.f32 %v3011, %v3000
        %v3013 = vrot.slane %v3012, 4
        %v3014 = vadd.f32 %v3012, %v3013
        %v3015 = vrot.slane %v3014, 2
        %v3016 = vadd.f32 %v3014, %v3015
        %v3017 = vrot.slane %v3016, 1
        %v3018 = vadd.f32 %v3016, %v3017
        %v3019 = vmul.f32 %v3009, 0.03125
        %v3020 = vmul.f32 %v3018, 0.03125
        %v3021 = vadd.f32 %v3019, 1e-05
        %v3022 = vadd.f32 %v3020, 1e-05
        %v3023 = vrsqrt.pop %v3021
        %v3024 = vrsqrt.pop %v3022
        %v3025 = vmul.f32 %v2985, %v3023
        %v3026 = vmul.f32 %v2986, %v3024
        %v3027 = vmul.f32 %v2987, %v3023
        %v3028 = vmul.f32 %v2988, %v3024
        %v3029 = vmul.f32 %v2989, %v3023
        %v3030 = vmul.f32 %v2990, %v3024
        %v3031 = vmul.f32 %v2991, %v3023
        %v3032 = vmul.f32 %v2992, %v3024
        %3033 = vset.pattern.permute.xlu0 2
        %3034 = vperm.xlu0 %3033, %v748
        %v3035 = vpop.permute.xlu0 %3034
        %3037 = vset.pattern.permute.xlu0 2
        %3038 = vperm.xlu0 %3037, %v749
        %v3039 = vpop.permute.xlu0 %3038
        %3041 = vset.pattern.permute.xlu0 2
        %3042 = vperm.xlu0 %3041, %v750
        %v3043 = vpop.permute.xlu0 %3042
        %3045 = vset.pattern.permute.xlu0 2
        %3046 = vperm.xlu0 %3045, %v751
        %v3047 = vpop.permute.xlu0 %3046
        %v3049 = vmul.f32 %v3025, %v3035
        %v3050 = vmul.f32 %v3026, %v3035
        %v3051 = vmul.f32 %v3027, %v3039
        %v3052 = vmul.f32 %v3028, %v3039
        %v3053 = vmul.f32 %v3029, %v3043
        %v3054 = vmul.f32 %v3030, %v3043
        %v3055 = vmul.f32 %v3031, %v3047
        %v3056 = vmul.f32 %v3032, %v3047
        %3057 = vset.pattern.permute.xlu0 3
        %3058 = vperm.xlu0 %3057, %v748
        %v3059 = vpop.permute.xlu0 %3058
        %3061 = vset.pattern.permute.xlu0 3
        %3062 = vperm.xlu0 %3061, %v749
        %v3063 = vpop.permute.xlu0 %3062
        %3065 = vset.pattern.permute.xlu0 3
        %3066 = vperm.xlu0 %3065, %v750
        %v3067 = vpop.permute.xlu0 %3066
        %3069 = vset.pattern.permute.xlu0 3
        %3070 = vperm.xlu0 %3069, %v751
        %v3071 = vpop.permute.xlu0 %3070
        %v3073 = vadd.f32 %v3049, %v3059
        %v3074 = vadd.f32 %v3050, %v3059
        %v3075 = vadd.f32 %v3051, %v3063
        %v3076 = vadd.f32 %v3052, %v3063
        %v3077 = vadd.f32 %v3053, %v3067
        %v3078 = vadd.f32 %v3054, %v3067
        %v3079 = vadd.f32 %v3055, %v3071
        %v3080 = vadd.f32 %v3056, %v3071
        %v3081 = vld [vmem:[%s9] sm:$0xf]
        %v3082 = vld [vmem:[%s9 + $0x4] sm:$0xf]
        %v3083 = vld [vmem:[%s9 + $0x8] sm:$0xf]
        %v3084 = vld [vmem:[%s9 + $0xc] sm:$0xf]
        %v3085 = vld [vmem:[%s9 + $0x10] sm:$0xf]
        %v3086 = vld [vmem:[%s9 + $0x14] sm:$0xf]
        %v3087 = vld [vmem:[%s9 + $0x18] sm:$0xf]
        %v3088 = vld [vmem:[%s9 + $0x1c] sm:$0xf]
        %v3089 = vpack.c.bf16 %v3075, %v3073
        %v3090 = vpack.c.bf16 %v3076, %v3074
        %v3091 = vpack.c.bf16 %v3079, %v3077
        %v3092 = vpack.c.bf16 %v3080, %v3078
        %3093 = vset.pattern.permute.xlu0 1
        %3094 = vperm.xlu0 %3093, %v545
        %v3095 = vpop.permute.xlu0 %3094
        %3097 = vset.pattern.permute.xlu0 1
        %3098 = vperm.xlu0 %3097, %v546
        %v3099 = vpop.permute.xlu0 %3098
        %3101 = vset.pattern.permute.xlu0 1
        %3102 = vperm.xlu0 %3101, %v547
        %v3103 = vpop.permute.xlu0 %3102
        %3105 = vset.pattern.permute.xlu0 1
        %3106 = vperm.xlu0 %3105, %v548
        %v3107 = vpop.permute.xlu0 %3106
        %3110 = vset.pattern.permute.xlu0 1
        %3111 = vperm.xlu0 %3110, %v549
        %v3112 = vpop.permute.xlu0 %3111
        %3115 = vset.pattern.permute.xlu0 1
        %3116 = vperm.xlu0 %3115, %v550
        %v3117 = vpop.permute.xlu0 %3116
        %3120 = vset.pattern.permute.xlu0 1
        %3121 = vperm.xlu0 %3120, %v551
        %v3122 = vpop.permute.xlu0 %3121
        %3125 = vset.pattern.permute.xlu0 1
        %3126 = vperm.xlu0 %3125, %v552
        %v3127 = vpop.permute.xlu0 %3126
        %v3137 = vunpack.c.l.b16 %v3081
        %v3138 = vunpack.c.l.b16 %v3082
        %v3139 = vunpack.c.l.b16 %v3083
        %v3140 = vunpack.c.l.b16 %v3084
        %v3141 = vunpack.c.l.b16 %v3085
        %v3142 = vunpack.c.l.b16 %v3086
        %v3143 = vunpack.c.l.b16 %v3087
        %v3144 = vunpack.c.l.b16 %v3088
        %v3145 = vpack.c.b16 %v3138, %v3137
        %v3146 = vpack.c.b16 %v3140, %v3139
        %v3147 = vpack.c.b16 %v3142, %v3141
        %v3148 = vpack.c.b16 %v3144, %v3143
        %v3150 = vsel %vm660, %v3145, 0
        %v3153 = vsel %vm660, %v3146, 0
        %v3156 = vsel %vm660, %v3147, 0
        %v3159 = vsel %vm660, %v3148, 0
        %3161 = vmatprep.subr.bf16.mxu0 %v3090
        %3162 = vmatpush1.bf16.msra.mxu0 %v3089
        %3163 = vmatprep.subr.bf16.mxu0 %v3092
        %3164 = vmatpush1.bf16.msra.mxu0 %v3091
        %3165 = vmatprep.subr.bf16.mxu0 0
        %3166 = vmatpush1.bf16.msra.mxu0 0
        %3167 = vmatprep.subr.bf16.mxu0 0
        %3168 = vmatpush1.bf16.msra.mxu0 0
        %3169 = vmatprep.subr.bf16.mxu0 0
        %3170 = vmatpush1.bf16.msra.mxu0 0
        %3171 = vmatprep.subr.bf16.mxu0 0
        %3172 = vmatpush1.bf16.msra.mxu0 0
        %3173 = vmatprep.subr.bf16.mxu0 0
        %3174 = vmatpush1.bf16.msra.mxu0 0
        %3175 = vmatprep.subr.bf16.mxu0 0
        %3176 = vmatpush1.bf16.msra.mxu0 0
        %3177 = vmatprep.subr.bf16.mxu0 0
        %3178 = vmatpush1.bf16.msra.mxu0 0
        %3179 = vmatprep.subr.bf16.mxu0 0
        %3180 = vmatpush1.bf16.msra.mxu0 0
        %3181 = vmatprep.subr.bf16.mxu0 0
        %3182 = vmatpush1.bf16.msra.mxu0 0
        %3183 = vmatprep.subr.bf16.mxu0 0
        %3184 = vmatpush1.bf16.msra.mxu0 0
        %3185 = vmatprep.subr.bf16.mxu0 0
        %3186 = vmatpush1.bf16.msra.mxu0 0
        %3187 = vmatprep.subr.bf16.mxu0 0
        %3188 = vmatpush1.bf16.msra.mxu0 0
        %3189 = vmatprep.subr.bf16.mxu0 0
        %3190 = vmatpush1.bf16.msra.mxu0 0
        %3191 = vmatprep.subr.bf16.mxu0 0
        %3192 = vmatpush1.bf16.msra.mxu0 0
        %3193 = vmatprep.mubr.bf16.mxu0 0
        %3194 = vmatmul.mubr.bf16.gmra.mrb[0].mxu0 %v3150
        %v3195 = vpop.f32.mrb[0].mxu0
        %v3196 = vadd.f32 %v3095, %v3195
        %v3197 = vpop.f32.mrb[0].mxu0
        %v3198 = vadd.f32 %v3095, %v3197
        %v3199 = vpop.f32.mrb[0].mxu0
        %v3200 = vadd.f32 %v3099, %v3199
        %v3201 = vpop.f32.mrb[0].mxu0
        %v3202 = vadd.f32 %v3099, %v3201
        %3203 = vmatprep.mubr.bf16.mxu0 0
        %3204 = vmatmul.mubr.bf16.gmra.mrb[0].mxu0 %v3153
        %v3205 = vpop.f32.mrb[0].mxu0
        %v3206 = vadd.f32 %v3103, %v3205
        %v3207 = vpop.f32.mrb[0].mxu0
        %v3208 = vadd.f32 %v3103, %v3207
        %v3209 = vpop.f32.mrb[0].mxu0
        %v3210 = vadd.f32 %v3107, %v3209
        %v3211 = vpop.f32.mrb[0].mxu0
        %v3212 = vadd.f32 %v3107, %v3211
        %3213 = vmatprep.mubr.bf16.mxu0 0
        %3214 = vmatmul.mubr.bf16.gmra.mrb[0].mxu0 %v3156
        %v3215 = vpop.f32.mrb[0].mxu0
        %v3216 = vadd.f32 %v3112, %v3215
        %v3217 = vpop.f32.mrb[0].mxu0
        %v3218 = vadd.f32 %v3112, %v3217
        %v3219 = vpop.f32.mrb[0].mxu0
        %v3220 = vadd.f32 %v3117, %v3219
        %v3221 = vpop.f32.mrb[0].mxu0
        %v3222 = vadd.f32 %v3117, %v3221
        %3223 = vmatprep.mubr.bf16.mxu0 0
        %3224 = vmatmul.mubr.bf16.gmra.mrb[0].mxu0 %v3159
        %v3225 = vpop.f32.mrb[0].mxu0
        %v3226 = vadd.f32 %v3122, %v3225
        %v3227 = vpop.f32.mrb[0].mxu0
        %v3228 = vadd.f32 %v3122, %v3227
        %v3229 = vpop.f32.mrb[0].mxu0
        %v3230 = vadd.f32 %v3127, %v3229
        %v3231 = vpop.f32.mrb[0].mxu0
        %v3232 = vadd.f32 %v3127, %v3231
        %3233 = vdwg.mxu0
        %v3234 = vmul.f32 %v3196, 0.5
        %v3235 = vmul.f32 %v3198, 0.5
        %v3236 = vmul.f32 %v3200, 0.5
        %v3237 = vmul.f32 %v3202, 0.5
        %v3238 = vmul.f32 %v3206, 0.5
        %v3239 = vmul.f32 %v3208, 0.5
        %v3240 = vmul.f32 %v3210, 0.5
        %v3241 = vmul.f32 %v3212, 0.5
        %v3242 = vmul.f32 %v3216, 0.5
        %v3243 = vmul.f32 %v3218, 0.5
        %v3244 = vmul.f32 %v3220, 0.5
        %v3245 = vmul.f32 %v3222, 0.5
        %v3246 = vmul.f32 %v3226, 0.5
        %v3247 = vmul.f32 %v3228, 0.5
        %v3248 = vmul.f32 %v3230, 0.5
        %v3249 = vmul.f32 %v3232, 0.5
        %v3250 = vmul.f32 %v3196, 0.044715
        %v3251 = vmul.f32 %v3198, 0.044715
        %v3252 = vmul.f32 %v3200, 0.044715
        %v3253 = vmul.f32 %v3202, 0.044715
        %v3254 = vmul.f32 %v3206, 0.044715
        %v3255 = vmul.f32 %v3208, 0.044715
        %v3256 = vmul.f32 %v3210, 0.044715
        %v3257 = vmul.f32 %v3212, 0.044715
        %v3258 = vmul.f32 %v3216, 0.044715
        %v3259 = vmul.f32 %v3218, 0.044715
        %v3260 = vmul.f32 %v3220, 0.044715
        %v3261 = vmul.f32 %v3222, 0.044715
        %v3262 = vmul.f32 %v3226, 0.044715
        %v3263 = vmul.f32 %v3228, 0.044715
        %v3264 = vmul.f32 %v3230, 0.044715
        %v3265 = vmul.f32 %v3232, 0.044715
        %v3266 = vmul.f32 %v3250, %v3196
        %v3267 = vmul.f32 %v3251, %v3198
        %v3268 = vmul.f32 %v3252, %v3200
        %v3269 = vmul.f32 %v3253, %v3202
        %v3270 = vmul.f32 %v3254, %v3206
        %v3271 = vmul.f32 %v3255, %v3208
        %v3272 = vmul.f32 %v3256, %v3210
        %v3273 = vmul.f32 %v3257, %v3212
        %v3274 = vmul.f32 %v3258, %v3216
        %v3275 = vmul.f32 %v3259, %v3218
        %v3276 = vmul.f32 %v3260, %v3220
        %v3277 = vmul.f32 %v3261, %v3222
        %v3278 = vmul.f32 %v3262, %v3226
        %v3279 = vmul.f32 %v3263, %v3228
        %v3280 = vmul.f32 %v3264, %v3230
        %v3281 = vmul.f32 %v3265, %v3232
        %v3282 = vmul.f32 %v3266, %v3196
        %v3283 = vmul.f32 %v3267, %v3198
        %v3284 = vmul.f32 %v3268, %v3200
        %v3285 = vmul.f32 %v3269, %v3202
        %v3286 = vmul.f32 %v3270, %v3206
        %v3287 = vmul.f32 %v3271, %v3208
        %v3288 = vmul.f32 %v3272, %v3210
        %v3289 = vmul.f32 %v3273, %v3212
        %v3290 = vmul.f32 %v3274, %v3216
        %v3291 = vmul.f32 %v3275, %v3218
        %v3292 = vmul.f32 %v3276, %v3220
        %v3293 = vmul.f32 %v3277, %v3222
        %v3294 = vmul.f32 %v3278, %v3226
        %v3295 = vmul.f32 %v3279, %v3228
        %v3296 = vmul.f32 %v3280, %v3230
        %v3297 = vmul.f32 %v3281, %v3232
        %v3298 = vadd.f32 %v3196, %v3282
        %v3299 = vadd.f32 %v3198, %v3283
        %v3300 = vadd.f32 %v3200, %v3284
        %v3301 = vadd.f32 %v3202, %v3285
        %v3302 = vadd.f32 %v3206, %v3286
        %v3303 = vadd.f32 %v3208, %v3287
        %v3304 = vadd.f32 %v3210, %v3288
        %v3305 = vadd.f32 %v3212, %v3289
        %v3306 = vadd.f32 %v3216, %v3290
        %v3307 = vadd.f32 %v3218, %v3291
        %v3308 = vadd.f32 %v3220, %v3292
        %v3309 = vadd.f32 %v3222, %v3293
        %v3310 = vadd.f32 %v3226, %v3294
        %v3311 = vadd.f32 %v3228, %v3295
        %v3312 = vadd.f32 %v3230, %v3296
        %v3313 = vadd.f32 %v3232, %v3297
        %v3314 = vmul.f32 %v3298, 0.7978846
        %v3315 = vmul.f32 %v3299, 0.7978846
        %v3316 = vmul.f32 %v3300, 0.7978846
        %v3317 = vmul.f32 %v3301, 0.7978846
        %v3318 = vmul.f32 %v3302, 0.7978846
        %v3319 = vmul.f32 %v3303, 0.7978846
        %v3320 = vmul.f32 %v3304, 0.7978846
        %v3321 = vmul.f32 %v3305, 0.7978846
        %v3322 = vmul.f32 %v3306, 0.7978846
        %v3323 = vmul.f32 %v3307, 0.7978846
        %v3324 = vmul.f32 %v3308, 0.7978846
        %v3325 = vmul.f32 %v3309, 0.7978846
        %v3326 = vmul.f32 %v3310, 0.7978846
        %v3327 = vmul.f32 %v3311, 0.7978846
        %v3328 = vmul.f32 %v3312, 0.7978846
        %v3329 = vmul.f32 %v3313, 0.7978846
        %v3330 = vtanh.pop %v3314
        %v3331 = vtanh.pop %v3315
        %v3332 = vtanh.pop %v3316
        %v3333 = vtanh.pop %v3317
        %v3334 = vtanh.pop %v3318
        %v3335 = vtanh.pop %v3319
        %v3336 = vtanh.pop %v3320
        %v3337 = vtanh.pop %v3321
        %v3338 = vtanh.pop %v3322
        %v3339 = vtanh.pop %v3323
        %v3340 = vtanh.pop %v3324
        %v3341 = vtanh.pop %v3325
        %v3342 = vtanh.pop %v3326
        %v3343 = vtanh.pop %v3327
        %v3344 = vtanh.pop %v3328
        %v3345 = vtanh.pop %v3329
        %v3346 = vadd.f32 %v3330, 1.0
        %v3347 = vadd.f32 %v3331, 1.0
        %v3348 = vadd.f32 %v3332, 1.0
        %v3349 = vadd.f32 %v3333, 1.0
        %v3350 = vadd.f32 %v3334, 1.0
        %v3351 = vadd.f32 %v3335, 1.0
        %v3352 = vadd.f32 %v3336, 1.0
        %v3353 = vadd.f32 %v3337, 1.0
        %v3354 = vadd.f32 %v3338, 1.0
        %v3355 = vadd.f32 %v3339, 1.0
        %v3356 = vadd.f32 %v3340, 1.0
        %v3357 = vadd.f32 %v3341, 1.0
        %v3358 = vadd.f32 %v3342, 1.0
        %v3359 = vadd.f32 %v3343, 1.0
        %v3360 = vadd.f32 %v3344, 1.0
        %v3361 = vadd.f32 %v3345, 1.0
        %v3362 = vmul.f32 %v3234, %v3346
        %v3363 = vmul.f32 %v3235, %v3347
        %v3364 = vmul.f32 %v3236, %v3348
        %v3365 = vmul.f32 %v3237, %v3349
        %v3366 = vmul.f32 %v3238, %v3350
        %v3367 = vmul.f32 %v3239, %v3351
        %v3368 = vmul.f32 %v3240, %v3352
        %v3369 = vmul.f32 %v3241, %v3353
        %v3370 = vmul.f32 %v3242, %v3354
        %v3371 = vmul.f32 %v3243, %v3355
        %v3372 = vmul.f32 %v3244, %v3356
        %v3373 = vmul.f32 %v3245, %v3357
        %v3374 = vmul.f32 %v3246, %v3358
        %v3375 = vmul.f32 %v3247, %v3359
        %v3376 = vmul.f32 %v3248, %v3360
        %v3377 = vmul.f32 %v3249, %v3361
        %v3378 = vld [vmem:[#allocation10] sm:$0xf]
        %v3379 = vld [vmem:[#allocation10 + $0x4] sm:$0xf]
        %v3380 = vld [vmem:[#allocation10 + $0x8] sm:$0xf]
        %v3381 = vld [vmem:[#allocation10 + $0xc] sm:$0xf]
        %v3382 = vpack.c.bf16 %v3364, %v3362
        %v3383 = vpack.c.bf16 %v3365, %v3363
        %v3384 = vpack.c.bf16 %v3368, %v3366
        %v3385 = vpack.c.bf16 %v3369, %v3367
        %v3386 = vpack.c.bf16 %v3372, %v3370
        %v3387 = vpack.c.bf16 %v3373, %v3371
        %v3388 = vpack.c.bf16 %v3376, %v3374
        %v3389 = vpack.c.bf16 %v3377, %v3375
        %3390 = vset.pattern.permute.xlu0 0
        %3391 = vperm.xlu0 %3390, %v549
        %v3392 = vpop.permute.xlu0 %3391
        %3394 = vset.pattern.permute.xlu0 0
        %3395 = vperm.xlu0 %3394, %v550
        %v3396 = vpop.permute.xlu0 %3395
        %3398 = vset.pattern.permute.xlu0 0
        %3399 = vperm.xlu0 %3398, %v551
        %v3400 = vpop.permute.xlu0 %3399
        %3402 = vset.pattern.permute.xlu0 0
        %3403 = vperm.xlu0 %3402, %v552
        %v3404 = vpop.permute.xlu0 %3403
        %v3410 = vunpack.c.l.b16 %v3378
        %v3411 = vunpack.c.l.b16 %v3379
        %v3412 = vunpack.c.l.b16 %v3380
        %v3413 = vunpack.c.l.b16 %v3381
        %v3414 = vpack.c.b16 %v3411, %v3410
        %v3415 = vpack.c.b16 %v3413, %v3412
        %vm3416 = vcmask 523264
        %v3418 = vsel %vm3416, %v3414, 0
        %v3421 = vsel %vm3416, %v3415, 0
        %3423 = vmatprep.subr.bf16.mxu0 %v3383
        %3424 = vmatpush1.bf16.msra.mxu0 %v3382
        %3425 = vmatprep.subr.bf16.mxu0 %v3385
        %3426 = vmatpush1.bf16.msra.mxu0 %v3384
        %3427 = vmatprep.subr.bf16.mxu0 %v3387
        %3428 = vmatpush1.bf16.msra.mxu0 %v3386
        %3429 = vmatprep.subr.bf16.mxu0 %v3389
        %3430 = vmatpush1.bf16.msra.mxu0 %v3388
        %3431 = vmatprep.subr.bf16.mxu0 0
        %3432 = vmatpush1.bf16.msra.mxu0 0
        %3433 = vmatprep.subr.bf16.mxu0 0
        %3434 = vmatpush1.bf16.msra.mxu0 0
        %3435 = vmatprep.subr.bf16.mxu0 0
        %3436 = vmatpush1.bf16.msra.mxu0 0
        %3437 = vmatprep.subr.bf16.mxu0 0
        %3438 = vmatpush1.bf16.msra.mxu0 0
        %3439 = vmatprep.subr.bf16.mxu0 0
        %3440 = vmatpush1.bf16.msra.mxu0 0
        %3441 = vmatprep.subr.bf16.mxu0 0
        %3442 = vmatpush1.bf16.msra.mxu0 0
        %3443 = vmatprep.subr.bf16.mxu0 0
        %3444 = vmatpush1.bf16.msra.mxu0 0
        %3445 = vmatprep.subr.bf16.mxu0 0
        %3446 = vmatpush1.bf16.msra.mxu0 0
        %3447 = vmatprep.subr.bf16.mxu0 0
        %3448 = vmatpush1.bf16.msra.mxu0 0
        %3449 = vmatprep.subr.bf16.mxu0 0
        %3450 = vmatpush1.bf16.msra.mxu0 0
        %3451 = vmatprep.subr.bf16.mxu0 0
        %3452 = vmatpush1.bf16.msra.mxu0 0
        %3453 = vmatprep.subr.bf16.mxu0 0
        %3454 = vmatpush1.bf16.msra.mxu0 0
        %3455 = vmatprep.mubr.bf16.mxu0 0
        %3456 = vmatmul.mubr.bf16.gmra.mrb[0].mxu0 %v3418
        %v3457 = vpop.f32.mrb[0].mxu0
        %v3458 = vadd.f32 %v3392, %v3457
        %v3459 = vpop.f32.mrb[0].mxu0
        %v3460 = vadd.f32 %v3392, %v3459
        %v3461 = vpop.f32.mrb[0].mxu0
        %v3462 = vadd.f32 %v3396, %v3461
        %v3463 = vpop.f32.mrb[0].mxu0
        %v3464 = vadd.f32 %v3396, %v3463
        %3465 = vmatprep.mubr.bf16.mxu0 0
        %3466 = vmatmul.mubr.bf16.gmra.mrb[0].mxu0 %v3421
        %v3467 = vpop.f32.mrb[0].mxu0
        %v3468 = vadd.f32 %v3400, %v3467
        %v3469 = vpop.f32.mrb[0].mxu0
        %v3470 = vadd.f32 %v3400, %v3469
        %v3471 = vpop.f32.mrb[0].mxu0
        %v3472 = vadd.f32 %v3404, %v3471
        %v3473 = vpop.f32.mrb[0].mxu0
        %v3474 = vadd.f32 %v3404, %v3473
        %3475 = vdwg.mxu0
        %v3476 = vadd.f32 %v2957, %v3458
        %v3477 = vadd.f32 %v2958, %v3460
        %v3478 = vadd.f32 %v2959, %v3462
        %v3479 = vadd.f32 %v2960, %v3464
        %v3480 = vadd.f32 %v2961, %v3468
        %v3481 = vadd.f32 %v2962, %v3470
        %v3482 = vadd.f32 %v2963, %v3472
        %v3483 = vadd.f32 %v2964, %v3474
        %3484 = vst [vmem:[%s528] sm:$0xff] %v3476
        %3485 = vst [vmem:[%s528 + $0x8] sm:$0xff] %v3477
        %3486 = vst [vmem:[%s528 + $0x10] sm:$0xff] %v3478
        %3487 = vst [vmem:[%s528 + $0x18] sm:$0xff] %v3479
        %3488 = vst [vmem:[%s528 + $0x20] sm:$0xff] %v3480
        %3489 = vst [vmem:[%s528 + $0x28] sm:$0xff] %v3481
        %3490 = vst [vmem:[%s528 + $0x30] sm:$0xff] %v3482
        %3491 = vst [vmem:[%s528 + $0x38] sm:$0xff] %v3483
        %s3492 = sand.u32 %s311, 1
        %s3493 = scalar_lea.sflag [#allocation4], %s3492
        %s3494 = sand.u32 %s311, 1
        %s3495 = smul.addr %s3494, 64
        %s3496 = scalar_lea.vmem [#allocation11], %s3495
        // Predicated region
        $region89: #{tpu_custom_call.1} parent=67 // pred_check
          %p3497 = pneg %p321
        $region90: #{tpu_custom_call.1} parent=67 // pred_check_branch
          %3499 = sbr.rel (%p3497) target = $region92
        $region91: #{tpu_custom_call.1} parent=67 // pred_region
          %s3501 = ssub.s32 1024, 1024
          %3502 = vsyncadd %s3493, %s3501
          %s3503 = smul.addr %s31, 8
          %s3504 = smul.addr %s3503, 128
          %s3505 = scalar_lea.hbm %s12, %s3504
          %s3506 = sshll.u32 %s3496, 4
          %s3507 = int_to_ptr.vmem [resolvable:$true] %s3506
          %3512 = dma.vmem_to_hbm [thread:$0]  %s3507, 1024, %s3505, %s3493, 256, 256, 16
        $region92: #{tpu_custom_call.1} parent=67 // pred_fallthru
          _
      $region68: #{tpu_custom_call.1} parent=5 // pred_fallthru
        _
      %p3513 = scmp.le.s32.totalorder 2, %s26
      // Predicated region
      $region93: #{tpu_custom_call.1} parent=5 // pred_check
        %p3514 = pneg %p3513
      $region94: #{tpu_custom_call.1} parent=5 // pred_check_branch
        %3516 = sbr.rel (%p3514) target = $region96
      $region95: #{tpu_custom_call.1} parent=5 // pred_region
        %s3517 = ssub.s32 %s26, 2
        // Predicated region
        $region97: #{tpu_custom_call.1} parent=95 // pred_check
          %p3518 = pneg %p327
        $region98: #{tpu_custom_call.1} parent=95 // pred_check_branch
          %3520 = sbr.rel (%p3518) target = $region100
        $region99: #{tpu_custom_call.1} parent=95 // pred_region
          %s3521 = sand.u32 %s312, 1
          %s3522 = scalar_lea.sflag [#allocation4], %s3521
          %s3523 = sand.u32 %s312, 1
          %s3524 = smul.addr %s3523, 64
          %s3525 = scalar_lea.vmem [#allocation11], %s3524
          %3526 = dma.done %s3522, 1024
        $region100: #{tpu_custom_call.1} parent=95 // pred_fallthru
          _
      $region96: #{tpu_custom_call.1} parent=5 // pred_fallthru
        _
    $region6: #{tpu_custom_call.1} parent=1 // loop_footer
      %s30 = sadd.s32 1, %s26
    $region7: #{tpu_custom_call.1} parent=1 // loop_footer_branch
      %25 = sbr.rel target = $region3
    $region8: #{tpu_custom_call.1} parent=1 // loop_exit
      _
    %3527 = vsyncpa [#allocation3], 1
    %s3528 = scalar_lea.sflag [#allocation3], 1
    %3529 = vsyncpa %s3528, 1
    %3530 = vsyncpa [#allocation6], 1
    %3531 = vsyncpa [#allocation9], 1
    %3532 = vsyncpa [#allocation4], 1
    %s3533 = scalar_lea.sflag [#allocation4], 1
    %3534 = vsyncpa %s3533, 1

</llo_original>
